<compile_context>
chip_gen: v7x
topology: tpu7x:2x2x1
jax: 0.10.0
libtpu: 0.0.40
codegen_flags: <defaults>
</compile_context>

<pallas_src>
import functools
import math

import jax
import jax.numpy as jnp
from jax import lax
from jax.experimental import pallas as pl
from jax.experimental.pallas import tpu as pltpu

VMEM_LIMIT = 64 * 1024 * 1024


def _round_up(x, m):
    return ((x + m - 1) // m) * m


def _const_spec(shape):
    """BlockSpec covering the whole array, constant across the grid."""
    n = len(shape)
    return pl.BlockSpec(shape, lambda *_: (0,) * n)


# ----------------------------------------------------------------------------
# Generic fused linear kernel: act(X @ W + b), tiled over rows (M), full K/N.
# Used for: conv1d (im2col), hoisted prenet, hoisted key projection, hoisted heads.
# ----------------------------------------------------------------------------
def _linear_kernel(x_ref, w_ref, b_ref, o_ref, *, act):
    y = jnp.dot(x_ref[...], w_ref[...], preferred_element_type=jnp.float32)
    y = y + b_ref[...]
    o_ref[...] = act(y).astype(o_ref.dtype)


def linear_pallas(x, w, b, act=lambda v: v, tile_m=256):
    """x: (M, K), w: (K, N)  (contraction dim leading), b: (N,) -> (M, N)."""
    M, Kd = x.shape
    N = w.shape[1]
    tm = min(tile_m, _round_up(M, 8))
    Mp = _round_up(M, tm)
    xp = jnp.pad(x, ((0, Mp - M), (0, 0))) if Mp != M else x

    out = pl.pallas_call(
        functools.partial(_linear_kernel, act=act),
        out_shape=jax.ShapeDtypeStruct((Mp, N), jnp.float32),
        grid_spec=pltpu.PrefetchScalarGridSpec(
            num_scalar_prefetch=0,
            grid=(Mp // tm,),
            in_specs=[pl.BlockSpec((tm, Kd), lambda i: (i, 0)),
                      pl.BlockSpec((Kd, N), lambda i: (0, 0)),
                      pl.BlockSpec((1, N), lambda i: (0, 0))],
            out_specs=pl.BlockSpec((tm, N), lambda i: (i, 0)),
        ),
        compiler_params=pltpu.CompilerParams(
            dimension_semantics=("parallel",),
            vmem_limit_bytes=VMEM_LIMIT),
    )(xp, w, b.reshape(1, N))
    return out[:M] if Mp != M else out


# ----------------------------------------------------------------------------
# Conv1d via im2col + tiled matmul.  x NWC, w in PyTorch (Cout, Cin, K) layout.
# ----------------------------------------------------------------------------
def conv1d_pallas(x, w, b, act=lambda v: v):
    B, S, Cin = x.shape
    Cout, _, K = w.shape
    pad = (K - 1) // 2
    xpad = jnp.pad(x, ((0, 0), (pad, pad), (0, 0)))
    # unfold taps into the channel axis -> one lane-dense matmul over K*Cin
    x_unf = jnp.concatenate([xpad[:, k:k + S, :] for k in range(K)], axis=-1)
    w_flat = jnp.transpose(w, (2, 1, 0)).reshape(K * Cin, Cout)   # [k*Cin+c, o] = w[o,c,k]
    y = linear_pallas(x_unf.reshape(B * S, K * Cin), w_flat, b, act=act)
    return y.reshape(B, S, Cout)


# ----------------------------------------------------------------------------
# Bidirectional LSTM: one pallas_call, grid = (2 directions [parallel], time chunks
# [arbitrary]); h/c carried in VMEM scratch; a chunk of timesteps per grid step.
# ----------------------------------------------------------------------------
def _make_bilstm_kernel(Tc):
    def kernel(x_ref, wih_ref, whh_ref, b_ref, out_ref, h_scr, c_scr):
        @pl.when(pl.program_id(1) == 0)
        def _init():
            h_scr[...] = jnp.zeros_like(h_scr)
            c_scr[...] = jnp.zeros_like(c_scr)

        wih = wih_ref[...]          # (Din, 4Hd)
        whh = whh_ref[...]          # (Hd, 4Hd)
        bias = b_ref[...]           # (1, 4Hd) -- fused b_ih + b_hh
        Hd = h_scr.shape[-1]

        def step(t, _):
            h = h_scr[...]
            c = c_scr[...]
            x = x_ref[t]            # (B, Din)
            gates = (jnp.dot(x, wih, preferred_element_type=jnp.float32)
                     + jnp.dot(h, whh, preferred_element_type=jnp.float32)
                     + bias)
            i_g = jax.nn.sigmoid(gates[:, 0 * Hd:1 * Hd])
            f_g = jax.nn.sigmoid(gates[:, 1 * Hd:2 * Hd])
            g_g = jnp.tanh(gates[:, 2 * Hd:3 * Hd])
            o_g = jax.nn.sigmoid(gates[:, 3 * Hd:4 * Hd])
            c_new = f_g * c + i_g * g_g
            h_new = o_g * jnp.tanh(c_new)
            h_scr[...] = h_new
            c_scr[...] = c_new
            out_ref[t] = h_new.astype(out_ref.dtype)
            return 0

        lax.fori_loop(0, Tc, step, 0, unroll=True)
    return kernel


def bilstm_pallas(x_tbd, wih_f, whh_f, b_f, wih_b, whh_b, b_b, chunk=16):
    """x_tbd: (S, B, Din) -> (fwd, bwd) each (S, B, Hd). Zero initial state."""
    S, B, Din = x_tbd.shape
    Hd = whh_f.shape[0]
    Tc = min(chunk, S)
    Sp = _round_up(S, Tc)
    # pad at the END (after reversal for the backward dir) so real steps are unaffected
    x_f = jnp.pad(x_tbd, ((0, Sp - S), (0, 0), (0, 0)))
    x_b = jnp.pad(x_tbd[::-1], ((0, Sp - S), (0, 0), (0, 0)))
    x2 = jnp.stack([x_f, x_b], axis=0)                # (2, Sp, B, Din)
    wih = jnp.stack([wih_f, wih_b], axis=0)           # (2, Din, 4Hd)
    whh = jnp.stack([whh_f, whh_b], axis=0)           # (2, Hd, 4Hd)
    bias = jnp.stack([b_f, b_b], axis=0)              # (2, 1, 4Hd)

    out = pl.pallas_call(
        _make_bilstm_kernel(Tc),
        out_shape=jax.ShapeDtypeStruct((2, Sp, B, Hd), jnp.float32),
        grid_spec=pltpu.PrefetchScalarGridSpec(
            num_scalar_prefetch=0,
            grid=(2, Sp // Tc),
            in_specs=[pl.BlockSpec((None, Tc, B, Din), lambda d, i: (d, i, 0, 0)),
                      pl.BlockSpec((None, Din, 4 * Hd), lambda d, i: (d, 0, 0)),
                      pl.BlockSpec((None, Hd, 4 * Hd), lambda d, i: (d, 0, 0)),
                      pl.BlockSpec((None, 1, 4 * Hd), lambda d, i: (d, 0, 0))],
            out_specs=pl.BlockSpec((None, Tc, B, Hd), lambda d, i: (d, i, 0, 0)),
            scratch_shapes=[pltpu.VMEM((B, Hd), jnp.float32),
                            pltpu.VMEM((B, Hd), jnp.float32)],
        ),
        compiler_params=pltpu.CompilerParams(
            dimension_semantics=("parallel", "arbitrary"),   # 2 dirs -> 2 TCs on v7x
            vmem_limit_bytes=VMEM_LIMIT),
    )(x2, wih, whh, bias)

    fwd = out[0, :S]
    bwd = out[1, :S][::-1]
    return fwd, bwd


# ----------------------------------------------------------------------------
# Decoder per-step kernel: attention (keys precomputed) + LSTM cell.
# Prenet and output heads are hoisted out of the loop; memory/keys are copied to
# VMEM scratch ONCE at t==0 from pl.ANY (HBM) refs (no double-buffered constants).
# ----------------------------------------------------------------------------
def decoder_step_kernel(x2_ref, mem_hbm, keys_hbm,
                        wq_ref, we_ref, wih_ref, whh_ref, b_ref,
                        out_ref,
                        h_scr, c_scr, mem_vmem, keys_vmem, sem):
    t = pl.program_id(0)

    @pl.when(t == 0)
    def _init():
        h_scr[...] = jnp.zeros_like(h_scr)
        c_scr[...] = jnp.zeros_like(c_scr)
        cp_m = pltpu.make_async_copy(mem_hbm, mem_vmem, sem.at[0])
        cp_k = pltpu.make_async_copy(keys_hbm, keys_vmem, sem.at[1])
        cp_m.start()
        cp_k.start()
        cp_m.wait()
        cp_k.wait()

    x2 = x2_ref[0]                        # (B, H)  hoisted prenet output
    h = h_scr[...]                        # pre-step hidden (== hidden[0][-1] in PyTorch)
    c = c_scr[...]
    mem = mem_vmem[...]                   # (B, S, H)
    keys = keys_vmem[...]                 # (B, S, H)

    # --- additive attention ---
    query = jnp.dot(h, wq_ref[...], preferred_element_type=jnp.float32)     # (B, H)
    scores = jnp.tanh(query[:, None, :] + keys)                             # (B, S, H)
    e = jnp.sum(scores * we_ref[...], axis=-1)                              # (B, S) VPU+XLU
    e = e - jnp.max(e, axis=-1, keepdims=True)
    a = jnp.exp(e)
    attn = a * pl.reciprocal(jnp.sum(a, axis=-1, keepdims=True), approx=True)
    context = jnp.sum(attn[:, :, None] * mem, axis=1)                       # (B, H)

    # --- LSTM cell (input = [prenet_out, context]) ---
    lstm_in = jnp.concatenate([x2, context], axis=-1)                       # (B, 2H)
    gates = (jnp.dot(lstm_in, wih_ref[...], preferred_element_type=jnp.float32)
             + jnp.dot(h, whh_ref[...], preferred_element_type=jnp.float32)
             + b_ref[...])
    H = h.shape[-1]
    i_g = jax.nn.sigmoid(gates[:, 0 * H:1 * H])
    f_g = jax.nn.sigmoid(gates[:, 1 * H:2 * H])
    g_g = jnp.tanh(gates[:, 2 * H:3 * H])
    o_g = jax.nn.sigmoid(gates[:, 3 * H:4 * H])
    c_new = f_g * c + i_g * g_g
    h_new = o_g * jnp.tanh(c_new)
    h_scr[...] = h_new
    c_scr[...] = c_new

    # heads hoisted out of the loop: emit [h_new, context]
    out_ref[0] = jnp.concatenate([h_new, context], axis=-1).astype(out_ref.dtype)


def run_decoder(memory, mels, kp):
    """Teacher-forced decoder. Runs T = mels.shape[1] steps (== calling the PyTorch
    forward with max_len = mels.shape[1])."""
    B, S, H = memory.shape
    T, nm = mels.shape[1], mels.shape[2]
    relu = lambda v: jnp.maximum(v, 0.0)

    # prev_mel at step t: zeros for t=0, else mels[:, t-1, :]
    mels_tbn = jnp.transpose(mels, (1, 0, 2))
    prev = jnp.concatenate(
        [jnp.zeros((1, B, nm), jnp.float32), mels_tbn[:T - 1]], axis=0)      # (T, B, nm)

    # --- hoisted prenet (two big matmuls instead of 2T tiny ones); dropout = identity ---
    x1 = linear_pallas(prev.reshape(T * B, nm), kp['dec_w1'], kp['dec_b1'], act=relu)
    x2 = linear_pallas(x1, kp['dec_w2'], kp['dec_b2'], act=relu)
    x2_seq = x2.reshape(T, B, H)

    # --- hoisted attention key projection (no bias) ---
    keys = linear_pallas(memory.reshape(B * S, H), kp['att_wk'],
                         jnp.zeros((H,), jnp.float32)).reshape(B, S, H)

    weights = [kp['att_wq'], kp['att_we'], kp['dec_wih'], kp['dec_whh'], kp['dec_b']]

    cost = pl.CostEstimate(
        flops=int(2 * T * B * (H * H + 3 * H * 4 * H + 4 * S * H)),
        transcendentals=int(T * B * (S * H + 8 * H)),
        bytes_accessed=int(4 * (T * B * 3 * H + 2 * B * S * H)))

    hc_seq = pl.pallas_call(
        decoder_step_kernel,
        out_shape=jax.ShapeDtypeStruct((T, B, 2 * H), jnp.float32),
        grid_spec=pltpu.PrefetchScalarGridSpec(
            num_scalar_prefetch=0,
            grid=(T,),
            in_specs=[pl.BlockSpec((1, B, H), lambda t: (t, 0, 0)),
                      pl.BlockSpec(memory_space=pl.ANY),      # memory stays in HBM
                      pl.BlockSpec(memory_space=pl.ANY)]      # keys stay in HBM
                     + [_const_spec(tuple(w.shape)) for w in weights],
            out_specs=pl.BlockSpec((1, B, 2 * H), lambda t: (t, 0, 0)),
            scratch_shapes=[pltpu.VMEM((B, H), jnp.float32),        # h
                            pltpu.VMEM((B, H), jnp.float32),        # c
                            pltpu.VMEM((B, S, H), jnp.float32),     # memory (single copy)
                            pltpu.VMEM((B, S, H), jnp.float32),     # keys   (single copy)
                            pltpu.SemaphoreType.DMA((2,))],
        ),
        compiler_params=pltpu.CompilerParams(
            dimension_semantics=("arbitrary",),
            vmem_limit_bytes=VMEM_LIMIT),
        cost_estimate=cost,
    )(x2_seq, memory, keys, *weights)

    # --- hoisted output heads: one lane-dense matmul for mel+stop over all T steps ---
    heads = linear_pallas(hc_seq.reshape(T * B, 2 * H), kp['head_w'], kp['head_b'])
    heads = heads.reshape(T, B, nm + 1)
    mel_out = jnp.transpose(heads[:, :, :nm], (1, 0, 2))                  # (B, T, nm)
    stop = jax.nn.sigmoid(jnp.transpose(heads[:, :, nm:], (1, 0, 2)))     # (B, T, 1)
    return mel_out, stop


# ----------------------------------------------------------------------------
# Model glue
# ----------------------------------------------------------------------------
def encoder_forward(text, kp):
    relu = lambda v: jnp.maximum(v, 0.0)
    emb = jnp.take(kp['embedding'], text, axis=0)                         # (B, S, E)
    conv_out = conv1d_pallas(emb, kp['enc_conv_w'], kp['enc_conv_b'], act=relu)
    x_tbd = jnp.transpose(conv_out, (1, 0, 2))                            # (S, B, H)
    fwd, bwd = bilstm_pallas(x_tbd,
                             kp['enc_wih_f'], kp['enc_whh_f'], kp['enc_b_f'],
                             kp['enc_wih_b'], kp['enc_whh_b'], kp['enc_b_b'])
    memory = jnp.concatenate([fwd, bwd], axis=-1)                         # (S, B, H)
    return jnp.transpose(memory, (1, 0, 2))                               # (B, S, H)


def postnet_forward(mel_outputs, kp):
    # Conv -> BN(eval, folded into weights) -> Tanh -> Dropout(identity) -> Conv
    h = conv1d_pallas(mel_outputs, kp['post_w1'], kp['post_b1'], act=jnp.tanh)
    return conv1d_pallas(h, kp['post_w2'], kp['post_b2'])


def tacotron2_forward(text, mels, kp):
    memory = encoder_forward(text, kp)
    mel_outputs, stop_tokens = run_decoder(memory, mels, kp)
    mel_outputs_post = mel_outputs + postnet_forward(mel_outputs, kp)
    return mel_outputs, mel_outputs_post, stop_tokens


# ----------------------------------------------------------------------------
# Parameters: init in PyTorch layout, then a one-time conversion to kernel layout.
# ----------------------------------------------------------------------------
def init_params(key, vocab_size, embed_size, hidden_size, n_mels):
    H, E, nm = hidden_size, embed_size, n_mels
    Hd = H // 2
    shapes = {
        'embedding': (vocab_size, E),
        'enc_conv_w': (H, E, 5), 'enc_conv_b': (H,),
        'enc_wih_f': (4 * Hd, H), 'enc_whh_f': (4 * Hd, Hd),
        'enc_bih_f': (4 * Hd,), 'enc_bhh_f': (4 * Hd,),
        'enc_wih_b': (4 * Hd, H), 'enc_whh_b': (4 * Hd, Hd),
        'enc_bih_b': (4 * Hd,), 'enc_bhh_b': (4 * Hd,),
        'dec_w1': (H, nm), 'dec_b1': (H,),
        'dec_w2': (H, H), 'dec_b2': (H,),
        'att_wq': (H, H), 'att_wk': (H, H), 'att_we': (1, H),
        'dec_wih': (4 * H, 2 * H), 'dec_whh': (4 * H, H),
        'dec_bih': (4 * H,), 'dec_bhh': (4 * H,),
        'dec_wmel': (nm, 2 * H), 'dec_bmel': (nm,),
        'dec_wstop': (1, 2 * H), 'dec_bstop': (1,),
        'post_w1': (H, nm, 5), 'post_b1': (H,),
        'post_w2': (nm, H, 5), 'post_b2': (nm,),
    }
    params = {}
    for i, (name, shape) in enumerate(sorted(shapes.items())):
        k = jax.random.fold_in(key, i)
        params[name] = 0.1 * jax.random.normal(k, shape, jnp.float32)
    return params


def prepare_params(p):
    """One-time layout prep: contraction dim leading on RHS weights, fused LSTM biases,
    fused mel+stop head, BatchNorm (eval, default stats) folded into postnet conv1."""
    bn_scale = 1.0 / math.sqrt(1.0 + 1e-5)       # python float -> no captured constants
    return {
        'embedding': p['embedding'],
        'enc_conv_w': p['enc_conv_w'], 'enc_conv_b': p['enc_conv_b'],
        'enc_wih_f': p['enc_wih_f'].T, 'enc_whh_f': p['enc_whh_f'].T,
        'enc_b_f': (p['enc_bih_f'] + p['enc_bhh_f']).reshape(1, -1),
        'enc_wih_b': p['enc_wih_b'].T, 'enc_whh_b': p['enc_whh_b'].T,
        'enc_b_b': (p['enc_bih_b'] + p['enc_bhh_b']).reshape(1, -1),
        'dec_w1': p['dec_w1'].T, 'dec_b1': p['dec_b1'],
        'dec_w2': p['dec_w2'].T, 'dec_b2': p['dec_b2'],
        'att_wq': p['att_wq'].T, 'att_wk': p['att_wk'].T, 'att_we': p['att_we'],
        'dec_wih': p['dec_wih'].T, 'dec_whh': p['dec_whh'].T,
        'dec_b': (p['dec_bih'] + p['dec_bhh']).reshape(1, -1),
        'head_w': jnp.concatenate([p['dec_wmel'].T, p['dec_wstop'].T], axis=1),
        'head_b': jnp.concatenate([p['dec_bmel'], p['dec_bstop']], axis=0),
        'post_w1': p['post_w1'] * bn_scale, 'post_b1': p['post_b1'] * bn_scale,
        'post_w2': p['post_w2'], 'post_b2': p['post_b2'],
    }


# ----------------------------------------------------------------------------
if __name__ == "__main__":
    key = jax.random.PRNGKey(0)
    vocab_size, embed_size, hidden_size, n_mels = 50, 32, 32, 16
    B, S, T = 2, 8, 6

    params = init_params(jax.random.fold_in(key, 100),
                         vocab_size, embed_size, hidden_size, n_mels)
    kparams = prepare_params(params)          # one-time kernel-layout conversion

    text = jax.random.randint(jax.random.fold_in(key, 1), (B, S), 0, vocab_size,
                              dtype=jnp.int32)
    mels = 0.5 * jax.random.normal(jax.random.fold_in(key, 2), (B, T, n_mels),
                                   jnp.float32)

    fwd = jax.jit(tacotron2_forward)
    mel_outputs, mel_outputs_post, stop_tokens = fwd(text, mels, kparams)
    jax.block_until_ready((mel_outputs, mel_outputs_post, stop_tokens))

    assert mel_outputs.shape == (B, T, n_mels)
    assert mel_outputs_post.shape == (B, T, n_mels)
    assert stop_tokens.shape == (B, T, 1)
    assert bool(jnp.all(jnp.isfinite(mel_outputs_post)))
    assert bool(jnp.all(jnp.isfinite(stop_tokens)))
    print("KERNEL_OK")
</pallas_src>

<mosaic_0001>
module attributes {stable_mosaic.version = 11 : i64} {
  func.func @_linear_kernel(%arg0: i32, %arg1: memref<16x16xf32, #tpu.memory_space<vmem>>, %arg2: memref<16x32xf32, #tpu.memory_space<vmem>>, %arg3: memref<1x32xf32, #tpu.memory_space<vmem>>, %arg4: memref<16x32xf32, #tpu.memory_space<vmem>>) attributes {dimension_semantics = [#tpu.dimension_semantics<parallel>], iteration_bounds = array<i64: 1>, scalar_prefetch = 0 : i64, scratch_operands = 0 : i64, tpu.core_type = #tpu.core_type<tc>, window_params = [{transform_indices = @transform_0, window_bounds = array<i64: 16, 16>}, {pipeline_mode = #tpu.pipeline_mode<synchronous>, transform_indices = @transform_1, window_bounds = array<i64: 16, 32>}, {pipeline_mode = #tpu.pipeline_mode<synchronous>, transform_indices = @transform_2, window_bounds = array<i64: 1, 32>}, {transform_indices = @transform_3, window_bounds = array<i64: 16, 32>}]} {
    %c0 = arith.constant 0 : index
    %c0_0 = arith.constant 0 : index
    %0 = vector.load %arg1[%c0, %c0_0] : memref<16x16xf32, #tpu.memory_space<vmem>>, vector<16x16xf32>
    %c0_1 = arith.constant 0 : index
    %c0_2 = arith.constant 0 : index
    %1 = vector.load %arg2[%c0_1, %c0_2] : memref<16x32xf32, #tpu.memory_space<vmem>>, vector<16x32xf32>
    %cst = arith.constant dense<0.000000e+00> : vector<16x32xf32>
    %2 = tpu.matmul %0, %1, %cst {dimension_numbers = #tpu.dot_dimension_numbers<[1], [0], [0], [1], [0, 0, 1, 1], [], []>} : vector<16x16xf32>, vector<16x32xf32>, vector<16x32xf32> -> vector<16x32xf32>
    %c0_3 = arith.constant 0 : index
    %c0_4 = arith.constant 0 : index
    %3 = vector.load %arg3[%c0_3, %c0_4] : memref<1x32xf32, #tpu.memory_space<vmem>>, vector<1x32xf32>
    %4 = vector.broadcast %3 : vector<1x32xf32> to vector<16x32xf32>
    %5 = arith.addf %2, %4 : vector<16x32xf32>
    %cst_5 = arith.constant 0.000000e+00 : f32
    %6 = vector.broadcast %cst_5 : f32 to vector<16x32xf32>
    %7 = arith.maximumf %5, %6 : vector<16x32xf32>
    %c0_6 = arith.constant 0 : index
    %c0_7 = arith.constant 0 : index
    %8 = vector.load %arg4[%c0_6, %c0_7] : memref<16x32xf32, #tpu.memory_space<vmem>>, vector<16x32xf32>
    tpu.vector_store %arg4[%c0_6, %c0_7], %7 {strides = array<i32>} : memref<16x32xf32, #tpu.memory_space<vmem>>, vector<16x32xf32>,
    return
  }
  func.func @transform_0(%arg0: i32) -> (i32, i32) {
    %c0_i32 = arith.constant 0 : i32
    %c0_i32_0 = arith.constant 0 : i32
    return %arg0, %c0_i32 : i32, i32
  }
  func.func @transform_1(%arg0: i32) -> (i32, i32) {
    %c0_i32 = arith.constant 0 : i32
    %c0_i32_0 = arith.constant 0 : i32
    %c0_i32_1 = arith.constant 0 : i32
    return %c0_i32, %c0_i32_0 : i32, i32
  }
  func.func @transform_2(%arg0: i32) -> (i32, i32) {
    %c0_i32 = arith.constant 0 : i32
    %c0_i32_0 = arith.constant 0 : i32
    %c0_i32_1 = arith.constant 0 : i32
    return %c0_i32, %c0_i32_0 : i32, i32
  }
  func.func @transform_3(%arg0: i32) -> (i32, i32) {
    %c0_i32 = arith.constant 0 : i32
    %c0_i32_0 = arith.constant 0 : i32
    return %arg0, %c0_i32 : i32, i32
  }
}

module attributes {stable_mosaic.version = 11 : i64} {
  func.func @_linear_kernel(%arg0: i32, %arg1: memref<16x32xf32, #tpu.memory_space<vmem>>, %arg2: memref<32x32xf32, #tpu.memory_space<vmem>>, %arg3: memref<1x32xf32, #tpu.memory_space<vmem>>, %arg4: memref<16x32xf32, #tpu.memory_space<vmem>>) attributes {dimension_semantics = [#tpu.dimension_semantics<parallel>], iteration_bounds = array<i64: 1>, scalar_prefetch = 0 : i64, scratch_operands = 0 : i64, tpu.core_type = #tpu.core_type<tc>, window_params = [{transform_indices = @transform_0, window_bounds = array<i64: 16, 32>}, {pipeline_mode = #tpu.pipeline_mode<synchronous>, transform_indices = @transform_1, window_bounds = array<i64: 32, 32>}, {pipeline_mode = #tpu.pipeline_mode<synchronous>, transform_indices = @transform_2, window_bounds = array<i64: 1, 32>}, {transform_indices = @transform_3, window_bounds = array<i64: 16, 32>}]} {
    %c0 = arith.constant 0 : index
    %c0_0 = arith.constant 0 : index
    %0 = vector.load %arg1[%c0, %c0_0] : memref<16x32xf32, #tpu.memory_space<vmem>>, vector<16x32xf32>
    %c0_1 = arith.constant 0 : index
    %c0_2 = arith.constant 0 : index
    %1 = vector.load %arg2[%c0_1, %c0_2] : memref<32x32xf32, #tpu.memory_space<vmem>>, vector<32x32xf32>
    %cst = arith.constant dense<0.000000e+00> : vector<16x32xf32>
    %2 = tpu.matmul %0, %1, %cst {dimension_numbers = #tpu.dot_dimension_numbers<[1], [0], [0], [1], [0, 0, 1, 1], [], []>} : vector<16x32xf32>, vector<32x32xf32>, vector<16x32xf32> -> vector<16x32xf32>
    %c0_3 = arith.constant 0 : index
    %c0_4 = arith.constant 0 : index
    %3 = vector.load %arg3[%c0_3, %c0_4] : memref<1x32xf32, #tpu.memory_space<vmem>>, vector<1x32xf32>
    %4 = vector.broadcast %3 : vector<1x32xf32> to vector<16x32xf32>
    %5 = arith.addf %2, %4 : vector<16x32xf32>
    %cst_5 = arith.constant 0.000000e+00 : f32
    %6 = vector.broadcast %cst_5 : f32 to vector<16x32xf32>
    %7 = arith.maximumf %5, %6 : vector<16x32xf32>
    %c0_6 = arith.constant 0 : index
    %c0_7 = arith.constant 0 : index
    %8 = vector.load %arg4[%c0_6, %c0_7] : memref<16x32xf32, #tpu.memory_space<vmem>>, vector<16x32xf32>
    tpu.vector_store %arg4[%c0_6, %c0_7], %7 {strides = array<i32>} : memref<16x32xf32, #tpu.memory_space<vmem>>, vector<16x32xf32>,
    return
  }
  func.func @transform_0(%arg0: i32) -> (i32, i32) {
    %c0_i32 = arith.constant 0 : i32
    %c0_i32_0 = arith.constant 0 : i32
    return %arg0, %c0_i32 : i32, i32
  }
  func.func @transform_1(%arg0: i32) -> (i32, i32) {
    %c0_i32 = arith.constant 0 : i32
    %c0_i32_0 = arith.constant 0 : i32
    %c0_i32_1 = arith.constant 0 : i32
    return %c0_i32, %c0_i32_0 : i32, i32
  }
  func.func @transform_2(%arg0: i32) -> (i32, i32) {
    %c0_i32 = arith.constant 0 : i32
    %c0_i32_0 = arith.constant 0 : i32
    %c0_i32_1 = arith.constant 0 : i32
    return %c0_i32, %c0_i32_0 : i32, i32
  }
  func.func @transform_3(%arg0: i32) -> (i32, i32) {
    %c0_i32 = arith.constant 0 : i32
    %c0_i32_0 = arith.constant 0 : i32
    return %arg0, %c0_i32 : i32, i32
  }
}

module attributes {stable_mosaic.version = 11 : i64} {
  func.func @_linear_kernel(%arg0: i32, %arg1: memref<16x160xf32, #tpu.memory_space<vmem>>, %arg2: memref<160x32xf32, #tpu.memory_space<vmem>>, %arg3: memref<1x32xf32, #tpu.memory_space<vmem>>, %arg4: memref<16x32xf32, #tpu.memory_space<vmem>>) attributes {dimension_semantics = [#tpu.dimension_semantics<parallel>], iteration_bounds = array<i64: 1>, scalar_prefetch = 0 : i64, scratch_operands = 0 : i64, tpu.core_type = #tpu.core_type<tc>, window_params = [{transform_indices = @transform_0, window_bounds = array<i64: 16, 160>}, {pipeline_mode = #tpu.pipeline_mode<synchronous>, transform_indices = @transform_1, window_bounds = array<i64: 160, 32>}, {pipeline_mode = #tpu.pipeline_mode<synchronous>, transform_indices = @transform_2, window_bounds = array<i64: 1, 32>}, {transform_indices = @transform_3, window_bounds = array<i64: 16, 32>}]} {
    %c0 = arith.constant 0 : index
    %c0_0 = arith.constant 0 : index
    %0 = vector.load %arg1[%c0, %c0_0] : memref<16x160xf32, #tpu.memory_space<vmem>>, vector<16x160xf32>
    %c0_1 = arith.constant 0 : index
    %c0_2 = arith.constant 0 : index
    %1 = vector.load %arg2[%c0_1, %c0_2] : memref<160x32xf32, #tpu.memory_space<vmem>>, vector<160x32xf32>
    %cst = arith.constant dense<0.000000e+00> : vector<16x32xf32>
    %2 = tpu.matmul %0, %1, %cst {dimension_numbers = #tpu.dot_dimension_numbers<[1], [0], [0], [1], [0, 0, 1, 1], [], []>} : vector<16x160xf32>, vector<160x32xf32>, vector<16x32xf32> -> vector<16x32xf32>
    %c0_3 = arith.constant 0 : index
    %c0_4 = arith.constant 0 : index
    %3 = vector.load %arg3[%c0_3, %c0_4] : memref<1x32xf32, #tpu.memory_space<vmem>>, vector<1x32xf32>
    %4 = vector.broadcast %3 : vector<1x32xf32> to vector<16x32xf32>
    %5 = arith.addf %2, %4 : vector<16x32xf32>
    %cst_5 = arith.constant 0.000000e+00 : f32
    %6 = vector.broadcast %cst_5 : f32 to vector<16x32xf32>
    %7 = arith.maximumf %5, %6 : vector<16x32xf32>
    %c0_6 = arith.constant 0 : index
    %c0_7 = arith.constant 0 : index
    %8 = vector.load %arg4[%c0_6, %c0_7] : memref<16x32xf32, #tpu.memory_space<vmem>>, vector<16x32xf32>
    tpu.vector_store %arg4[%c0_6, %c0_7], %7 {strides = array<i32>} : memref<16x32xf32, #tpu.memory_space<vmem>>, vector<16x32xf32>,
    return
  }
  func.func @transform_0(%arg0: i32) -> (i32, i32) {
    %c0_i32 = arith.constant 0 : i32
    %c0_i32_0 = arith.constant 0 : i32
    return %arg0, %c0_i32 : i32, i32
  }
  func.func @transform_1(%arg0: i32) -> (i32, i32) {
    %c0_i32 = arith.constant 0 : i32
    %c0_i32_0 = arith.constant 0 : i32
    %c0_i32_1 = arith.constant 0 : i32
    return %c0_i32, %c0_i32_0 : i32, i32
  }
  func.func @transform_2(%arg0: i32) -> (i32, i32) {
    %c0_i32 = arith.constant 0 : i32
    %c0_i32_0 = arith.constant 0 : i32
    %c0_i32_1 = arith.constant 0 : i32
    return %c0_i32, %c0_i32_0 : i32, i32
  }
  func.func @transform_3(%arg0: i32) -> (i32, i32) {
    %c0_i32 = arith.constant 0 : i32
    %c0_i32_0 = arith.constant 0 : i32
    return %arg0, %c0_i32 : i32, i32
  }
}

module attributes {stable_mosaic.version = 11 : i64} {
  func.func @_linear_kernel(%arg0: i32, %arg1: memref<16x32xf32, #tpu.memory_space<vmem>>, %arg2: memref<32x32xf32, #tpu.memory_space<vmem>>, %arg3: memref<1x32xf32, #tpu.memory_space<vmem>>, %arg4: memref<16x32xf32, #tpu.memory_space<vmem>>) attributes {dimension_semantics = [#tpu.dimension_semantics<parallel>], iteration_bounds = array<i64: 1>, scalar_prefetch = 0 : i64, scratch_operands = 0 : i64, tpu.core_type = #tpu.core_type<tc>, window_params = [{transform_indices = @transform_0, window_bounds = array<i64: 16, 32>}, {pipeline_mode = #tpu.pipeline_mode<synchronous>, transform_indices = @transform_1, window_bounds = array<i64: 32, 32>}, {pipeline_mode = #tpu.pipeline_mode<synchronous>, transform_indices = @transform_2, window_bounds = array<i64: 1, 32>}, {transform_indices = @transform_3, window_bounds = array<i64: 16, 32>}]} {
    %c0 = arith.constant 0 : index
    %c0_0 = arith.constant 0 : index
    %0 = vector.load %arg1[%c0, %c0_0] : memref<16x32xf32, #tpu.memory_space<vmem>>, vector<16x32xf32>
    %c0_1 = arith.constant 0 : index
    %c0_2 = arith.constant 0 : index
    %1 = vector.load %arg2[%c0_1, %c0_2] : memref<32x32xf32, #tpu.memory_space<vmem>>, vector<32x32xf32>
    %cst = arith.constant dense<0.000000e+00> : vector<16x32xf32>
    %2 = tpu.matmul %0, %1, %cst {dimension_numbers = #tpu.dot_dimension_numbers<[1], [0], [0], [1], [0, 0, 1, 1], [], []>} : vector<16x32xf32>, vector<32x32xf32>, vector<16x32xf32> -> vector<16x32xf32>
    %c0_3 = arith.constant 0 : index
    %c0_4 = arith.constant 0 : index
    %3 = vector.load %arg3[%c0_3, %c0_4] : memref<1x32xf32, #tpu.memory_space<vmem>>, vector<1x32xf32>
    %4 = vector.broadcast %3 : vector<1x32xf32> to vector<16x32xf32>
    %5 = arith.addf %2, %4 : vector<16x32xf32>
    %c0_5 = arith.constant 0 : index
    %c0_6 = arith.constant 0 : index
    %6 = vector.load %arg4[%c0_5, %c0_6] : memref<16x32xf32, #tpu.memory_space<vmem>>, vector<16x32xf32>
    tpu.vector_store %arg4[%c0_5, %c0_6], %5 {strides = array<i32>} : memref<16x32xf32, #tpu.memory_space<vmem>>, vector<16x32xf32>,
    return
  }
  func.func @transform_0(%arg0: i32) -> (i32, i32) {
    %c0_i32 = arith.constant 0 : i32
    %c0_i32_0 = arith.constant 0 : i32
    return %arg0, %c0_i32 : i32, i32
  }
  func.func @transform_1(%arg0: i32) -> (i32, i32) {
    %c0_i32 = arith.constant 0 : i32
    %c0_i32_0 = arith.constant 0 : i32
    %c0_i32_1 = arith.constant 0 : i32
    return %c0_i32, %c0_i32_0 : i32, i32
  }
  func.func @transform_2(%arg0: i32) -> (i32, i32) {
    %c0_i32 = arith.constant 0 : i32
    %c0_i32_0 = arith.constant 0 : i32
    %c0_i32_1 = arith.constant 0 : i32
    return %c0_i32, %c0_i32_0 : i32, i32
  }
  func.func @transform_3(%arg0: i32) -> (i32, i32) {
    %c0_i32 = arith.constant 0 : i32
    %c0_i32_0 = arith.constant 0 : i32
    return %arg0, %c0_i32 : i32, i32
  }
}

module attributes {stable_mosaic.version = 11 : i64} {
  func.func @kernel(%arg0: i32, %arg1: i32, %arg2: memref<1x8x2x32xf32, #tpu.memory_space<vmem>>, %arg3: memref<1x32x64xf32, #tpu.memory_space<vmem>>, %arg4: memref<1x16x64xf32, #tpu.memory_space<vmem>>, %arg5: memref<1x1x64xf32, #tpu.memory_space<vmem>>, %arg6: memref<1x8x2x16xf32, #tpu.memory_space<vmem>>, %arg7: memref<2x16xf32, #tpu.memory_space<vmem>>, %arg8: memref<2x16xf32, #tpu.memory_space<vmem>>) attributes {dimension_semantics = [#tpu.dimension_semantics<parallel>, #tpu.dimension_semantics<arbitrary>], iteration_bounds = array<i64: 2, 1>, scalar_prefetch = 0 : i64, scratch_operands = 2 : i64, tpu.core_type = #tpu.core_type<tc>, window_params = [{transform_indices = @transform_0, window_bounds = array<i64: 1, 8, 2, 32>}, {transform_indices = @transform_1, window_bounds = array<i64: 1, 32, 64>}, {transform_indices = @transform_2, window_bounds = array<i64: 1, 16, 64>}, {transform_indices = @transform_3, window_bounds = array<i64: 1, 1, 64>}, {transform_indices = @transform_4, window_bounds = array<i64: 1, 8, 2, 16>}]} {
    %c0_i32 = arith.constant 0 : i32
    %0 = arith.cmpi eq, %arg1, %c0_i32 : i32
    %1 = arith.extui %0 : i1 to i32
    %c0_i32_0 = arith.constant 0 : i32
    %2 = arith.cmpi ne, %1, %c0_i32_0 : i32
    scf.if %2 {
      %cst_161 = arith.constant 0.000000e+00 : f32
      %337 = vector.broadcast %cst_161 : f32 to vector<2x16xf32>
      %c0_162 = arith.constant 0 : index
      %c0_163 = arith.constant 0 : index
      %338 = vector.load %arg7[%c0_162, %c0_163] : memref<2x16xf32, #tpu.memory_space<vmem>>, vector<2x16xf32>
      tpu.vector_store %arg7[%c0_162, %c0_163], %337 {strides = array<i32>} : memref<2x16xf32, #tpu.memory_space<vmem>>, vector<2x16xf32>,
      %cst_164 = arith.constant 0.000000e+00 : f32
      %339 = vector.broadcast %cst_164 : f32 to vector<2x16xf32>
      %c0_165 = arith.constant 0 : index
      %c0_166 = arith.constant 0 : index
      %340 = vector.load %arg8[%c0_165, %c0_166] : memref<2x16xf32, #tpu.memory_space<vmem>>, vector<2x16xf32>
      tpu.vector_store %arg8[%c0_165, %c0_166], %339 {strides = array<i32>} : memref<2x16xf32, #tpu.memory_space<vmem>>, vector<2x16xf32>,
    } else {
    }
    %c0 = arith.constant 0 : index
    %c0_1 = arith.constant 0 : index
    %c0_2 = arith.constant 0 : index
    %3 = vector.load %arg3[%c0, %c0_1, %c0_2] : memref<1x32x64xf32, #tpu.memory_space<vmem>>, vector<1x32x64xf32>
    %4 = vector.shape_cast %3 : vector<1x32x64xf32> to vector<32x64xf32>
    %c0_3 = arith.constant 0 : index
    %c0_4 = arith.constant 0 : index
    %c0_5 = arith.constant 0 : index
    %5 = vector.load %arg4[%c0_3, %c0_4, %c0_5] : memref<1x16x64xf32, #tpu.memory_space<vmem>>, vector<1x16x64xf32>
    %6 = vector.shape_cast %5 : vector<1x16x64xf32> to vector<16x64xf32>
    %c0_6 = arith.constant 0 : index
    %c0_7 = arith.constant 0 : index
    %c0_8 = arith.constant 0 : index
    %7 = vector.load %arg5[%c0_6, %c0_7, %c0_8] : memref<1x1x64xf32, #tpu.memory_space<vmem>>, vector<1x1x64xf32>
    %8 = vector.shape_cast %7 : vector<1x1x64xf32> to vector<1x64xf32>
    %c0_i32_9 = arith.constant 0 : i32
    %c0_10 = arith.constant 0 : index
    %c0_11 = arith.constant 0 : index
    %9 = vector.load %arg7[%c0_10, %c0_11] : memref<2x16xf32, #tpu.memory_space<vmem>>, vector<2x16xf32>
    %c0_12 = arith.constant 0 : index
    %c0_13 = arith.constant 0 : index
    %10 = vector.load %arg8[%c0_12, %c0_13] : memref<2x16xf32, #tpu.memory_space<vmem>>, vector<2x16xf32>
    %c0_14 = arith.constant 0 : index
    %11 = arith.index_cast %c0_i32_9 : i32 to index
    %c0_15 = arith.constant 0 : index
    %c0_16 = arith.constant 0 : index
    %12 = vector.load %arg2[%c0_14, %11, %c0_15, %c0_16] : memref<1x8x2x32xf32, #tpu.memory_space<vmem>>, vector<1x1x2x32xf32>
    %13 = vector.shape_cast %12 : vector<1x1x2x32xf32> to vector<2x32xf32>
    %cst = arith.constant dense<0.000000e+00> : vector<2x64xf32>
    %14 = tpu.matmul %13, %4, %cst {dimension_numbers = #tpu.dot_dimension_numbers<[1], [0], [0], [1], [0, 0, 1, 1], [], []>} : vector<2x32xf32>, vector<32x64xf32>, vector<2x64xf32> -> vector<2x64xf32>
    %cst_17 = arith.constant dense<0.000000e+00> : vector<2x64xf32>
    %15 = tpu.matmul %9, %6, %cst_17 {dimension_numbers = #tpu.dot_dimension_numbers<[1], [0], [0], [1], [0, 0, 1, 1], [], []>} : vector<2x16xf32>, vector<16x64xf32>, vector<2x64xf32> -> vector<2x64xf32>
    %16 = arith.addf %14, %15 : vector<2x64xf32>
    %17 = vector.broadcast %8 : vector<1x64xf32> to vector<2x64xf32>
    %18 = arith.addf %16, %17 : vector<2x64xf32>
    %19 = vector.extract_strided_slice %18 {offsets = [0, 0], sizes = [2, 16], strides = [1, 1]} : vector<2x64xf32> to vector<2x16xf32>
    %20 = arith.negf %19 : vector<2x16xf32>
    %21 = math.exp %20 : vector<2x16xf32>
    %cst_18 = arith.constant 1.000000e+00 : f32
    %22 = vector.broadcast %cst_18 : f32 to vector<2x16xf32>
    %23 = arith.addf %22, %21 : vector<2x16xf32>
    %24 = arith.divf %22, %23 : vector<2x16xf32>
    %25 = vector.extract_strided_slice %18 {offsets = [0, 16], sizes = [2, 16], strides = [1, 1]} : vector<2x64xf32> to vector<2x16xf32>
    %26 = arith.negf %25 : vector<2x16xf32>
    %27 = math.exp %26 : vector<2x16xf32>
    %cst_19 = arith.constant 1.000000e+00 : f32
    %28 = vector.broadcast %cst_19 : f32 to vector<2x16xf32>
    %29 = arith.addf %28, %27 : vector<2x16xf32>
    %30 = arith.divf %28, %29 : vector<2x16xf32>
    %31 = vector.extract_strided_slice %18 {offsets = [0, 32], sizes = [2, 16], strides = [1, 1]} : vector<2x64xf32> to vector<2x16xf32>
    %32 = math.tanh %31 : vector<2x16xf32>
    %33 = vector.extract_strided_slice %18 {offsets = [0, 48], sizes = [2, 16], strides = [1, 1]} : vector<2x64xf32> to vector<2x16xf32>
    %34 = arith.negf %33 : vector<2x16xf32>
    %35 = math.exp %34 : vector<2x16xf32>
    %cst_20 = arith.constant 1.000000e+00 : f32
    %36 = vector.broadcast %cst_20 : f32 to vector<2x16xf32>
    %37 = arith.addf %36, %35 : vector<2x16xf32>
    %38 = arith.divf %36, %37 : vector<2x16xf32>
    %39 = arith.mulf %30, %10 : vector<2x16xf32>
    %40 = arith.mulf %24, %32 : vector<2x16xf32>
    %41 = arith.addf %39, %40 : vector<2x16xf32>
    %42 = math.tanh %41 : vector<2x16xf32>
    %43 = arith.mulf %38, %42 : vector<2x16xf32>
    %c0_21 = arith.constant 0 : index
    %c0_22 = arith.constant 0 : index
    %44 = vector.load %arg7[%c0_21, %c0_22] : memref<2x16xf32, #tpu.memory_space<vmem>>, vector<2x16xf32>
    tpu.vector_store %arg7[%c0_21, %c0_22], %43 {strides = array<i32>} : memref<2x16xf32, #tpu.memory_space<vmem>>, vector<2x16xf32>,
    %c0_23 = arith.constant 0 : index
    %c0_24 = arith.constant 0 : index
    %45 = vector.load %arg8[%c0_23, %c0_24] : memref<2x16xf32, #tpu.memory_space<vmem>>, vector<2x16xf32>
    tpu.vector_store %arg8[%c0_23, %c0_24], %41 {strides = array<i32>} : memref<2x16xf32, #tpu.memory_space<vmem>>, vector<2x16xf32>,
    %c0_25 = arith.constant 0 : index
    %46 = arith.index_cast %c0_i32_9 : i32 to index
    %c0_26 = arith.constant 0 : index
    %c0_27 = arith.constant 0 : index
    %47 = vector.load %arg6[%c0_25, %46, %c0_26, %c0_27] : memref<1x8x2x16xf32, #tpu.memory_space<vmem>>, vector<1x1x2x16xf32>
    %48 = vector.shape_cast %47 : vector<1x1x2x16xf32> to vector<2x16xf32>
    %49 = vector.shape_cast %43 : vector<2x16xf32> to vector<1x1x2x16xf32>
    tpu.vector_store %arg6[%c0_25, %46, %c0_26, %c0_27], %49 {strides = array<i32>} : memref<1x8x2x16xf32, #tpu.memory_space<vmem>>, vector<1x1x2x16xf32>,
    %c1_i32 = arith.constant 1 : i32
    %c0_28 = arith.constant 0 : index
    %c0_29 = arith.constant 0 : index
    %50 = vector.load %arg7[%c0_28, %c0_29] : memref<2x16xf32, #tpu.memory_space<vmem>>, vector<2x16xf32>
    %c0_30 = arith.constant 0 : index
    %c0_31 = arith.constant 0 : index
    %51 = vector.load %arg8[%c0_30, %c0_31] : memref<2x16xf32, #tpu.memory_space<vmem>>, vector<2x16xf32>
    %c0_32 = arith.constant 0 : index
    %52 = arith.index_cast %c1_i32 : i32 to index
    %c0_33 = arith.constant 0 : index
    %c0_34 = arith.constant 0 : index
    %53 = vector.load %arg2[%c0_32, %52, %c0_33, %c0_34] : memref<1x8x2x32xf32, #tpu.memory_space<vmem>>, vector<1x1x2x32xf32>
    %54 = vector.shape_cast %53 : vector<1x1x2x32xf32> to vector<2x32xf32>
    %cst_35 = arith.constant dense<0.000000e+00> : vector<2x64xf32>
    %55 = tpu.matmul %54, %4, %cst_35 {dimension_numbers = #tpu.dot_dimension_numbers<[1], [0], [0], [1], [0, 0, 1, 1], [], []>} : vector<2x32xf32>, vector<32x64xf32>, vector<2x64xf32> -> vector<2x64xf32>
    %cst_36 = arith.constant dense<0.000000e+00> : vector<2x64xf32>
    %56 = tpu.matmul %50, %6, %cst_36 {dimension_numbers = #tpu.dot_dimension_numbers<[1], [0], [0], [1], [0, 0, 1, 1], [], []>} : vector<2x16xf32>, vector<16x64xf32>, vector<2x64xf32> -> vector<2x64xf32>
    %57 = arith.addf %55, %56 : vector<2x64xf32>
    %58 = vector.broadcast %8 : vector<1x64xf32> to vector<2x64xf32>
    %59 = arith.addf %57, %58 : vector<2x64xf32>
    %60 = vector.extract_strided_slice %59 {offsets = [0, 0], sizes = [2, 16], strides = [1, 1]} : vector<2x64xf32> to vector<2x16xf32>
    %61 = arith.negf %60 : vector<2x16xf32>
    %62 = math.exp %61 : vector<2x16xf32>
    %cst_37 = arith.constant 1.000000e+00 : f32
    %63 = vector.broadcast %cst_37 : f32 to vector<2x16xf32>
    %64 = arith.addf %63, %62 : vector<2x16xf32>
    %65 = arith.divf %63, %64 : vector<2x16xf32>
    %66 = vector.extract_strided_slice %59 {offsets = [0, 16], sizes = [2, 16], strides = [1, 1]} : vector<2x64xf32> to vector<2x16xf32>
    %67 = arith.negf %66 : vector<2x16xf32>
    %68 = math.exp %67 : vector<2x16xf32>
    %cst_38 = arith.constant 1.000000e+00 : f32
    %69 = vector.broadcast %cst_38 : f32 to vector<2x16xf32>
    %70 = arith.addf %69, %68 : vector<2x16xf32>
    %71 = arith.divf %69, %70 : vector<2x16xf32>
    %72 = vector.extract_strided_slice %59 {offsets = [0, 32], sizes = [2, 16], strides = [1, 1]} : vector<2x64xf32> to vector<2x16xf32>
    %73 = math.tanh %72 : vector<2x16xf32>
    %74 = vector.extract_strided_slice %59 {offsets = [0, 48], sizes = [2, 16], strides = [1, 1]} : vector<2x64xf32> to vector<2x16xf32>
    %75 = arith.negf %74 : vector<2x16xf32>
    %76 = math.exp %75 : vector<2x16xf32>
    %cst_39 = arith.constant 1.000000e+00 : f32
    %77 = vector.broadcast %cst_39 : f32 to vector<2x16xf32>
    %78 = arith.addf %77, %76 : vector<2x16xf32>
    %79 = arith.divf %77, %78 : vector<2x16xf32>
    %80 = arith.mulf %71, %51 : vector<2x16xf32>
    %81 = arith.mulf %65, %73 : vector<2x16xf32>
    %82 = arith.addf %80, %81 : vector<2x16xf32>
    %83 = math.tanh %82 : vector<2x16xf32>
    %84 = arith.mulf %79, %83 : vector<2x16xf32>
    %c0_40 = arith.constant 0 : index
    %c0_41 = arith.constant 0 : index
    %85 = vector.load %arg7[%c0_40, %c0_41] : memref<2x16xf32, #tpu.memory_space<vmem>>, vector<2x16xf32>
    tpu.vector_store %arg7[%c0_40, %c0_41], %84 {strides = array<i32>} : memref<2x16xf32, #tpu.memory_space<vmem>>, vector<2x16xf32>,
    %c0_42 = arith.constant 0 : index
    %c0_43 = arith.constant 0 : index
    %86 = vector.load %arg8[%c0_42, %c0_43] : memref<2x16xf32, #tpu.memory_space<vmem>>, vector<2x16xf32>
    tpu.vector_store %arg8[%c0_42, %c0_43], %82 {strides = array<i32>} : memref<2x16xf32, #tpu.memory_space<vmem>>, vector<2x16xf32>,
    %c0_44 = arith.constant 0 : index
    %87 = arith.index_cast %c1_i32 : i32 to index
    %c0_45 = arith.constant 0 : index
    %c0_46 = arith.constant 0 : index
    %88 = vector.load %arg6[%c0_44, %87, %c0_45, %c0_46] : memref<1x8x2x16xf32, #tpu.memory_space<vmem>>, vector<1x1x2x16xf32>
    %89 = vector.shape_cast %88 : vector<1x1x2x16xf32> to vector<2x16xf32>
    %90 = vector.shape_cast %84 : vector<2x16xf32> to vector<1x1x2x16xf32>
    tpu.vector_store %arg6[%c0_44, %87, %c0_45, %c0_46], %90 {strides = array<i32>} : memref<1x8x2x16xf32, #tpu.memory_space<vmem>>, vector<1x1x2x16xf32>,
    %c2_i32 = arith.constant 2 : i32
    %c0_47 = arith.constant 0 : index
    %c0_48 = arith.constant 0 : index
    %91 = vector.load %arg7[%c0_47, %c0_48] : memref<2x16xf32, #tpu.memory_space<vmem>>, vector<2x16xf32>
    %c0_49 = arith.constant 0 : index
    %c0_50 = arith.constant 0 : index
    %92 = vector.load %arg8[%c0_49, %c0_50] : memref<2x16xf32, #tpu.memory_space<vmem>>, vector<2x16xf32>
    %c0_51 = arith.constant 0 : index
    %93 = arith.index_cast %c2_i32 : i32 to index
    %c0_52 = arith.constant 0 : index
    %c0_53 = arith.constant 0 : index
    %94 = vector.load %arg2[%c0_51, %93, %c0_52, %c0_53] : memref<1x8x2x32xf32, #tpu.memory_space<vmem>>, vector<1x1x2x32xf32>
    %95 = vector.shape_cast %94 : vector<1x1x2x32xf32> to vector<2x32xf32>
    %cst_54 = arith.constant dense<0.000000e+00> : vector<2x64xf32>
    %96 = tpu.matmul %95, %4, %cst_54 {dimension_numbers = #tpu.dot_dimension_numbers<[1], [0], [0], [1], [0, 0, 1, 1], [], []>} : vector<2x32xf32>, vector<32x64xf32>, vector<2x64xf32> -> vector<2x64xf32>
    %cst_55 = arith.constant dense<0.000000e+00> : vector<2x64xf32>
    %97 = tpu.matmul %91, %6, %cst_55 {dimension_numbers = #tpu.dot_dimension_numbers<[1], [0], [0], [1], [0, 0, 1, 1], [], []>} : vector<2x16xf32>, vector<16x64xf32>, vector<2x64xf32> -> vector<2x64xf32>
    %98 = arith.addf %96, %97 : vector<2x64xf32>
    %99 = vector.broadcast %8 : vector<1x64xf32> to vector<2x64xf32>
    %100 = arith.addf %98, %99 : vector<2x64xf32>
    %101 = vector.extract_strided_slice %100 {offsets = [0, 0], sizes = [2, 16], strides = [1, 1]} : vector<2x64xf32> to vector<2x16xf32>
    %102 = arith.negf %101 : vector<2x16xf32>
    %103 = math.exp %102 : vector<2x16xf32>
    %cst_56 = arith.constant 1.000000e+00 : f32
    %104 = vector.broadcast %cst_56 : f32 to vector<2x16xf32>
    %105 = arith.addf %104, %103 : vector<2x16xf32>
    %106 = arith.divf %104, %105 : vector<2x16xf32>
    %107 = vector.extract_strided_slice %100 {offsets = [0, 16], sizes = [2, 16], strides = [1, 1]} : vector<2x64xf32> to vector<2x16xf32>
    %108 = arith.negf %107 : vector<2x16xf32>
    %109 = math.exp %108 : vector<2x16xf32>
    %cst_57 = arith.constant 1.000000e+00 : f32
    %110 = vector.broadcast %cst_57 : f32 to vector<2x16xf32>
    %111 = arith.addf %110, %109 : vector<2x16xf32>
    %112 = arith.divf %110, %111 : vector<2x16xf32>
    %113 = vector.extract_strided_slice %100 {offsets = [0, 32], sizes = [2, 16], strides = [1, 1]} : vector<2x64xf32> to vector<2x16xf32>
    %114 = math.tanh %113 : vector<2x16xf32>
    %115 = vector.extract_strided_slice %100 {offsets = [0, 48], sizes = [2, 16], strides = [1, 1]} : vector<2x64xf32> to vector<2x16xf32>
    %116 = arith.negf %115 : vector<2x16xf32>
    %117 = math.exp %116 : vector<2x16xf32>
    %cst_58 = arith.constant 1.000000e+00 : f32
    %118 = vector.broadcast %cst_58 : f32 to vector<2x16xf32>
    %119 = arith.addf %118, %117 : vector<2x16xf32>
    %120 = arith.divf %118, %119 : vector<2x16xf32>
    %121 = arith.mulf %112, %92 : vector<2x16xf32>
    %122 = arith.mulf %106, %114 : vector<2x16xf32>
    %123 = arith.addf %121, %122 : vector<2x16xf32>
    %124 = math.tanh %123 : vector<2x16xf32>
    %125 = arith.mulf %120, %124 : vector<2x16xf32>
    %c0_59 = arith.constant 0 : index
    %c0_60 = arith.constant 0 : index
    %126 = vector.load %arg7[%c0_59, %c0_60] : memref<2x16xf32, #tpu.memory_space<vmem>>, vector<2x16xf32>
    tpu.vector_store %arg7[%c0_59, %c0_60], %125 {strides = array<i32>} : memref<2x16xf32, #tpu.memory_space<vmem>>, vector<2x16xf32>,
    %c0_61 = arith.constant 0 : index
    %c0_62 = arith.constant 0 : index
    %127 = vector.load %arg8[%c0_61, %c0_62] : memref<2x16xf32, #tpu.memory_space<vmem>>, vector<2x16xf32>
    tpu.vector_store %arg8[%c0_61, %c0_62], %123 {strides = array<i32>} : memref<2x16xf32, #tpu.memory_space<vmem>>, vector<2x16xf32>,
    %c0_63 = arith.constant 0 : index
    %128 = arith.index_cast %c2_i32 : i32 to index
    %c0_64 = arith.constant 0 : index
    %c0_65 = arith.constant 0 : index
    %129 = vector.load %arg6[%c0_63, %128, %c0_64, %c0_65] : memref<1x8x2x16xf32, #tpu.memory_space<vmem>>, vector<1x1x2x16xf32>
    %130 = vector.shape_cast %129 : vector<1x1x2x16xf32> to vector<2x16xf32>
    %131 = vector.shape_cast %125 : vector<2x16xf32> to vector<1x1x2x16xf32>
    tpu.vector_store %arg6[%c0_63, %128, %c0_64, %c0_65], %131 {strides = array<i32>} : memref<1x8x2x16xf32, #tpu.memory_space<vmem>>, vector<1x1x2x16xf32>,
    %c3_i32 = arith.constant 3 : i32
    %c0_66 = arith.constant 0 : index
    %c0_67 = arith.constant 0 : index
    %132 = vector.load %arg7[%c0_66, %c0_67] : memref<2x16xf32, #tpu.memory_space<vmem>>, vector<2x16xf32>
    %c0_68 = arith.constant 0 : index
    %c0_69 = arith.constant 0 : index
    %133 = vector.load %arg8[%c0_68, %c0_69] : memref<2x16xf32, #tpu.memory_space<vmem>>, vector<2x16xf32>
    %c0_70 = arith.constant 0 : index
    %134 = arith.index_cast %c3_i32 : i32 to index
    %c0_71 = arith.constant 0 : index
    %c0_72 = arith.constant 0 : index
    %135 = vector.load %arg2[%c0_70, %134, %c0_71, %c0_72] : memref<1x8x2x32xf32, #tpu.memory_space<vmem>>, vector<1x1x2x32xf32>
    %136 = vector.shape_cast %135 : vector<1x1x2x32xf32> to vector<2x32xf32>
    %cst_73 = arith.constant dense<0.000000e+00> : vector<2x64xf32>
    %137 = tpu.matmul %136, %4, %cst_73 {dimension_numbers = #tpu.dot_dimension_numbers<[1], [0], [0], [1], [0, 0, 1, 1], [], []>} : vector<2x32xf32>, vector<32x64xf32>, vector<2x64xf32> -> vector<2x64xf32>
    %cst_74 = arith.constant dense<0.000000e+00> : vector<2x64xf32>
    %138 = tpu.matmul %132, %6, %cst_74 {dimension_numbers = #tpu.dot_dimension_numbers<[1], [0], [0], [1], [0, 0, 1, 1], [], []>} : vector<2x16xf32>, vector<16x64xf32>, vector<2x64xf32> -> vector<2x64xf32>
    %139 = arith.addf %137, %138 : vector<2x64xf32>
    %140 = vector.broadcast %8 : vector<1x64xf32> to vector<2x64xf32>
    %141 = arith.addf %139, %140 : vector<2x64xf32>
    %142 = vector.extract_strided_slice %141 {offsets = [0, 0], sizes = [2, 16], strides = [1, 1]} : vector<2x64xf32> to vector<2x16xf32>
    %143 = arith.negf %142 : vector<2x16xf32>
    %144 = math.exp %143 : vector<2x16xf32>
    %cst_75 = arith.constant 1.000000e+00 : f32
    %145 = vector.broadcast %cst_75 : f32 to vector<2x16xf32>
    %146 = arith.addf %145, %144 : vector<2x16xf32>
    %147 = arith.divf %145, %146 : vector<2x16xf32>
    %148 = vector.extract_strided_slice %141 {offsets = [0, 16], sizes = [2, 16], strides = [1, 1]} : vector<2x64xf32> to vector<2x16xf32>
    %149 = arith.negf %148 : vector<2x16xf32>
    %150 = math.exp %149 : vector<2x16xf32>
    %cst_76 = arith.constant 1.000000e+00 : f32
    %151 = vector.broadcast %cst_76 : f32 to vector<2x16xf32>
    %152 = arith.addf %151, %150 : vector<2x16xf32>
    %153 = arith.divf %151, %152 : vector<2x16xf32>
    %154 = vector.extract_strided_slice %141 {offsets = [0, 32], sizes = [2, 16], strides = [1, 1]} : vector<2x64xf32> to vector<2x16xf32>
    %155 = math.tanh %154 : vector<2x16xf32>
    %156 = vector.extract_strided_slice %141 {offsets = [0, 48], sizes = [2, 16], strides = [1, 1]} : vector<2x64xf32> to vector<2x16xf32>
    %157 = arith.negf %156 : vector<2x16xf32>
    %158 = math.exp %157 : vector<2x16xf32>
    %cst_77 = arith.constant 1.000000e+00 : f32
    %159 = vector.broadcast %cst_77 : f32 to vector<2x16xf32>
    %160 = arith.addf %159, %158 : vector<2x16xf32>
    %161 = arith.divf %159, %160 : vector<2x16xf32>
    %162 = arith.mulf %153, %133 : vector<2x16xf32>
    %163 = arith.mulf %147, %155 : vector<2x16xf32>
    %164 = arith.addf %162, %163 : vector<2x16xf32>
    %165 = math.tanh %164 : vector<2x16xf32>
    %166 = arith.mulf %161, %165 : vector<2x16xf32>
    %c0_78 = arith.constant 0 : index
    %c0_79 = arith.constant 0 : index
    %167 = vector.load %arg7[%c0_78, %c0_79] : memref<2x16xf32, #tpu.memory_space<vmem>>, vector<2x16xf32>
    tpu.vector_store %arg7[%c0_78, %c0_79], %166 {strides = array<i32>} : memref<2x16xf32, #tpu.memory_space<vmem>>, vector<2x16xf32>,
    %c0_80 = arith.constant 0 : index
    %c0_81 = arith.constant 0 : index
    %168 = vector.load %arg8[%c0_80, %c0_81] : memref<2x16xf32, #tpu.memory_space<vmem>>, vector<2x16xf32>
    tpu.vector_store %arg8[%c0_80, %c0_81], %164 {strides = array<i32>} : memref<2x16xf32, #tpu.memory_space<vmem>>, vector<2x16xf32>,
    %c0_82 = arith.constant 0 : index
    %169 = arith.index_cast %c3_i32 : i32 to index
    %c0_83 = arith.constant 0 : index
    %c0_84 = arith.constant 0 : index
    %170 = vector.load %arg6[%c0_82, %169, %c0_83, %c0_84] : memref<1x8x2x16xf32, #tpu.memory_space<vmem>>, vector<1x1x2x16xf32>
    %171 = vector.shape_cast %170 : vector<1x1x2x16xf32> to vector<2x16xf32>
    %172 = vector.shape_cast %166 : vector<2x16xf32> to vector<1x1x2x16xf32>
    tpu.vector_store %arg6[%c0_82, %169, %c0_83, %c0_84], %172 {strides = array<i32>} : memref<1x8x2x16xf32, #tpu.memory_space<vmem>>, vector<1x1x2x16xf32>,
    %c4_i32 = arith.constant 4 : i32
    %c0_85 = arith.constant 0 : index
    %c0_86 = arith.constant 0 : index
    %173 = vector.load %arg7[%c0_85, %c0_86] : memref<2x16xf32, #tpu.memory_space<vmem>>, vector<2x16xf32>
    %c0_87 = arith.constant 0 : index
    %c0_88 = arith.constant 0 : index
    %174 = vector.load %arg8[%c0_87, %c0_88] : memref<2x16xf32, #tpu.memory_space<vmem>>, vector<2x16xf32>
    %c0_89 = arith.constant 0 : index
    %175 = arith.index_cast %c4_i32 : i32 to index
    %c0_90 = arith.constant 0 : index
    %c0_91 = arith.constant 0 : index
    %176 = vector.load %arg2[%c0_89, %175, %c0_90, %c0_91] : memref<1x8x2x32xf32, #tpu.memory_space<vmem>>, vector<1x1x2x32xf32>
    %177 = vector.shape_cast %176 : vector<1x1x2x32xf32> to vector<2x32xf32>
    %cst_92 = arith.constant dense<0.000000e+00> : vector<2x64xf32>
    %178 = tpu.matmul %177, %4, %cst_92 {dimension_numbers = #tpu.dot_dimension_numbers<[1], [0], [0], [1], [0, 0, 1, 1], [], []>} : vector<2x32xf32>, vector<32x64xf32>, vector<2x64xf32> -> vector<2x64xf32>
    %cst_93 = arith.constant dense<0.000000e+00> : vector<2x64xf32>
    %179 = tpu.matmul %173, %6, %cst_93 {dimension_numbers = #tpu.dot_dimension_numbers<[1], [0], [0], [1], [0, 0, 1, 1], [], []>} : vector<2x16xf32>, vector<16x64xf32>, vector<2x64xf32> -> vector<2x64xf32>
    %180 = arith.addf %178, %179 : vector<2x64xf32>
    %181 = vector.broadcast %8 : vector<1x64xf32> to vector<2x64xf32>
    %182 = arith.addf %180, %181 : vector<2x64xf32>
    %183 = vector.extract_strided_slice %182 {offsets = [0, 0], sizes = [2, 16], strides = [1, 1]} : vector<2x64xf32> to vector<2x16xf32>
    %184 = arith.negf %183 : vector<2x16xf32>
    %185 = math.exp %184 : vector<2x16xf32>
    %cst_94 = arith.constant 1.000000e+00 : f32
    %186 = vector.broadcast %cst_94 : f32 to vector<2x16xf32>
    %187 = arith.addf %186, %185 : vector<2x16xf32>
    %188 = arith.divf %186, %187 : vector<2x16xf32>
    %189 = vector.extract_strided_slice %182 {offsets = [0, 16], sizes = [2, 16], strides = [1, 1]} : vector<2x64xf32> to vector<2x16xf32>
    %190 = arith.negf %189 : vector<2x16xf32>
    %191 = math.exp %190 : vector<2x16xf32>
    %cst_95 = arith.constant 1.000000e+00 : f32
    %192 = vector.broadcast %cst_95 : f32 to vector<2x16xf32>
    %193 = arith.addf %192, %191 : vector<2x16xf32>
    %194 = arith.divf %192, %193 : vector<2x16xf32>
    %195 = vector.extract_strided_slice %182 {offsets = [0, 32], sizes = [2, 16], strides = [1, 1]} : vector<2x64xf32> to vector<2x16xf32>
    %196 = math.tanh %195 : vector<2x16xf32>
    %197 = vector.extract_strided_slice %182 {offsets = [0, 48], sizes = [2, 16], strides = [1, 1]} : vector<2x64xf32> to vector<2x16xf32>
    %198 = arith.negf %197 : vector<2x16xf32>
    %199 = math.exp %198 : vector<2x16xf32>
    %cst_96 = arith.constant 1.000000e+00 : f32
    %200 = vector.broadcast %cst_96 : f32 to vector<2x16xf32>
    %201 = arith.addf %200, %199 : vector<2x16xf32>
    %202 = arith.divf %200, %201 : vector<2x16xf32>
    %203 = arith.mulf %194, %174 : vector<2x16xf32>
    %204 = arith.mulf %188, %196 : vector<2x16xf32>
    %205 = arith.addf %203, %204 : vector<2x16xf32>
    %206 = math.tanh %205 : vector<2x16xf32>
    %207 = arith.mulf %202, %206 : vector<2x16xf32>
    %c0_97 = arith.constant 0 : index
    %c0_98 = arith.constant 0 : index
    %208 = vector.load %arg7[%c0_97, %c0_98] : memref<2x16xf32, #tpu.memory_space<vmem>>, vector<2x16xf32>
    tpu.vector_store %arg7[%c0_97, %c0_98], %207 {strides = array<i32>} : memref<2x16xf32, #tpu.memory_space<vmem>>, vector<2x16xf32>,
    %c0_99 = arith.constant 0 : index
    %c0_100 = arith.constant 0 : index
    %209 = vector.load %arg8[%c0_99, %c0_100] : memref<2x16xf32, #tpu.memory_space<vmem>>, vector<2x16xf32>
    tpu.vector_store %arg8[%c0_99, %c0_100], %205 {strides = array<i32>} : memref<2x16xf32, #tpu.memory_space<vmem>>, vector<2x16xf32>,
    %c0_101 = arith.constant 0 : index
    %210 = arith.index_cast %c4_i32 : i32 to index
    %c0_102 = arith.constant 0 : index
    %c0_103 = arith.constant 0 : index
    %211 = vector.load %arg6[%c0_101, %210, %c0_102, %c0_103] : memref<1x8x2x16xf32, #tpu.memory_space<vmem>>, vector<1x1x2x16xf32>
    %212 = vector.shape_cast %211 : vector<1x1x2x16xf32> to vector<2x16xf32>
    %213 = vector.shape_cast %207 : vector<2x16xf32> to vector<1x1x2x16xf32>
    tpu.vector_store %arg6[%c0_101, %210, %c0_102, %c0_103], %213 {strides = array<i32>} : memref<1x8x2x16xf32, #tpu.memory_space<vmem>>, vector<1x1x2x16xf32>,
    %c5_i32 = arith.constant 5 : i32
    %c0_104 = arith.constant 0 : index
    %c0_105 = arith.constant 0 : index
    %214 = vector.load %arg7[%c0_104, %c0_105] : memref<2x16xf32, #tpu.memory_space<vmem>>, vector<2x16xf32>
    %c0_106 = arith.constant 0 : index
    %c0_107 = arith.constant 0 : index
    %215 = vector.load %arg8[%c0_106, %c0_107] : memref<2x16xf32, #tpu.memory_space<vmem>>, vector<2x16xf32>
    %c0_108 = arith.constant 0 : index
    %216 = arith.index_cast %c5_i32 : i32 to index
    %c0_109 = arith.constant 0 : index
    %c0_110 = arith.constant 0 : index
    %217 = vector.load %arg2[%c0_108, %216, %c0_109, %c0_110] : memref<1x8x2x32xf32, #tpu.memory_space<vmem>>, vector<1x1x2x32xf32>
    %218 = vector.shape_cast %217 : vector<1x1x2x32xf32> to vector<2x32xf32>
    %cst_111 = arith.constant dense<0.000000e+00> : vector<2x64xf32>
    %219 = tpu.matmul %218, %4, %cst_111 {dimension_numbers = #tpu.dot_dimension_numbers<[1], [0], [0], [1], [0, 0, 1, 1], [], []>} : vector<2x32xf32>, vector<32x64xf32>, vector<2x64xf32> -> vector<2x64xf32>
    %cst_112 = arith.constant dense<0.000000e+00> : vector<2x64xf32>
    %220 = tpu.matmul %214, %6, %cst_112 {dimension_numbers = #tpu.dot_dimension_numbers<[1], [0], [0], [1], [0, 0, 1, 1], [], []>} : vector<2x16xf32>, vector<16x64xf32>, vector<2x64xf32> -> vector<2x64xf32>
    %221 = arith.addf %219, %220 : vector<2x64xf32>
    %222 = vector.broadcast %8 : vector<1x64xf32> to vector<2x64xf32>
    %223 = arith.addf %221, %222 : vector<2x64xf32>
    %224 = vector.extract_strided_slice %223 {offsets = [0, 0], sizes = [2, 16], strides = [1, 1]} : vector<2x64xf32> to vector<2x16xf32>
    %225 = arith.negf %224 : vector<2x16xf32>
    %226 = math.exp %225 : vector<2x16xf32>
    %cst_113 = arith.constant 1.000000e+00 : f32
    %227 = vector.broadcast %cst_113 : f32 to vector<2x16xf32>
    %228 = arith.addf %227, %226 : vector<2x16xf32>
    %229 = arith.divf %227, %228 : vector<2x16xf32>
    %230 = vector.extract_strided_slice %223 {offsets = [0, 16], sizes = [2, 16], strides = [1, 1]} : vector<2x64xf32> to vector<2x16xf32>
    %231 = arith.negf %230 : vector<2x16xf32>
    %232 = math.exp %231 : vector<2x16xf32>
    %cst_114 = arith.constant 1.000000e+00 : f32
    %233 = vector.broadcast %cst_114 : f32 to vector<2x16xf32>
    %234 = arith.addf %233, %232 : vector<2x16xf32>
    %235 = arith.divf %233, %234 : vector<2x16xf32>
    %236 = vector.extract_strided_slice %223 {offsets = [0, 32], sizes = [2, 16], strides = [1, 1]} : vector<2x64xf32> to vector<2x16xf32>
    %237 = math.tanh %236 : vector<2x16xf32>
    %238 = vector.extract_strided_slice %223 {offsets = [0, 48], sizes = [2, 16], strides = [1, 1]} : vector<2x64xf32> to vector<2x16xf32>
    %239 = arith.negf %238 : vector<2x16xf32>
    %240 = math.exp %239 : vector<2x16xf32>
    %cst_115 = arith.constant 1.000000e+00 : f32
    %241 = vector.broadcast %cst_115 : f32 to vector<2x16xf32>
    %242 = arith.addf %241, %240 : vector<2x16xf32>
    %243 = arith.divf %241, %242 : vector<2x16xf32>
    %244 = arith.mulf %235, %215 : vector<2x16xf32>
    %245 = arith.mulf %229, %237 : vector<2x16xf32>
    %246 = arith.addf %244, %245 : vector<2x16xf32>
    %247 = math.tanh %246 : vector<2x16xf32>
    %248 = arith.mulf %243, %247 : vector<2x16xf32>
    %c0_116 = arith.constant 0 : index
    %c0_117 = arith.constant 0 : index
    %249 = vector.load %arg7[%c0_116, %c0_117] : memref<2x16xf32, #tpu.memory_space<vmem>>, vector<2x16xf32>
    tpu.vector_store %arg7[%c0_116, %c0_117], %248 {strides = array<i32>} : memref<2x16xf32, #tpu.memory_space<vmem>>, vector<2x16xf32>,
    %c0_118 = arith.constant 0 : index
    %c0_119 = arith.constant 0 : index
    %250 = vector.load %arg8[%c0_118, %c0_119] : memref<2x16xf32, #tpu.memory_space<vmem>>, vector<2x16xf32>
    tpu.vector_store %arg8[%c0_118, %c0_119], %246 {strides = array<i32>} : memref<2x16xf32, #tpu.memory_space<vmem>>, vector<2x16xf32>,
    %c0_120 = arith.constant 0 : index
    %251 = arith.index_cast %c5_i32 : i32 to index
    %c0_121 = arith.constant 0 : index
    %c0_122 = arith.constant 0 : index
    %252 = vector.load %arg6[%c0_120, %251, %c0_121, %c0_122] : memref<1x8x2x16xf32, #tpu.memory_space<vmem>>, vector<1x1x2x16xf32>
    %253 = vector.shape_cast %252 : vector<1x1x2x16xf32> to vector<2x16xf32>
    %254 = vector.shape_cast %248 : vector<2x16xf32> to vector<1x1x2x16xf32>
    tpu.vector_store %arg6[%c0_120, %251, %c0_121, %c0_122], %254 {strides = array<i32>} : memref<1x8x2x16xf32, #tpu.memory_space<vmem>>, vector<1x1x2x16xf32>,
    %c6_i32 = arith.constant 6 : i32
    %c0_123 = arith.constant 0 : index
    %c0_124 = arith.constant 0 : index
    %255 = vector.load %arg7[%c0_123, %c0_124] : memref<2x16xf32, #tpu.memory_space<vmem>>, vector<2x16xf32>
    %c0_125 = arith.constant 0 : index
    %c0_126 = arith.constant 0 : index
    %256 = vector.load %arg8[%c0_125, %c0_126] : memref<2x16xf32, #tpu.memory_space<vmem>>, vector<2x16xf32>
    %c0_127 = arith.constant 0 : index
    %257 = arith.index_cast %c6_i32 : i32 to index
    %c0_128 = arith.constant 0 : index
    %c0_129 = arith.constant 0 : index
    %258 = vector.load %arg2[%c0_127, %257, %c0_128, %c0_129] : memref<1x8x2x32xf32, #tpu.memory_space<vmem>>, vector<1x1x2x32xf32>
    %259 = vector.shape_cast %258 : vector<1x1x2x32xf32> to vector<2x32xf32>
    %cst_130 = arith.constant dense<0.000000e+00> : vector<2x64xf32>
    %260 = tpu.matmul %259, %4, %cst_130 {dimension_numbers = #tpu.dot_dimension_numbers<[1], [0], [0], [1], [0, 0, 1, 1], [], []>} : vector<2x32xf32>, vector<32x64xf32>, vector<2x64xf32> -> vector<2x64xf32>
    %cst_131 = arith.constant dense<0.000000e+00> : vector<2x64xf32>
    %261 = tpu.matmul %255, %6, %cst_131 {dimension_numbers = #tpu.dot_dimension_numbers<[1], [0], [0], [1], [0, 0, 1, 1], [], []>} : vector<2x16xf32>, vector<16x64xf32>, vector<2x64xf32> -> vector<2x64xf32>
    %262 = arith.addf %260, %261 : vector<2x64xf32>
    %263 = vector.broadcast %8 : vector<1x64xf32> to vector<2x64xf32>
    %264 = arith.addf %262, %263 : vector<2x64xf32>
    %265 = vector.extract_strided_slice %264 {offsets = [0, 0], sizes = [2, 16], strides = [1, 1]} : vector<2x64xf32> to vector<2x16xf32>
    %266 = arith.negf %265 : vector<2x16xf32>
    %267 = math.exp %266 : vector<2x16xf32>
    %cst_132 = arith.constant 1.000000e+00 : f32
    %268 = vector.broadcast %cst_132 : f32 to vector<2x16xf32>
    %269 = arith.addf %268, %267 : vector<2x16xf32>
    %270 = arith.divf %268, %269 : vector<2x16xf32>
    %271 = vector.extract_strided_slice %264 {offsets = [0, 16], sizes = [2, 16], strides = [1, 1]} : vector<2x64xf32> to vector<2x16xf32>
    %272 = arith.negf %271 : vector<2x16xf32>
    %273 = math.exp %272 : vector<2x16xf32>
    %cst_133 = arith.constant 1.000000e+00 : f32
    %274 = vector.broadcast %cst_133 : f32 to vector<2x16xf32>
    %275 = arith.addf %274, %273 : vector<2x16xf32>
    %276 = arith.divf %274, %275 : vector<2x16xf32>
    %277 = vector.extract_strided_slice %264 {offsets = [0, 32], sizes = [2, 16], strides = [1, 1]} : vector<2x64xf32> to vector<2x16xf32>
    %278 = math.tanh %277 : vector<2x16xf32>
    %279 = vector.extract_strided_slice %264 {offsets = [0, 48], sizes = [2, 16], strides = [1, 1]} : vector<2x64xf32> to vector<2x16xf32>
    %280 = arith.negf %279 : vector<2x16xf32>
    %281 = math.exp %280 : vector<2x16xf32>
    %cst_134 = arith.constant 1.000000e+00 : f32
    %282 = vector.broadcast %cst_134 : f32 to vector<2x16xf32>
    %283 = arith.addf %282, %281 : vector<2x16xf32>
    %284 = arith.divf %282, %283 : vector<2x16xf32>
    %285 = arith.mulf %276, %256 : vector<2x16xf32>
    %286 = arith.mulf %270, %278 : vector<2x16xf32>
    %287 = arith.addf %285, %286 : vector<2x16xf32>
    %288 = math.tanh %287 : vector<2x16xf32>
    %289 = arith.mulf %284, %288 : vector<2x16xf32>
    %c0_135 = arith.constant 0 : index
    %c0_136 = arith.constant 0 : index
    %290 = vector.load %arg7[%c0_135, %c0_136] : memref<2x16xf32, #tpu.memory_space<vmem>>, vector<2x16xf32>
    tpu.vector_store %arg7[%c0_135, %c0_136], %289 {strides = array<i32>} : memref<2x16xf32, #tpu.memory_space<vmem>>, vector<2x16xf32>,
    %c0_137 = arith.constant 0 : index
    %c0_138 = arith.constant 0 : index
    %291 = vector.load %arg8[%c0_137, %c0_138] : memref<2x16xf32, #tpu.memory_space<vmem>>, vector<2x16xf32>
    tpu.vector_store %arg8[%c0_137, %c0_138], %287 {strides = array<i32>} : memref<2x16xf32, #tpu.memory_space<vmem>>, vector<2x16xf32>,
    %c0_139 = arith.constant 0 : index
    %292 = arith.index_cast %c6_i32 : i32 to index
    %c0_140 = arith.constant 0 : index
    %c0_141 = arith.constant 0 : index
    %293 = vector.load %arg6[%c0_139, %292, %c0_140, %c0_141] : memref<1x8x2x16xf32, #tpu.memory_space<vmem>>, vector<1x1x2x16xf32>
    %294 = vector.shape_cast %293 : vector<1x1x2x16xf32> to vector<2x16xf32>
    %295 = vector.shape_cast %289 : vector<2x16xf32> to vector<1x1x2x16xf32>
    tpu.vector_store %arg6[%c0_139, %292, %c0_140, %c0_141], %295 {strides = array<i32>} : memref<1x8x2x16xf32, #tpu.memory_space<vmem>>, vector<1x1x2x16xf32>,
    %c7_i32 = arith.constant 7 : i32
    %c0_142 = arith.constant 0 : index
    %c0_143 = arith.constant 0 : index
    %296 = vector.load %arg7[%c0_142, %c0_143] : memref<2x16xf32, #tpu.memory_space<vmem>>, vector<2x16xf32>
    %c0_144 = arith.constant 0 : index
    %c0_145 = arith.constant 0 : index
    %297 = vector.load %arg8[%c0_144, %c0_145] : memref<2x16xf32, #tpu.memory_space<vmem>>, vector<2x16xf32>
    %c0_146 = arith.constant 0 : index
    %298 = arith.index_cast %c7_i32 : i32 to index
    %c0_147 = arith.constant 0 : index
    %c0_148 = arith.constant 0 : index
    %299 = vector.load %arg2[%c0_146, %298, %c0_147, %c0_148] : memref<1x8x2x32xf32, #tpu.memory_space<vmem>>, vector<1x1x2x32xf32>
    %300 = vector.shape_cast %299 : vector<1x1x2x32xf32> to vector<2x32xf32>
    %cst_149 = arith.constant dense<0.000000e+00> : vector<2x64xf32>
    %301 = tpu.matmul %300, %4, %cst_149 {dimension_numbers = #tpu.dot_dimension_numbers<[1], [0], [0], [1], [0, 0, 1, 1], [], []>} : vector<2x32xf32>, vector<32x64xf32>, vector<2x64xf32> -> vector<2x64xf32>
    %cst_150 = arith.constant dense<0.000000e+00> : vector<2x64xf32>
    %302 = tpu.matmul %296, %6, %cst_150 {dimension_numbers = #tpu.dot_dimension_numbers<[1], [0], [0], [1], [0, 0, 1, 1], [], []>} : vector<2x16xf32>, vector<16x64xf32>, vector<2x64xf32> -> vector<2x64xf32>
    %303 = arith.addf %301, %302 : vector<2x64xf32>
    %304 = vector.broadcast %8 : vector<1x64xf32> to vector<2x64xf32>
    %305 = arith.addf %303, %304 : vector<2x64xf32>
    %306 = vector.extract_strided_slice %305 {offsets = [0, 0], sizes = [2, 16], strides = [1, 1]} : vector<2x64xf32> to vector<2x16xf32>
    %307 = arith.negf %306 : vector<2x16xf32>
    %308 = math.exp %307 : vector<2x16xf32>
    %cst_151 = arith.constant 1.000000e+00 : f32
    %309 = vector.broadcast %cst_151 : f32 to vector<2x16xf32>
    %310 = arith.addf %309, %308 : vector<2x16xf32>
    %311 = arith.divf %309, %310 : vector<2x16xf32>
    %312 = vector.extract_strided_slice %305 {offsets = [0, 16], sizes = [2, 16], strides = [1, 1]} : vector<2x64xf32> to vector<2x16xf32>
    %313 = arith.negf %312 : vector<2x16xf32>
    %314 = math.exp %313 : vector<2x16xf32>
    %cst_152 = arith.constant 1.000000e+00 : f32
    %315 = vector.broadcast %cst_152 : f32 to vector<2x16xf32>
    %316 = arith.addf %315, %314 : vector<2x16xf32>
    %317 = arith.divf %315, %316 : vector<2x16xf32>
    %318 = vector.extract_strided_slice %305 {offsets = [0, 32], sizes = [2, 16], strides = [1, 1]} : vector<2x64xf32> to vector<2x16xf32>
    %319 = math.tanh %318 : vector<2x16xf32>
    %320 = vector.extract_strided_slice %305 {offsets = [0, 48], sizes = [2, 16], strides = [1, 1]} : vector<2x64xf32> to vector<2x16xf32>
    %321 = arith.negf %320 : vector<2x16xf32>
    %322 = math.exp %321 : vector<2x16xf32>
    %cst_153 = arith.constant 1.000000e+00 : f32
    %323 = vector.broadcast %cst_153 : f32 to vector<2x16xf32>
    %324 = arith.addf %323, %322 : vector<2x16xf32>
    %325 = arith.divf %323, %324 : vector<2x16xf32>
    %326 = arith.mulf %317, %297 : vector<2x16xf32>
    %327 = arith.mulf %311, %319 : vector<2x16xf32>
    %328 = arith.addf %326, %327 : vector<2x16xf32>
    %329 = math.tanh %328 : vector<2x16xf32>
    %330 = arith.mulf %325, %329 : vector<2x16xf32>
    %c0_154 = arith.constant 0 : index
    %c0_155 = arith.constant 0 : index
    %331 = vector.load %arg7[%c0_154, %c0_155] : memref<2x16xf32, #tpu.memory_space<vmem>>, vector<2x16xf32>
    tpu.vector_store %arg7[%c0_154, %c0_155], %330 {strides = array<i32>} : memref<2x16xf32, #tpu.memory_space<vmem>>, vector<2x16xf32>,
    %c0_156 = arith.constant 0 : index
    %c0_157 = arith.constant 0 : index
    %332 = vector.load %arg8[%c0_156, %c0_157] : memref<2x16xf32, #tpu.memory_space<vmem>>, vector<2x16xf32>
    tpu.vector_store %arg8[%c0_156, %c0_157], %328 {strides = array<i32>} : memref<2x16xf32, #tpu.memory_space<vmem>>, vector<2x16xf32>,
    %c0_158 = arith.constant 0 : index
    %333 = arith.index_cast %c7_i32 : i32 to index
    %c0_159 = arith.constant 0 : index
    %c0_160 = arith.constant 0 : index
    %334 = vector.load %arg6[%c0_158, %333, %c0_159, %c0_160] : memref<1x8x2x16xf32, #tpu.memory_space<vmem>>, vector<1x1x2x16xf32>
    %335 = vector.shape_cast %334 : vector<1x1x2x16xf32> to vector<2x16xf32>
    %336 = vector.shape_cast %330 : vector<2x16xf32> to vector<1x1x2x16xf32>
    tpu.vector_store %arg6[%c0_158, %333, %c0_159, %c0_160], %336 {strides = array<i32>} : memref<1x8x2x16xf32, #tpu.memory_space<vmem>>, vector<1x1x2x16xf32>,
    %c8_i32 = arith.constant 8 : i32
    return
  }
  func.func @transform_0(%arg0: i32, %arg1: i32) -> (i32, i32, i32, i32) {
    %c0_i32 = arith.constant 0 : i32
    %c0_i32_0 = arith.constant 0 : i32
    %c0_i32_1 = arith.constant 0 : i32
    return %arg0, %arg1, %c0_i32, %c0_i32_0 : i32, i32, i32, i32
  }
  func.func @transform_1(%arg0: i32, %arg1: i32) -> (i32, i32, i32) {
    %c0_i32 = arith.constant 0 : i32
    %c0_i32_0 = arith.constant 0 : i32
    %c0_i32_1 = arith.constant 0 : i32
    return %arg0, %c0_i32, %c0_i32_0 : i32, i32, i32
  }
  func.func @transform_2(%arg0: i32, %arg1: i32) -> (i32, i32, i32) {
    %c0_i32 = arith.constant 0 : i32
    %c0_i32_0 = arith.constant 0 : i32
    %c0_i32_1 = arith.constant 0 : i32
    return %arg0, %c0_i32, %c0_i32_0 : i32, i32, i32
  }
  func.func @transform_3(%arg0: i32, %arg1: i32) -> (i32, i32, i32) {
    %c0_i32 = arith.constant 0 : i32
    %c0_i32_0 = arith.constant 0 : i32
    %c0_i32_1 = arith.constant 0 : i32
    return %arg0, %c0_i32, %c0_i32_0 : i32, i32, i32
  }
  func.func @transform_4(%arg0: i32, %arg1: i32) -> (i32, i32, i32, i32) {
    %c0_i32 = arith.constant 0 : i32
    %c0_i32_0 = arith.constant 0 : i32
    %c0_i32_1 = arith.constant 0 : i32
    return %arg0, %arg1, %c0_i32, %c0_i32_0 : i32, i32, i32, i32
  }
}

module attributes {stable_mosaic.version = 11 : i64} {
  func.func @decoder_step_kernel(%arg0: i32, %arg1: memref<1x2x32xf32, #tpu.memory_space<vmem>>, %arg2: memref<2x8x32xf32, #tpu.memory_space<any>>, %arg3: memref<2x8x32xf32, #tpu.memory_space<any>>, %arg4: memref<32x32xf32, #tpu.memory_space<vmem>>, %arg5: memref<1x32xf32, #tpu.memory_space<vmem>>, %arg6: memref<64x128xf32, #tpu.memory_space<vmem>>, %arg7: memref<32x128xf32, #tpu.memory_space<vmem>>, %arg8: memref<1x128xf32, #tpu.memory_space<vmem>>, %arg9: memref<1x2x64xf32, #tpu.memory_space<vmem>>, %arg10: memref<2x32xf32, #tpu.memory_space<vmem>>, %arg11: memref<2x32xf32, #tpu.memory_space<vmem>>, %arg12: memref<2x8x32xf32, #tpu.memory_space<vmem>>, %arg13: memref<2x8x32xf32, #tpu.memory_space<vmem>>, %arg14: memref<2x!tpu.dma_semaphore, #tpu.memory_space<semaphore_mem>>) attributes {dimension_semantics = [#tpu.dimension_semantics<arbitrary>], iteration_bounds = array<i64: 6>, scalar_prefetch = 0 : i64, scratch_operands = 5 : i64, tpu.core_type = #tpu.core_type<tc>, window_params = [{transform_indices = @transform_0, window_bounds = array<i64: 1, 2, 32>}, {}, {}, {pipeline_mode = #tpu.pipeline_mode<synchronous>, transform_indices = @transform_3, window_bounds = array<i64: 32, 32>}, {pipeline_mode = #tpu.pipeline_mode<synchronous>, transform_indices = @transform_4, window_bounds = array<i64: 1, 32>}, {pipeline_mode = #tpu.pipeline_mode<synchronous>, transform_indices = @transform_5, window_bounds = array<i64: 64, 128>}, {pipeline_mode = #tpu.pipeline_mode<synchronous>, transform_indices = @transform_6, window_bounds = array<i64: 32, 128>}, {pipeline_mode = #tpu.pipeline_mode<synchronous>, transform_indices = @transform_7, window_bounds = array<i64: 1, 128>}, {transform_indices = @transform_8, window_bounds = array<i64: 1, 2, 64>}]} {
    %c0_i32 = arith.constant 0 : i32
    %0 = arith.cmpi eq, %arg0, %c0_i32 : i32
    %1 = arith.extui %0 : i1 to i32
    %c0_i32_0 = arith.constant 0 : i32
    %2 = arith.cmpi ne, %1, %c0_i32_0 : i32
    scf.if %2 {
      %cst_39 = arith.constant 0.000000e+00 : f32
      %74 = vector.broadcast %cst_39 : f32 to vector<2x32xf32>
      %c0_40 = arith.constant 0 : index
      %c0_41 = arith.constant 0 : index
      %75 = vector.load %arg10[%c0_40, %c0_41] : memref<2x32xf32, #tpu.memory_space<vmem>>, vector<2x32xf32>
      tpu.vector_store %arg10[%c0_40, %c0_41], %74 {strides = array<i32>} : memref<2x32xf32, #tpu.memory_space<vmem>>, vector<2x32xf32>,
      %cst_42 = arith.constant 0.000000e+00 : f32
      %76 = vector.broadcast %cst_42 : f32 to vector<2x32xf32>
      %c0_43 = arith.constant 0 : index
      %c0_44 = arith.constant 0 : index
      %77 = vector.load %arg11[%c0_43, %c0_44] : memref<2x32xf32, #tpu.memory_space<vmem>>, vector<2x32xf32>
      tpu.vector_store %arg11[%c0_43, %c0_44], %76 {strides = array<i32>} : memref<2x32xf32, #tpu.memory_space<vmem>>, vector<2x32xf32>,
      %c0_i32_45 = arith.constant 0 : i32
      %78 = tpu.memref_slice %arg14[%c0_i32_45] : memref<2x!tpu.dma_semaphore, #tpu.memory_space<semaphore_mem>> -> memref<1x!tpu.dma_semaphore, #tpu.memory_space<semaphore_mem>>
      %79 = tpu.memref_squeeze %78 : memref<1x!tpu.dma_semaphore, #tpu.memory_space<semaphore_mem>> -> memref<!tpu.dma_semaphore, #tpu.memory_space<semaphore_mem>>
      tpu.enqueue_dma source(%arg2 : memref<2x8x32xf32, #tpu.memory_space<any>>) target(%arg12 : memref<2x8x32xf32, #tpu.memory_space<vmem>>) target_semaphore(%79 : memref<!tpu.dma_semaphore, #tpu.memory_space<semaphore_mem>>)
      %c1_i32 = arith.constant 1 : i32
      %80 = tpu.memref_slice %arg14[%c1_i32] : memref<2x!tpu.dma_semaphore, #tpu.memory_space<semaphore_mem>> -> memref<1x!tpu.dma_semaphore, #tpu.memory_space<semaphore_mem>>
      %81 = tpu.memref_squeeze %80 : memref<1x!tpu.dma_semaphore, #tpu.memory_space<semaphore_mem>> -> memref<!tpu.dma_semaphore, #tpu.memory_space<semaphore_mem>>
      tpu.enqueue_dma source(%arg3 : memref<2x8x32xf32, #tpu.memory_space<any>>) target(%arg13 : memref<2x8x32xf32, #tpu.memory_space<vmem>>) target_semaphore(%81 : memref<!tpu.dma_semaphore, #tpu.memory_space<semaphore_mem>>)
      %c0_i32_46 = arith.constant 0 : i32
      %82 = tpu.memref_slice %arg14[%c0_i32_46] : memref<2x!tpu.dma_semaphore, #tpu.memory_space<semaphore_mem>> -> memref<1x!tpu.dma_semaphore, #tpu.memory_space<semaphore_mem>>
      %83 = tpu.memref_squeeze %82 : memref<1x!tpu.dma_semaphore, #tpu.memory_space<semaphore_mem>> -> memref<!tpu.dma_semaphore, #tpu.memory_space<semaphore_mem>>
      tpu.wait_dma2 semaphore(%83 : memref<!tpu.dma_semaphore, #tpu.memory_space<semaphore_mem>>) src(%arg2 : memref<2x8x32xf32, #tpu.memory_space<any>>) dst(%arg12 : memref<2x8x32xf32, #tpu.memory_space<vmem>>)
      %c1_i32_47 = arith.constant 1 : i32
      %84 = tpu.memref_slice %arg14[%c1_i32_47] : memref<2x!tpu.dma_semaphore, #tpu.memory_space<semaphore_mem>> -> memref<1x!tpu.dma_semaphore, #tpu.memory_space<semaphore_mem>>
      %85 = tpu.memref_squeeze %84 : memref<1x!tpu.dma_semaphore, #tpu.memory_space<semaphore_mem>> -> memref<!tpu.dma_semaphore, #tpu.memory_space<semaphore_mem>>
      tpu.wait_dma2 semaphore(%85 : memref<!tpu.dma_semaphore, #tpu.memory_space<semaphore_mem>>) src(%arg3 : memref<2x8x32xf32, #tpu.memory_space<any>>) dst(%arg13 : memref<2x8x32xf32, #tpu.memory_space<vmem>>)
    } else {
    }
    %c0 = arith.constant 0 : index
    %c0_1 = arith.constant 0 : index
    %c0_2 = arith.constant 0 : index
    %3 = vector.load %arg1[%c0, %c0_1, %c0_2] : memref<1x2x32xf32, #tpu.memory_space<vmem>>, vector<1x2x32xf32>
    %4 = vector.shape_cast %3 : vector<1x2x32xf32> to vector<2x32xf32>
    %c0_3 = arith.constant 0 : index
    %c0_4 = arith.constant 0 : index
    %5 = vector.load %arg10[%c0_3, %c0_4] : memref<2x32xf32, #tpu.memory_space<vmem>>, vector<2x32xf32>
    %c0_5 = arith.constant 0 : index
    %c0_6 = arith.constant 0 : index
    %6 = vector.load %arg11[%c0_5, %c0_6] : memref<2x32xf32, #tpu.memory_space<vmem>>, vector<2x32xf32>
    %c0_7 = arith.constant 0 : index
    %c0_8 = arith.constant 0 : index
    %c0_9 = arith.constant 0 : index
    %7 = vector.load %arg12[%c0_7, %c0_8, %c0_9] : memref<2x8x32xf32, #tpu.memory_space<vmem>>, vector<2x8x32xf32>
    %c0_10 = arith.constant 0 : index
    %c0_11 = arith.constant 0 : index
    %c0_12 = arith.constant 0 : index
    %8 = vector.load %arg13[%c0_10, %c0_11, %c0_12] : memref<2x8x32xf32, #tpu.memory_space<vmem>>, vector<2x8x32xf32>
    %c0_13 = arith.constant 0 : index
    %c0_14 = arith.constant 0 : index
    %9 = vector.load %arg4[%c0_13, %c0_14] : memref<32x32xf32, #tpu.memory_space<vmem>>, vector<32x32xf32>
    %cst = arith.constant dense<0.000000e+00> : vector<2x32xf32>
    %10 = tpu.matmul %5, %9, %cst {dimension_numbers = #tpu.dot_dimension_numbers<[1], [0], [0], [1], [0, 0, 1, 1], [], []>} : vector<2x32xf32>, vector<32x32xf32>, vector<2x32xf32> -> vector<2x32xf32>
    %11 = vector.shape_cast %10 : vector<2x32xf32> to vector<2x1x32xf32>
    %12 = vector.broadcast %11 : vector<2x1x32xf32> to vector<2x8x32xf32>
    %13 = arith.addf %12, %8 : vector<2x8x32xf32>
    %14 = math.tanh %13 : vector<2x8x32xf32>
    %c0_15 = arith.constant 0 : index
    %c0_16 = arith.constant 0 : index
    %15 = vector.load %arg5[%c0_15, %c0_16] : memref<1x32xf32, #tpu.memory_space<vmem>>, vector<1x32xf32>
    %16 = vector.shape_cast %15 : vector<1x32xf32> to vector<1x1x32xf32>
    %17 = vector.broadcast %16 : vector<1x1x32xf32> to vector<2x8x32xf32>
    %18 = arith.mulf %14, %17 : vector<2x8x32xf32>
    %cst_17 = arith.constant dense<0.000000e+00> : vector<2x8xf32>
    %19 = vector.multi_reduction <add>, %18, %cst_17 [2] : vector<2x8x32xf32> to vector<2x8xf32>
    %cst_18 = arith.constant dense<0xFF800000> : vector<2xf32>
    %20 = vector.multi_reduction <maximumf>, %19, %cst_18 [1] : vector<2x8xf32> to vector<2xf32>
    %21 = vector.shape_cast %20 : vector<2xf32> to vector<2x1xf32>
    %22 = vector.broadcast %21 : vector<2x1xf32> to vector<2x8xf32>
    %23 = arith.subf %19, %22 : vector<2x8xf32>
    %24 = math.exp %23 : vector<2x8xf32>
    %cst_19 = arith.constant dense<0.000000e+00> : vector<2xf32>
    %25 = vector.multi_reduction <add>, %24, %cst_19 [1] : vector<2x8xf32> to vector<2xf32>
    %26 = vector.shape_cast %25 : vector<2xf32> to vector<2x1xf32>
    %27 = tpu.reciprocal %26 {approx = true} : vector<2x1xf32> -> vector<2x1xf32>
    %28 = vector.broadcast %27 : vector<2x1xf32> to vector<2x8xf32>
    %29 = arith.mulf %24, %28 : vector<2x8xf32>
    %30 = vector.shape_cast %29 : vector<2x8xf32> to vector<2x8x1xf32>
    %31 = vector.broadcast %30 : vector<2x8x1xf32> to vector<2x8x32xf32>
    %32 = arith.mulf %31, %7 : vector<2x8x32xf32>
    %cst_20 = arith.constant dense<0.000000e+00> : vector<2x32xf32>
    %33 = vector.multi_reduction <add>, %32, %cst_20 [1] : vector<2x8x32xf32> to vector<2x32xf32>
    %34 = tpu.concatenate %4, %33 in 1 : vector<2x32xf32>, vector<2x32xf32> -> vector<2x64xf32>
    %c0_21 = arith.constant 0 : index
    %c0_22 = arith.constant 0 : index
    %35 = vector.load %arg6[%c0_21, %c0_22] : memref<64x128xf32, #tpu.memory_space<vmem>>, vector<64x128xf32>
    %cst_23 = arith.constant dense<0.000000e+00> : vector<2x128xf32>
    %36 = tpu.matmul %34, %35, %cst_23 {dimension_numbers = #tpu.dot_dimension_numbers<[1], [0], [0], [1], [0, 0, 1, 1], [], []>} : vector<2x64xf32>, vector<64x128xf32>, vector<2x128xf32> -> vector<2x128xf32>
    %c0_24 = arith.constant 0 : index
    %c0_25 = arith.constant 0 : index
    %37 = vector.load %arg7[%c0_24, %c0_25] : memref<32x128xf32, #tpu.memory_space<vmem>>, vector<32x128xf32>
    %cst_26 = arith.constant dense<0.000000e+00> : vector<2x128xf32>
    %38 = tpu.matmul %5, %37, %cst_26 {dimension_numbers = #tpu.dot_dimension_numbers<[1], [0], [0], [1], [0, 0, 1, 1], [], []>} : vector<2x32xf32>, vector<32x128xf32>, vector<2x128xf32> -> vector<2x128xf32>
    %39 = arith.addf %36, %38 : vector<2x128xf32>
    %c0_27 = arith.constant 0 : index
    %c0_28 = arith.constant 0 : index
    %40 = vector.load %arg8[%c0_27, %c0_28] : memref<1x128xf32, #tpu.memory_space<vmem>>, vector<1x128xf32>
    %41 = vector.broadcast %40 : vector<1x128xf32> to vector<2x128xf32>
    %42 = arith.addf %39, %41 : vector<2x128xf32>
    %43 = vector.extract_strided_slice %42 {offsets = [0, 0], sizes = [2, 32], strides = [1, 1]} : vector<2x128xf32> to vector<2x32xf32>
    %44 = arith.negf %43 : vector<2x32xf32>
    %45 = math.exp %44 : vector<2x32xf32>
    %cst_29 = arith.constant 1.000000e+00 : f32
    %46 = vector.broadcast %cst_29 : f32 to vector<2x32xf32>
    %47 = arith.addf %46, %45 : vector<2x32xf32>
    %48 = arith.divf %46, %47 : vector<2x32xf32>
    %49 = vector.extract_strided_slice %42 {offsets = [0, 32], sizes = [2, 32], strides = [1, 1]} : vector<2x128xf32> to vector<2x32xf32>
    %50 = arith.negf %49 : vector<2x32xf32>
    %51 = math.exp %50 : vector<2x32xf32>
    %cst_30 = arith.constant 1.000000e+00 : f32
    %52 = vector.broadcast %cst_30 : f32 to vector<2x32xf32>
    %53 = arith.addf %52, %51 : vector<2x32xf32>
    %54 = arith.divf %52, %53 : vector<2x32xf32>
    %55 = vector.extract_strided_slice %42 {offsets = [0, 64], sizes = [2, 32], strides = [1, 1]} : vector<2x128xf32> to vector<2x32xf32>
    %56 = math.tanh %55 : vector<2x32xf32>
    %57 = vector.extract_strided_slice %42 {offsets = [0, 96], sizes = [2, 32], strides = [1, 1]} : vector<2x128xf32> to vector<2x32xf32>
    %58 = arith.negf %57 : vector<2x32xf32>
    %59 = math.exp %58 : vector<2x32xf32>
    %cst_31 = arith.constant 1.000000e+00 : f32
    %60 = vector.broadcast %cst_31 : f32 to vector<2x32xf32>
    %61 = arith.addf %60, %59 : vector<2x32xf32>
    %62 = arith.divf %60, %61 : vector<2x32xf32>
    %63 = arith.mulf %54, %6 : vector<2x32xf32>
    %64 = arith.mulf %48, %56 : vector<2x32xf32>
    %65 = arith.addf %63, %64 : vector<2x32xf32>
    %66 = math.tanh %65 : vector<2x32xf32>
    %67 = arith.mulf %62, %66 : vector<2x32xf32>
    %c0_32 = arith.constant 0 : index
    %c0_33 = arith.constant 0 : index
    %68 = vector.load %arg10[%c0_32, %c0_33] : memref<2x32xf32, #tpu.memory_space<vmem>>, vector<2x32xf32>
    tpu.vector_store %arg10[%c0_32, %c0_33], %67 {strides = array<i32>} : memref<2x32xf32, #tpu.memory_space<vmem>>, vector<2x32xf32>,
    %c0_34 = arith.constant 0 : index
    %c0_35 = arith.constant 0 : index
    %69 = vector.load %arg11[%c0_34, %c0_35] : memref<2x32xf32, #tpu.memory_space<vmem>>, vector<2x32xf32>
    tpu.vector_store %arg11[%c0_34, %c0_35], %65 {strides = array<i32>} : memref<2x32xf32, #tpu.memory_space<vmem>>, vector<2x32xf32>,
    %70 = tpu.concatenate %67, %33 in 1 : vector<2x32xf32>, vector<2x32xf32> -> vector<2x64xf32>
    %c0_36 = arith.constant 0 : index
    %c0_37 = arith.constant 0 : index
    %c0_38 = arith.constant 0 : index
    %71 = vector.load %arg9[%c0_36, %c0_37, %c0_38] : memref<1x2x64xf32, #tpu.memory_space<vmem>>, vector<1x2x64xf32>
    %72 = vector.shape_cast %71 : vector<1x2x64xf32> to vector<2x64xf32>
    %73 = vector.shape_cast %70 : vector<2x64xf32> to vector<1x2x64xf32>
    tpu.vector_store %arg9[%c0_36, %c0_37, %c0_38], %73 {strides = array<i32>} : memref<1x2x64xf32, #tpu.memory_space<vmem>>, vector<1x2x64xf32>,
    return
  }
  func.func @transform_0(%arg0: i32) -> (i32, i32, i32) {
    %c0_i32 = arith.constant 0 : i32
    %c0_i32_0 = arith.constant 0 : i32
    %c0_i32_1 = arith.constant 0 : i32
    return %arg0, %c0_i32, %c0_i32_0 : i32, i32, i32
  }
  func.func @transform_3(%arg0: i32) -> (i32, i32) {
    %c0_i32 = arith.constant 0 : i32
    %c0_i32_0 = arith.constant 0 : i32
    %c0_i32_1 = arith.constant 0 : i32
    return %c0_i32, %c0_i32_0 : i32, i32
  }
  func.func @transform_4(%arg0: i32) -> (i32, i32) {
    %c0_i32 = arith.constant 0 : i32
    %c0_i32_0 = arith.constant 0 : i32
    %c0_i32_1 = arith.constant 0 : i32
    return %c0_i32, %c0_i32_0 : i32, i32
  }
  func.func @transform_5(%arg0: i32) -> (i32, i32) {
    %c0_i32 = arith.constant 0 : i32
    %c0_i32_0 = arith.constant 0 : i32
    %c0_i32_1 = arith.constant 0 : i32
    return %c0_i32, %c0_i32_0 : i32, i32
  }
  func.func @transform_6(%arg0: i32) -> (i32, i32) {
    %c0_i32 = arith.constant 0 : i32
    %c0_i32_0 = arith.constant 0 : i32
    %c0_i32_1 = arith.constant 0 : i32
    return %c0_i32, %c0_i32_0 : i32, i32
  }
  func.func @transform_7(%arg0: i32) -> (i32, i32) {
    %c0_i32 = arith.constant 0 : i32
    %c0_i32_0 = arith.constant 0 : i32
    %c0_i32_1 = arith.constant 0 : i32
    return %c0_i32, %c0_i32_0 : i32, i32
  }
  func.func @transform_8(%arg0: i32) -> (i32, i32, i32) {
    %c0_i32 = arith.constant 0 : i32
    %c0_i32_0 = arith.constant 0 : i32
    %c0_i32_1 = arith.constant 0 : i32
    return %arg0, %c0_i32, %c0_i32_0 : i32, i32, i32
  }
}

module attributes {stable_mosaic.version = 11 : i64} {
  func.func @_linear_kernel(%arg0: i32, %arg1: memref<16x64xf32, #tpu.memory_space<vmem>>, %arg2: memref<64x17xf32, #tpu.memory_space<vmem>>, %arg3: memref<1x17xf32, #tpu.memory_space<vmem>>, %arg4: memref<16x17xf32, #tpu.memory_space<vmem>>) attributes {dimension_semantics = [#tpu.dimension_semantics<parallel>], iteration_bounds = array<i64: 1>, scalar_prefetch = 0 : i64, scratch_operands = 0 : i64, tpu.core_type = #tpu.core_type<tc>, window_params = [{transform_indices = @transform_0, window_bounds = array<i64: 16, 64>}, {pipeline_mode = #tpu.pipeline_mode<synchronous>, transform_indices = @transform_1, window_bounds = array<i64: 64, 17>}, {pipeline_mode = #tpu.pipeline_mode<synchronous>, transform_indices = @transform_2, window_bounds = array<i64: 1, 17>}, {transform_indices = @transform_3, window_bounds = array<i64: 16, 17>}]} {
    %c0 = arith.constant 0 : index
    %c0_0 = arith.constant 0 : index
    %0 = vector.load %arg1[%c0, %c0_0] : memref<16x64xf32, #tpu.memory_space<vmem>>, vector<16x64xf32>
    %c0_1 = arith.constant 0 : index
    %c0_2 = arith.constant 0 : index
    %1 = vector.load %arg2[%c0_1, %c0_2] : memref<64x17xf32, #tpu.memory_space<vmem>>, vector<64x17xf32>
    %cst = arith.constant dense<0.000000e+00> : vector<16x17xf32>
    %2 = tpu.matmul %0, %1, %cst {dimension_numbers = #tpu.dot_dimension_numbers<[1], [0], [0], [1], [0, 0, 1, 1], [], []>} : vector<16x64xf32>, vector<64x17xf32>, vector<16x17xf32> -> vector<16x17xf32>
    %c0_3 = arith.constant 0 : index
    %c0_4 = arith.constant 0 : index
    %3 = vector.load %arg3[%c0_3, %c0_4] : memref<1x17xf32, #tpu.memory_space<vmem>>, vector<1x17xf32>
    %4 = vector.broadcast %3 : vector<1x17xf32> to vector<16x17xf32>
    %5 = arith.addf %2, %4 : vector<16x17xf32>
    %c0_5 = arith.constant 0 : index
    %c0_6 = arith.constant 0 : index
    %6 = vector.load %arg4[%c0_5, %c0_6] : memref<16x17xf32, #tpu.memory_space<vmem>>, vector<16x17xf32>
    tpu.vector_store %arg4[%c0_5, %c0_6], %5 {strides = array<i32>} : memref<16x17xf32, #tpu.memory_space<vmem>>, vector<16x17xf32>,
    return
  }
  func.func @transform_0(%arg0: i32) -> (i32, i32) {
    %c0_i32 = arith.constant 0 : i32
    %c0_i32_0 = arith.constant 0 : i32
    return %arg0, %c0_i32 : i32, i32
  }
  func.func @transform_1(%arg0: i32) -> (i32, i32) {
    %c0_i32 = arith.constant 0 : i32
    %c0_i32_0 = arith.constant 0 : i32
    %c0_i32_1 = arith.constant 0 : i32
    return %c0_i32, %c0_i32_0 : i32, i32
  }
  func.func @transform_2(%arg0: i32) -> (i32, i32) {
    %c0_i32 = arith.constant 0 : i32
    %c0_i32_0 = arith.constant 0 : i32
    %c0_i32_1 = arith.constant 0 : i32
    return %c0_i32, %c0_i32_0 : i32, i32
  }
  func.func @transform_3(%arg0: i32) -> (i32, i32) {
    %c0_i32 = arith.constant 0 : i32
    %c0_i32_0 = arith.constant 0 : i32
    return %arg0, %c0_i32 : i32, i32
  }
}

module attributes {stable_mosaic.version = 11 : i64} {
  func.func @_linear_kernel(%arg0: i32, %arg1: memref<16x80xf32, #tpu.memory_space<vmem>>, %arg2: memref<80x32xf32, #tpu.memory_space<vmem>>, %arg3: memref<1x32xf32, #tpu.memory_space<vmem>>, %arg4: memref<16x32xf32, #tpu.memory_space<vmem>>) attributes {dimension_semantics = [#tpu.dimension_semantics<parallel>], iteration_bounds = array<i64: 1>, scalar_prefetch = 0 : i64, scratch_operands = 0 : i64, tpu.core_type = #tpu.core_type<tc>, window_params = [{transform_indices = @transform_0, window_bounds = array<i64: 16, 80>}, {pipeline_mode = #tpu.pipeline_mode<synchronous>, transform_indices = @transform_1, window_bounds = array<i64: 80, 32>}, {pipeline_mode = #tpu.pipeline_mode<synchronous>, transform_indices = @transform_2, window_bounds = array<i64: 1, 32>}, {transform_indices = @transform_3, window_bounds = array<i64: 16, 32>}]} {
    %c0 = arith.constant 0 : index
    %c0_0 = arith.constant 0 : index
    %0 = vector.load %arg1[%c0, %c0_0] : memref<16x80xf32, #tpu.memory_space<vmem>>, vector<16x80xf32>
    %c0_1 = arith.constant 0 : index
    %c0_2 = arith.constant 0 : index
    %1 = vector.load %arg2[%c0_1, %c0_2] : memref<80x32xf32, #tpu.memory_space<vmem>>, vector<80x32xf32>
    %cst = arith.constant dense<0.000000e+00> : vector<16x32xf32>
    %2 = tpu.matmul %0, %1, %cst {dimension_numbers = #tpu.dot_dimension_numbers<[1], [0], [0], [1], [0, 0, 1, 1], [], []>} : vector<16x80xf32>, vector<80x32xf32>, vector<16x32xf32> -> vector<16x32xf32>
    %c0_3 = arith.constant 0 : index
    %c0_4 = arith.constant 0 : index
    %3 = vector.load %arg3[%c0_3, %c0_4] : memref<1x32xf32, #tpu.memory_space<vmem>>, vector<1x32xf32>
    %4 = vector.broadcast %3 : vector<1x32xf32> to vector<16x32xf32>
    %5 = arith.addf %2, %4 : vector<16x32xf32>
    %6 = math.tanh %5 : vector<16x32xf32>
    %c0_5 = arith.constant 0 : index
    %c0_6 = arith.constant 0 : index
    %7 = vector.load %arg4[%c0_5, %c0_6] : memref<16x32xf32, #tpu.memory_space<vmem>>, vector<16x32xf32>
    tpu.vector_store %arg4[%c0_5, %c0_6], %6 {strides = array<i32>} : memref<16x32xf32, #tpu.memory_space<vmem>>, vector<16x32xf32>,
    return
  }
  func.func @transform_0(%arg0: i32) -> (i32, i32) {
    %c0_i32 = arith.constant 0 : i32
    %c0_i32_0 = arith.constant 0 : i32
    return %arg0, %c0_i32 : i32, i32
  }
  func.func @transform_1(%arg0: i32) -> (i32, i32) {
    %c0_i32 = arith.constant 0 : i32
    %c0_i32_0 = arith.constant 0 : i32
    %c0_i32_1 = arith.constant 0 : i32
    return %c0_i32, %c0_i32_0 : i32, i32
  }
  func.func @transform_2(%arg0: i32) -> (i32, i32) {
    %c0_i32 = arith.constant 0 : i32
    %c0_i32_0 = arith.constant 0 : i32
    %c0_i32_1 = arith.constant 0 : i32
    return %c0_i32, %c0_i32_0 : i32, i32
  }
  func.func @transform_3(%arg0: i32) -> (i32, i32) {
    %c0_i32 = arith.constant 0 : i32
    %c0_i32_0 = arith.constant 0 : i32
    return %arg0, %c0_i32 : i32, i32
  }
}

module attributes {stable_mosaic.version = 11 : i64} {
  func.func @_linear_kernel(%arg0: i32, %arg1: memref<16x160xf32, #tpu.memory_space<vmem>>, %arg2: memref<160x16xf32, #tpu.memory_space<vmem>>, %arg3: memref<1x16xf32, #tpu.memory_space<vmem>>, %arg4: memref<16x16xf32, #tpu.memory_space<vmem>>) attributes {dimension_semantics = [#tpu.dimension_semantics<parallel>], iteration_bounds = array<i64: 1>, scalar_prefetch = 0 : i64, scratch_operands = 0 : i64, tpu.core_type = #tpu.core_type<tc>, window_params = [{transform_indices = @transform_0, window_bounds = array<i64: 16, 160>}, {pipeline_mode = #tpu.pipeline_mode<synchronous>, transform_indices = @transform_1, window_bounds = array<i64: 160, 16>}, {pipeline_mode = #tpu.pipeline_mode<synchronous>, transform_indices = @transform_2, window_bounds = array<i64: 1, 16>}, {transform_indices = @transform_3, window_bounds = array<i64: 16, 16>}]} {
    %c0 = arith.constant 0 : index
    %c0_0 = arith.constant 0 : index
    %0 = vector.load %arg1[%c0, %c0_0] : memref<16x160xf32, #tpu.memory_space<vmem>>, vector<16x160xf32>
    %c0_1 = arith.constant 0 : index
    %c0_2 = arith.constant 0 : index
    %1 = vector.load %arg2[%c0_1, %c0_2] : memref<160x16xf32, #tpu.memory_space<vmem>>, vector<160x16xf32>
    %cst = arith.constant dense<0.000000e+00> : vector<16x16xf32>
    %2 = tpu.matmul %0, %1, %cst {dimension_numbers = #tpu.dot_dimension_numbers<[1], [0], [0], [1], [0, 0, 1, 1], [], []>} : vector<16x160xf32>, vector<160x16xf32>, vector<16x16xf32> -> vector<16x16xf32>
    %c0_3 = arith.constant 0 : index
    %c0_4 = arith.constant 0 : index
    %3 = vector.load %arg3[%c0_3, %c0_4] : memref<1x16xf32, #tpu.memory_space<vmem>>, vector<1x16xf32>
    %4 = vector.broadcast %3 : vector<1x16xf32> to vector<16x16xf32>
    %5 = arith.addf %2, %4 : vector<16x16xf32>
    %c0_5 = arith.constant 0 : index
    %c0_6 = arith.constant 0 : index
    %6 = vector.load %arg4[%c0_5, %c0_6] : memref<16x16xf32, #tpu.memory_space<vmem>>, vector<16x16xf32>
    tpu.vector_store %arg4[%c0_5, %c0_6], %5 {strides = array<i32>} : memref<16x16xf32, #tpu.memory_space<vmem>>, vector<16x16xf32>,
    return
  }
  func.func @transform_0(%arg0: i32) -> (i32, i32) {
    %c0_i32 = arith.constant 0 : i32
    %c0_i32_0 = arith.constant 0 : i32
    return %arg0, %c0_i32 : i32, i32
  }
  func.func @transform_1(%arg0: i32) -> (i32, i32) {
    %c0_i32 = arith.constant 0 : i32
    %c0_i32_0 = arith.constant 0 : i32
    %c0_i32_1 = arith.constant 0 : i32
    return %c0_i32, %c0_i32_0 : i32, i32
  }
  func.func @transform_2(%arg0: i32) -> (i32, i32) {
    %c0_i32 = arith.constant 0 : i32
    %c0_i32_0 = arith.constant 0 : i32
    %c0_i32_1 = arith.constant 0 : i32
    return %c0_i32, %c0_i32_0 : i32, i32
  }
  func.func @transform_3(%arg0: i32) -> (i32, i32) {
    %c0_i32 = arith.constant 0 : i32
    %c0_i32_0 = arith.constant 0 : i32
    return %arg0, %c0_i32 : i32, i32
  }
}

</mosaic_0001>

<llo_original>
// kernel: tacotron2_forward.11
$region0: #{tacotron2_forward.11}
  #allocation0 [shape = 'u32[]', space=smem, size = 0x4, offset = 0x4, fixed_abs, tag = 'smem constant byte address 0x4 - core index']
  #allocation1 [shape = 'u32[144,128]{1,0:T(1,128)}', space=vmem, size = 0x12000, scoped, tag = 'internal scratch']
  %s0 = inlined_call_operand.hbm [shape: f32[16,16], index: 0, kind: input, shape index: {}]
  %s1 = inlined_call_operand.hbm [shape: f32[16,32], index: 1, kind: input, shape index: {}]
  %s2 = inlined_call_operand.hbm [shape: f32[1,32], index: 2, kind: input, shape index: {}]
  %s3 = inlined_call_operand.hbm [shape: f32[16,32], index: 3, kind: output, shape index: {}]
  %s4 = sld [smem:[#allocation0]]
  $region34: #{tacotron2_forward.11} parent=0
    _
  %s6 = ssub.s32 1, %s4
  %s7 = scalar_select 0, %s6, %s4
  $region1: #{tacotron2_forward.11} parent=0
    #allocation2 [shape = 'u8[8192]{0}', space=vmem, size = 0x2000, scoped, tag = 'input window, operand 0, single buffered']
    #allocation3 [shape = 's32[1]{0}', space=sflag, size = 0x4, scoped, tag = 'scoped memory for tacotron2_forward.11']
    #allocation4 [shape = 's32[1]{0}', space=sflag, size = 0x4, scoped, tag = 'scoped memory for tacotron2_forward.11']
    #allocation5 [shape = 'u8[8192]{0}', space=vmem, size = 0x2000, scoped, tag = 'input window, operand 1, single buffered']
    #allocation6 [shape = 's32[1]{0}', space=sflag, size = 0x4, scoped, tag = 'scoped memory for tacotron2_forward.11']
    #allocation7 [shape = 'u8[512]{0}', space=vmem, size = 0x400, scoped, tag = 'input window, operand 2, single buffered']
    #allocation8 [shape = 'u8[8192]{0}', space=vmem, size = 0x2000, scoped, tag = 'output window, operand 0, single buffered']
    %8 = vsyncpa [#allocation3], 0
    %9 = vsyncpa [#allocation6], 0
    %10 = vsyncpa [#allocation4], 0
    // Predicated region
    $region2: #{tacotron2_forward.11} parent=1 // pred_check
      _
    $region3: #{tacotron2_forward.11} parent=1 // pred_check_branch
      %12 = sbr.rel (0) target = $region5
    $region4: #{tacotron2_forward.11} parent=1 // pred_region
      %s14 = ssub.s32 256, 256
      %15 = vsyncadd [#allocation3], %s14
      %s16 = sshll.u32 [#allocation2], 4
      %s17 = int_to_ptr.vmem [resolvable:$true] %s16
      %22 = dma.hbm_to_vmem [thread:$0]  %s0, 256, %s17, [#allocation3], 128, 128, 8
    $region5: #{tacotron2_forward.11} parent=1 // pred_fallthru
      _
    // Predicated region
    $region6: #{tacotron2_forward.11} parent=1 // pred_check
      _
    $region7: #{tacotron2_forward.11} parent=1 // pred_check_branch
      %24 = sbr.rel (0) target = $region9
    $region8: #{tacotron2_forward.11} parent=1 // pred_region
      %s26 = ssub.s32 256, 256
      %27 = vsyncadd [#allocation6], %s26
      %s28 = sshll.u32 [#allocation5], 4
      %s29 = int_to_ptr.vmem [resolvable:$true] %s28
      %34 = dma.hbm_to_vmem [thread:$0]  %s1, 256, %s29, [#allocation6], 128, 128, 8
    $region9: #{tacotron2_forward.11} parent=1 // pred_fallthru
      _
    // Predicated region
    $region10: #{tacotron2_forward.11} parent=1 // pred_check
      _
    $region11: #{tacotron2_forward.11} parent=1 // pred_check_branch
      %36 = sbr.rel (0) target = $region13
    $region12: #{tacotron2_forward.11} parent=1 // pred_region
      %s38 = ssub.s32 16, 16
      %39 = vsyncadd [#allocation6], %s38
      %s41 = sshll.u32 [#allocation7], 4
      %s42 = int_to_ptr.vmem [resolvable:$true] %s41
      %44 = dma.hbm_to_vmem [thread:$0]  %s2, 16, %s42, [#allocation6]
    $region13: #{tacotron2_forward.11} parent=1 // pred_fallthru
      _
    // Predicated region
    $region14: #{tacotron2_forward.11} parent=1 // pred_check
      _
    $region15: #{tacotron2_forward.11} parent=1 // pred_check_branch
      %46 = sbr.rel (0) target = $region17
    $region16: #{tacotron2_forward.11} parent=1 // pred_region
      %47 = dma.done [#allocation3], 256
    $region17: #{tacotron2_forward.11} parent=1 // pred_fallthru
      _
    // Predicated region
    $region18: #{tacotron2_forward.11} parent=1 // pred_check
      _
    $region19: #{tacotron2_forward.11} parent=1 // pred_check_branch
      %49 = sbr.rel (0) target = $region21
    $region20: #{tacotron2_forward.11} parent=1 // pred_region
      %50 = dma.done [#allocation6], 256
    $region21: #{tacotron2_forward.11} parent=1 // pred_fallthru
      _
    // Predicated region
    $region22: #{tacotron2_forward.11} parent=1 // pred_check
      _
    $region23: #{tacotron2_forward.11} parent=1 // pred_check_branch
      %52 = sbr.rel (0) target = $region25
    $region24: #{tacotron2_forward.11} parent=1 // pred_region
      %53 = dma.done [#allocation6], 16
    $region25: #{tacotron2_forward.11} parent=1 // pred_fallthru
      _
    %v54 = vld [vmem:[#allocation2] sm:$0xff]
    %v55 = vld [vmem:[#allocation2 + $0x8] sm:$0xff]
    %v56 = vld [vmem:[#allocation5] sm:$0xff]
    %v57 = vld [vmem:[#allocation5 + $0x8] sm:$0xff]
    %v58 = vld [vmem:[#allocation7] sm:$0x1]
    %v60 = vlaneseq
    %v61 = vshrl.u32 %v60, 7
    %v62 = vsub.s32 0, %v61
    %v63 = vrot.slane %v58, %v62
    %vm65 = vcmask 130048
    %v67 = vsel %vm65, %v54, 0
    %v70 = vsel %vm65, %v55, 0
    %72 = vmatprep.subr.mxu0 0.0
    %73 = vmatpush1.msra.mxu0 %v56
    %74 = vmatprep.subr.mxu0 0.0
    %75 = vmatpush1.msra.mxu0 %v57
    %76 = vmatprep.subr.mxu0 0.0
    %77 = vmatpush1.msra.mxu0 0.0
    %78 = vmatprep.subr.mxu0 0.0
    %79 = vmatpush1.msra.mxu0 0.0
    %80 = vmatprep.subr.mxu0 0.0
    %81 = vmatpush1.msra.mxu0 0.0
    %82 = vmatprep.subr.mxu0 0.0
    %83 = vmatpush1.msra.mxu0 0.0
    %84 = vmatprep.subr.mxu0 0.0
    %85 = vmatpush1.msra.mxu0 0.0
    %86 = vmatprep.subr.mxu0 0.0
    %87 = vmatpush1.msra.mxu0 0.0
    %88 = vmatprep.subr.mxu0 0.0
    %89 = vmatpush1.msra.mxu0 0.0
    %90 = vmatprep.subr.mxu0 0.0
    %91 = vmatpush1.msra.mxu0 0.0
    %92 = vmatprep.subr.mxu0 0.0
    %93 = vmatpush1.msra.mxu0 0.0
    %94 = vmatprep.subr.mxu0 0.0
    %95 = vmatpush1.msra.mxu0 0.0
    %96 = vmatprep.subr.mxu0 0.0
    %97 = vmatpush1.msra.mxu0 0.0
    %98 = vmatprep.subr.mxu0 0.0
    %99 = vmatpush1.msra.mxu0 0.0
    %100 = vmatprep.subr.mxu0 0.0
    %101 = vmatpush1.msra.mxu0 0.0
    %102 = vmatprep.subr.mxu0 0.0
    %103 = vmatpush1.msra.mxu0 0.0
    %104 = vmatprep.subr.mxu0 0.0
    %105 = vmatpush1.msra.mxu0 0.0
    %106 = vmatprep.subr.mxu0 0.0
    %107 = vmatpush1.msra.mxu0 0.0
    %108 = vmatprep.subr.mxu0 0.0
    %109 = vmatpush1.msra.mxu0 0.0
    %110 = vmatprep.subr.mxu0 0.0
    %111 = vmatpush1.msra.mxu0 0.0
    %112 = vmatprep.subr.mxu0 0.0
    %113 = vmatpush1.msra.mxu0 0.0
    %114 = vmatprep.subr.mxu0 0.0
    %115 = vmatpush1.msra.mxu0 0.0
    %116 = vmatprep.subr.mxu0 0.0
    %117 = vmatpush1.msra.mxu0 0.0
    %118 = vmatprep.subr.mxu0 0.0
    %119 = vmatpush1.msra.mxu0 0.0
    %120 = vmatprep.subr.mxu0 0.0
    %121 = vmatpush1.msra.mxu0 0.0
    %122 = vmatprep.subr.mxu0 0.0
    %123 = vmatpush1.msra.mxu0 0.0
    %124 = vmatprep.subr.mxu0 0.0
    %125 = vmatpush1.msra.mxu0 0.0
    %126 = vmatprep.subr.mxu0 0.0
    %127 = vmatpush1.msra.mxu0 0.0
    %128 = vmatprep.subr.mxu0 0.0
    %129 = vmatpush1.msra.mxu0 0.0
    %130 = vmatprep.subr.mxu0 0.0
    %131 = vmatpush1.msra.mxu0 0.0
    %132 = vmatprep.subr.mxu0 0.0
    %133 = vmatpush1.msra.mxu0 0.0
    %134 = vmatprep.subr.mxu0 0.0
    %135 = vmatpush1.msra.mxu0 0.0
    %136 = vmatprep.mubr.f32.mxu0 0.0
    %137 = vmatmul.mubr.f32.gmra.mrb[0].mxu0 %v67
    %v138 = vpop.f32.mrb[0].mxu0
    %v139 = vadd.f32 %v63, %v138
    %v140 = vpop.f32.mrb[0].mxu0
    %141 = vmatprep.mubr.f32.mxu0 0.0
    %142 = vmatmul.mubr.f32.gmra.mrb[0].mxu0 %v70
    %v143 = vpop.f32.mrb[0].mxu0
    %v144 = vadd.f32 %v63, %v143
    %v145 = vpop.f32.mrb[0].mxu0
    %146 = vdwg.mxu0
    %v147 = vmax.f32 %v139, 0.0
    %v148 = vmax.f32 %v144, 0.0
    %vm149 = vcmask 261120
    %150 = vst.msk [vmem:[#allocation8] sm:$0xff] %vm149, %v147
    %151 = vst.msk [vmem:[#allocation8 + $0x8] sm:$0xff] %vm149, %v148
    // Predicated region
    $region26: #{tacotron2_forward.11} parent=1 // pred_check
      _
    $region27: #{tacotron2_forward.11} parent=1 // pred_check_branch
      %153 = sbr.rel (0) target = $region29
    $region28: #{tacotron2_forward.11} parent=1 // pred_region
      %s155 = ssub.s32 256, 256
      %156 = vsyncadd [#allocation4], %s155
      %s157 = sshll.u32 [#allocation8], 4
      %s158 = int_to_ptr.vmem [resolvable:$true] %s157
      %163 = dma.vmem_to_hbm [thread:$0]  %s158, 256, %s3, [#allocation4], 128, 128, 8
    $region29: #{tacotron2_forward.11} parent=1 // pred_fallthru
      _
    // Predicated region
    $region30: #{tacotron2_forward.11} parent=1 // pred_check
      _
    $region31: #{tacotron2_forward.11} parent=1 // pred_check_branch
      %165 = sbr.rel (0) target = $region33
    $region32: #{tacotron2_forward.11} parent=1 // pred_region
      %166 = dma.done [#allocation4], 256
    $region33: #{tacotron2_forward.11} parent=1 // pred_fallthru
      _
    %167 = vsyncpa [#allocation3], 1
    %168 = vsyncpa [#allocation6], 1
    %169 = vsyncpa [#allocation4], 1

// kernel: tacotron2_forward.12
$region0: #{tacotron2_forward.12}
  #allocation0 [shape = 'u32[]', space=smem, size = 0x4, offset = 0x4, fixed_abs, tag = 'smem constant byte address 0x4 - core index']
  #allocation1 [shape = 'u32[144,128]{1,0:T(1,128)}', space=vmem, size = 0x12000, scoped, tag = 'internal scratch']
  %s0 = inlined_call_operand.hbm [shape: f32[16,32], index: 0, kind: input, shape index: {}]
  %s1 = inlined_call_operand.hbm [shape: f32[32,32], index: 1, kind: input, shape index: {}]
  %s2 = inlined_call_operand.hbm [shape: f32[1,32], index: 2, kind: input, shape index: {}]
  %s3 = inlined_call_operand.hbm [shape: f32[16,32], index: 3, kind: output, shape index: {}]
  %s4 = sld [smem:[#allocation0]]
  $region34: #{tacotron2_forward.12} parent=0
    _
  %s6 = ssub.s32 1, %s4
  %s7 = scalar_select 0, %s6, %s4
  $region1: #{tacotron2_forward.12} parent=0
    #allocation2 [shape = 'u8[8192]{0}', space=vmem, size = 0x2000, scoped, tag = 'input window, operand 0, single buffered']
    #allocation3 [shape = 's32[1]{0}', space=sflag, size = 0x4, scoped, tag = 'scoped memory for tacotron2_forward.12']
    #allocation4 [shape = 's32[1]{0}', space=sflag, size = 0x4, scoped, tag = 'scoped memory for tacotron2_forward.12']
    #allocation5 [shape = 'u8[16384]{0}', space=vmem, size = 0x4000, scoped, tag = 'input window, operand 1, single buffered']
    #allocation6 [shape = 's32[1]{0}', space=sflag, size = 0x4, scoped, tag = 'scoped memory for tacotron2_forward.12']
    #allocation7 [shape = 'u8[512]{0}', space=vmem, size = 0x400, scoped, tag = 'input window, operand 2, single buffered']
    #allocation8 [shape = 'u8[8192]{0}', space=vmem, size = 0x2000, scoped, tag = 'output window, operand 0, single buffered']
    %8 = vsyncpa [#allocation3], 0
    %9 = vsyncpa [#allocation6], 0
    %10 = vsyncpa [#allocation4], 0
    // Predicated region
    $region2: #{tacotron2_forward.12} parent=1 // pred_check
      _
    $region3: #{tacotron2_forward.12} parent=1 // pred_check_branch
      %12 = sbr.rel (0) target = $region5
    $region4: #{tacotron2_forward.12} parent=1 // pred_region
      %s14 = ssub.s32 256, 256
      %15 = vsyncadd [#allocation3], %s14
      %s16 = sshll.u32 [#allocation2], 4
      %s17 = int_to_ptr.vmem [resolvable:$true] %s16
      %22 = dma.hbm_to_vmem [thread:$0]  %s0, 256, %s17, [#allocation3], 128, 128, 8
    $region5: #{tacotron2_forward.12} parent=1 // pred_fallthru
      _
    // Predicated region
    $region6: #{tacotron2_forward.12} parent=1 // pred_check
      _
    $region7: #{tacotron2_forward.12} parent=1 // pred_check_branch
      %24 = sbr.rel (0) target = $region9
    $region8: #{tacotron2_forward.12} parent=1 // pred_region
      %s26 = ssub.s32 512, 512
      %27 = vsyncadd [#allocation6], %s26
      %s28 = sshll.u32 [#allocation5], 4
      %s29 = int_to_ptr.vmem [resolvable:$true] %s28
      %34 = dma.hbm_to_vmem [thread:$0]  %s1, 512, %s29, [#allocation6], 128, 128, 8
    $region9: #{tacotron2_forward.12} parent=1 // pred_fallthru
      _
    // Predicated region
    $region10: #{tacotron2_forward.12} parent=1 // pred_check
      _
    $region11: #{tacotron2_forward.12} parent=1 // pred_check_branch
      %36 = sbr.rel (0) target = $region13
    $region12: #{tacotron2_forward.12} parent=1 // pred_region
      %s38 = ssub.s32 16, 16
      %39 = vsyncadd [#allocation6], %s38
      %s41 = sshll.u32 [#allocation7], 4
      %s42 = int_to_ptr.vmem [resolvable:$true] %s41
      %44 = dma.hbm_to_vmem [thread:$0]  %s2, 16, %s42, [#allocation6]
    $region13: #{tacotron2_forward.12} parent=1 // pred_fallthru
      _
    // Predicated region
    $region14: #{tacotron2_forward.12} parent=1 // pred_check
      _
    $region15: #{tacotron2_forward.12} parent=1 // pred_check_branch
      %46 = sbr.rel (0) target = $region17
    $region16: #{tacotron2_forward.12} parent=1 // pred_region
      %47 = dma.done [#allocation3], 256
    $region17: #{tacotron2_forward.12} parent=1 // pred_fallthru
      _
    // Predicated region
    $region18: #{tacotron2_forward.12} parent=1 // pred_check
      _
    $region19: #{tacotron2_forward.12} parent=1 // pred_check_branch
      %49 = sbr.rel (0) target = $region21
    $region20: #{tacotron2_forward.12} parent=1 // pred_region
      %50 = dma.done [#allocation6], 512
    $region21: #{tacotron2_forward.12} parent=1 // pred_fallthru
      _
    // Predicated region
    $region22: #{tacotron2_forward.12} parent=1 // pred_check
      _
    $region23: #{tacotron2_forward.12} parent=1 // pred_check_branch
      %52 = sbr.rel (0) target = $region25
    $region24: #{tacotron2_forward.12} parent=1 // pred_region
      %53 = dma.done [#allocation6], 16
    $region25: #{tacotron2_forward.12} parent=1 // pred_fallthru
      _
    %v54 = vld [vmem:[#allocation2] sm:$0xff]
    %v55 = vld [vmem:[#allocation2 + $0x8] sm:$0xff]
    %v56 = vld [vmem:[#allocation5] sm:$0xff]
    %v57 = vld [vmem:[#allocation5 + $0x8] sm:$0xff]
    %v58 = vld [vmem:[#allocation5 + $0x10] sm:$0xff]
    %v59 = vld [vmem:[#allocation5 + $0x18] sm:$0xff]
    %v60 = vld [vmem:[#allocation7] sm:$0x1]
    %v62 = vlaneseq
    %v63 = vshrl.u32 %v62, 7
    %v64 = vsub.s32 0, %v63
    %v65 = vrot.slane %v60, %v64
    %vm67 = vcmask 261120
    %v69 = vsel %vm67, %v54, 0
    %v72 = vsel %vm67, %v55, 0
    %74 = vmatprep.subr.mxu0 0.0
    %75 = vmatpush1.msra.mxu0 %v56
    %76 = vmatprep.subr.mxu0 0.0
    %77 = vmatpush1.msra.mxu0 %v57
    %78 = vmatprep.subr.mxu0 0.0
    %79 = vmatpush1.msra.mxu0 %v58
    %80 = vmatprep.subr.mxu0 0.0
    %81 = vmatpush1.msra.mxu0 %v59
    %82 = vmatprep.subr.mxu0 0.0
    %83 = vmatpush1.msra.mxu0 0.0
    %84 = vmatprep.subr.mxu0 0.0
    %85 = vmatpush1.msra.mxu0 0.0
    %86 = vmatprep.subr.mxu0 0.0
    %87 = vmatpush1.msra.mxu0 0.0
    %88 = vmatprep.subr.mxu0 0.0
    %89 = vmatpush1.msra.mxu0 0.0
    %90 = vmatprep.subr.mxu0 0.0
    %91 = vmatpush1.msra.mxu0 0.0
    %92 = vmatprep.subr.mxu0 0.0
    %93 = vmatpush1.msra.mxu0 0.0
    %94 = vmatprep.subr.mxu0 0.0
    %95 = vmatpush1.msra.mxu0 0.0
    %96 = vmatprep.subr.mxu0 0.0
    %97 = vmatpush1.msra.mxu0 0.0
    %98 = vmatprep.subr.mxu0 0.0
    %99 = vmatpush1.msra.mxu0 0.0
    %100 = vmatprep.subr.mxu0 0.0
    %101 = vmatpush1.msra.mxu0 0.0
    %102 = vmatprep.subr.mxu0 0.0
    %103 = vmatpush1.msra.mxu0 0.0
    %104 = vmatprep.subr.mxu0 0.0
    %105 = vmatpush1.msra.mxu0 0.0
    %106 = vmatprep.subr.mxu0 0.0
    %107 = vmatpush1.msra.mxu0 0.0
    %108 = vmatprep.subr.mxu0 0.0
    %109 = vmatpush1.msra.mxu0 0.0
    %110 = vmatprep.subr.mxu0 0.0
    %111 = vmatpush1.msra.mxu0 0.0
    %112 = vmatprep.subr.mxu0 0.0
    %113 = vmatpush1.msra.mxu0 0.0
    %114 = vmatprep.subr.mxu0 0.0
    %115 = vmatpush1.msra.mxu0 0.0
    %116 = vmatprep.subr.mxu0 0.0
    %117 = vmatpush1.msra.mxu0 0.0
    %118 = vmatprep.subr.mxu0 0.0
    %119 = vmatpush1.msra.mxu0 0.0
    %120 = vmatprep.subr.mxu0 0.0
    %121 = vmatpush1.msra.mxu0 0.0
    %122 = vmatprep.subr.mxu0 0.0
    %123 = vmatpush1.msra.mxu0 0.0
    %124 = vmatprep.subr.mxu0 0.0
    %125 = vmatpush1.msra.mxu0 0.0
    %126 = vmatprep.subr.mxu0 0.0
    %127 = vmatpush1.msra.mxu0 0.0
    %128 = vmatprep.subr.mxu0 0.0
    %129 = vmatpush1.msra.mxu0 0.0
    %130 = vmatprep.subr.mxu0 0.0
    %131 = vmatpush1.msra.mxu0 0.0
    %132 = vmatprep.subr.mxu0 0.0
    %133 = vmatpush1.msra.mxu0 0.0
    %134 = vmatprep.subr.mxu0 0.0
    %135 = vmatpush1.msra.mxu0 0.0
    %136 = vmatprep.subr.mxu0 0.0
    %137 = vmatpush1.msra.mxu0 0.0
    %138 = vmatprep.mubr.f32.mxu0 0.0
    %139 = vmatmul.mubr.f32.gmra.mrb[0].mxu0 %v69
    %v140 = vpop.f32.mrb[0].mxu0
    %v141 = vadd.f32 %v65, %v140
    %v142 = vpop.f32.mrb[0].mxu0
    %143 = vmatprep.mubr.f32.mxu0 0.0
    %144 = vmatmul.mubr.f32.gmra.mrb[0].mxu0 %v72
    %v145 = vpop.f32.mrb[0].mxu0
    %v146 = vadd.f32 %v65, %v145
    %v147 = vpop.f32.mrb[0].mxu0
    %148 = vdwg.mxu0
    %v149 = vmax.f32 %v141, 0.0
    %v150 = vmax.f32 %v146, 0.0
    %151 = vst.msk [vmem:[#allocation8] sm:$0xff] %vm67, %v149
    %152 = vst.msk [vmem:[#allocation8 + $0x8] sm:$0xff] %vm67, %v150
    // Predicated region
    $region26: #{tacotron2_forward.12} parent=1 // pred_check
      _
    $region27: #{tacotron2_forward.12} parent=1 // pred_check_branch
      %154 = sbr.rel (0) target = $region29
    $region28: #{tacotron2_forward.12} parent=1 // pred_region
      %s156 = ssub.s32 256, 256
      %157 = vsyncadd [#allocation4], %s156
      %s158 = sshll.u32 [#allocation8], 4
      %s159 = int_to_ptr.vmem [resolvable:$true] %s158
      %164 = dma.vmem_to_hbm [thread:$0]  %s159, 256, %s3, [#allocation4], 128, 128, 8
    $region29: #{tacotron2_forward.12} parent=1 // pred_fallthru
      _
    // Predicated region
    $region30: #{tacotron2_forward.12} parent=1 // pred_check
      _
    $region31: #{tacotron2_forward.12} parent=1 // pred_check_branch
      %166 = sbr.rel (0) target = $region33
    $region32: #{tacotron2_forward.12} parent=1 // pred_region
      %167 = dma.done [#allocation4], 256
    $region33: #{tacotron2_forward.12} parent=1 // pred_fallthru
      _
    %168 = vsyncpa [#allocation3], 1
    %169 = vsyncpa [#allocation6], 1
    %170 = vsyncpa [#allocation4], 1

// kernel: tacotron2_forward.9
$region0: #{tacotron2_forward.9}
  #allocation0 [shape = 'u32[]', space=smem, size = 0x4, offset = 0x4, fixed_abs, tag = 'smem constant byte address 0x4 - core index']
  #allocation1 [shape = 'u32[144,128]{1,0:T(1,128)}', space=vmem, size = 0x12000, scoped, tag = 'internal scratch']
  %s0 = inlined_call_operand.hbm [shape: f32[16,160], index: 0, kind: input, shape index: {}]
  %s1 = inlined_call_operand.hbm [shape: f32[160,32], index: 1, kind: input, shape index: {}]
  %s2 = inlined_call_operand.hbm [shape: f32[1,32], index: 2, kind: input, shape index: {}]
  %s3 = inlined_call_operand.hbm [shape: f32[16,32], index: 3, kind: output, shape index: {}]
  %s4 = sld [smem:[#allocation0]]
  $region34: #{tacotron2_forward.9} parent=0
    _
  %s6 = ssub.s32 1, %s4
  %s7 = scalar_select 0, %s6, %s4
  $region1: #{tacotron2_forward.9} parent=0
    #allocation2 [shape = 'u8[16384]{0}', space=vmem, size = 0x4000, scoped, tag = 'input window, operand 0, single buffered']
    #allocation3 [shape = 's32[1]{0}', space=sflag, size = 0x4, scoped, tag = 'scoped memory for tacotron2_forward.9']
    #allocation4 [shape = 's32[1]{0}', space=sflag, size = 0x4, scoped, tag = 'scoped memory for tacotron2_forward.9']
    #allocation5 [shape = 'u8[81920]{0}', space=vmem, size = 0x14000, scoped, tag = 'input window, operand 1, single buffered']
    #allocation6 [shape = 's32[1]{0}', space=sflag, size = 0x4, scoped, tag = 'scoped memory for tacotron2_forward.9']
    #allocation7 [shape = 'u8[512]{0}', space=vmem, size = 0x400, scoped, tag = 'input window, operand 2, single buffered']
    #allocation8 [shape = 'u8[8192]{0}', space=vmem, size = 0x2000, scoped, tag = 'output window, operand 0, single buffered']
    %8 = vsyncpa [#allocation3], 0
    %9 = vsyncpa [#allocation6], 0
    %10 = vsyncpa [#allocation4], 0
    // Predicated region
    $region2: #{tacotron2_forward.9} parent=1 // pred_check
      _
    $region3: #{tacotron2_forward.9} parent=1 // pred_check_branch
      %12 = sbr.rel (0) target = $region5
    $region4: #{tacotron2_forward.9} parent=1 // pred_region
      %s14 = ssub.s32 512, 512
      %15 = vsyncadd [#allocation3], %s14
      %s16 = sshll.u32 [#allocation2], 4
      %s17 = int_to_ptr.vmem [resolvable:$true] %s16
      %22 = dma.hbm_to_vmem [thread:$0]  %s0, 512, %s17, [#allocation3], 256, 256, 16
    $region5: #{tacotron2_forward.9} parent=1 // pred_fallthru
      _
    // Predicated region
    $region6: #{tacotron2_forward.9} parent=1 // pred_check
      _
    $region7: #{tacotron2_forward.9} parent=1 // pred_check_branch
      %24 = sbr.rel (0) target = $region9
    $region8: #{tacotron2_forward.9} parent=1 // pred_region
      %s26 = ssub.s32 2560, 2560
      %27 = vsyncadd [#allocation6], %s26
      %s28 = sshll.u32 [#allocation5], 4
      %s29 = int_to_ptr.vmem [resolvable:$true] %s28
      %34 = dma.hbm_to_vmem [thread:$0]  %s1, 2560, %s29, [#allocation6], 128, 128, 8
    $region9: #{tacotron2_forward.9} parent=1 // pred_fallthru
      _
    // Predicated region
    $region10: #{tacotron2_forward.9} parent=1 // pred_check
      _
    $region11: #{tacotron2_forward.9} parent=1 // pred_check_branch
      %36 = sbr.rel (0) target = $region13
    $region12: #{tacotron2_forward.9} parent=1 // pred_region
      %s38 = ssub.s32 16, 16
      %39 = vsyncadd [#allocation6], %s38
      %s41 = sshll.u32 [#allocation7], 4
      %s42 = int_to_ptr.vmem [resolvable:$true] %s41
      %44 = dma.hbm_to_vmem [thread:$0]  %s2, 16, %s42, [#allocation6]
    $region13: #{tacotron2_forward.9} parent=1 // pred_fallthru
      _
    // Predicated region
    $region14: #{tacotron2_forward.9} parent=1 // pred_check
      _
    $region15: #{tacotron2_forward.9} parent=1 // pred_check_branch
      %46 = sbr.rel (0) target = $region17
    $region16: #{tacotron2_forward.9} parent=1 // pred_region
      %47 = dma.done [#allocation3], 512
    $region17: #{tacotron2_forward.9} parent=1 // pred_fallthru
      _
    // Predicated region
    $region18: #{tacotron2_forward.9} parent=1 // pred_check
      _
    $region19: #{tacotron2_forward.9} parent=1 // pred_check_branch
      %49 = sbr.rel (0) target = $region21
    $region20: #{tacotron2_forward.9} parent=1 // pred_region
      %50 = dma.done [#allocation6], 2560
    $region21: #{tacotron2_forward.9} parent=1 // pred_fallthru
      _
    // Predicated region
    $region22: #{tacotron2_forward.9} parent=1 // pred_check
      _
    $region23: #{tacotron2_forward.9} parent=1 // pred_check_branch
      %52 = sbr.rel (0) target = $region25
    $region24: #{tacotron2_forward.9} parent=1 // pred_region
      %53 = dma.done [#allocation6], 16
    $region25: #{tacotron2_forward.9} parent=1 // pred_fallthru
      _
    %v54 = vld [vmem:[#allocation2] sm:$0xff]
    %v55 = vld [vmem:[#allocation2 + $0x8] sm:$0xff]
    %v56 = vld [vmem:[#allocation2 + $0x10] sm:$0xff]
    %v57 = vld [vmem:[#allocation2 + $0x18] sm:$0xff]
    %v58 = vld [vmem:[#allocation5] sm:$0xff]
    %v59 = vld [vmem:[#allocation5 + $0x8] sm:$0xff]
    %v60 = vld [vmem:[#allocation5 + $0x10] sm:$0xff]
    %v61 = vld [vmem:[#allocation5 + $0x18] sm:$0xff]
    %v62 = vld [vmem:[#allocation5 + $0x20] sm:$0xff]
    %v63 = vld [vmem:[#allocation5 + $0x28] sm:$0xff]
    %v64 = vld [vmem:[#allocation5 + $0x30] sm:$0xff]
    %v65 = vld [vmem:[#allocation5 + $0x38] sm:$0xff]
    %v66 = vld [vmem:[#allocation5 + $0x40] sm:$0xff]
    %v67 = vld [vmem:[#allocation5 + $0x48] sm:$0xff]
    %v68 = vld [vmem:[#allocation5 + $0x50] sm:$0xff]
    %v69 = vld [vmem:[#allocation5 + $0x58] sm:$0xff]
    %v70 = vld [vmem:[#allocation5 + $0x60] sm:$0xff]
    %v71 = vld [vmem:[#allocation5 + $0x68] sm:$0xff]
    %v72 = vld [vmem:[#allocation5 + $0x70] sm:$0xff]
    %v73 = vld [vmem:[#allocation5 + $0x78] sm:$0xff]
    %v74 = vld [vmem:[#allocation5 + $0x80] sm:$0xff]
    %v75 = vld [vmem:[#allocation5 + $0x88] sm:$0xff]
    %v76 = vld [vmem:[#allocation5 + $0x90] sm:$0xff]
    %v77 = vld [vmem:[#allocation5 + $0x98] sm:$0xff]
    %v78 = vld [vmem:[#allocation7] sm:$0x1]
    %v80 = vlaneseq
    %v81 = vshrl.u32 %v80, 7
    %v82 = vsub.s32 0, %v81
    %v83 = vrot.slane %v78, %v82
    %vm85 = vcmask 261120
    %v87 = vsel %vm85, %v55, 0
    %v90 = vsel %vm85, %v57, 0
    %92 = vmatprep.subr.mxu0 0.0
    %93 = vmatpush1.msra.mxu0 %v58
    %94 = vmatprep.subr.mxu0 0.0
    %95 = vmatpush1.msra.mxu0 %v59
    %96 = vmatprep.subr.mxu0 0.0
    %97 = vmatpush1.msra.mxu0 %v60
    %98 = vmatprep.subr.mxu0 0.0
    %99 = vmatpush1.msra.mxu0 %v61
    %100 = vmatprep.subr.mxu0 0.0
    %101 = vmatpush1.msra.mxu0 %v62
    %102 = vmatprep.subr.mxu0 0.0
    %103 = vmatpush1.msra.mxu0 %v63
    %104 = vmatprep.subr.mxu0 0.0
    %105 = vmatpush1.msra.mxu0 %v64
    %106 = vmatprep.subr.mxu0 0.0
    %107 = vmatpush1.msra.mxu0 %v65
    %108 = vmatprep.subr.mxu0 0.0
    %109 = vmatpush1.msra.mxu0 %v66
    %110 = vmatprep.subr.mxu0 0.0
    %111 = vmatpush1.msra.mxu0 %v67
    %112 = vmatprep.subr.mxu0 0.0
    %113 = vmatpush1.msra.mxu0 %v68
    %114 = vmatprep.subr.mxu0 0.0
    %115 = vmatpush1.msra.mxu0 %v69
    %116 = vmatprep.subr.mxu0 0.0
    %117 = vmatpush1.msra.mxu0 %v70
    %118 = vmatprep.subr.mxu0 0.0
    %119 = vmatpush1.msra.mxu0 %v71
    %120 = vmatprep.subr.mxu0 0.0
    %121 = vmatpush1.msra.mxu0 %v72
    %122 = vmatprep.subr.mxu0 0.0
    %123 = vmatpush1.msra.mxu0 %v73
    %124 = vmatprep.subr.mxu0 0.0
    %125 = vmatpush1.msra.mxu0 %v74
    %126 = vmatprep.subr.mxu0 0.0
    %127 = vmatpush1.msra.mxu0 %v75
    %128 = vmatprep.subr.mxu0 0.0
    %129 = vmatpush1.msra.mxu0 %v76
    %130 = vmatprep.subr.mxu0 0.0
    %131 = vmatpush1.msra.mxu0 %v77
    %132 = vmatprep.subr.mxu0 0.0
    %133 = vmatpush1.msra.mxu0 0.0
    %134 = vmatprep.subr.mxu0 0.0
    %135 = vmatpush1.msra.mxu0 0.0
    %136 = vmatprep.subr.mxu0 0.0
    %137 = vmatpush1.msra.mxu0 0.0
    %138 = vmatprep.subr.mxu0 0.0
    %139 = vmatpush1.msra.mxu0 0.0
    %140 = vmatprep.subr.mxu0 0.0
    %141 = vmatpush1.msra.mxu0 0.0
    %142 = vmatprep.subr.mxu0 0.0
    %143 = vmatpush1.msra.mxu0 0.0
    %144 = vmatprep.subr.mxu0 0.0
    %145 = vmatpush1.msra.mxu0 0.0
    %146 = vmatprep.subr.mxu0 0.0
    %147 = vmatpush1.msra.mxu0 0.0
    %148 = vmatprep.subr.mxu0 0.0
    %149 = vmatpush1.msra.mxu0 0.0
    %150 = vmatprep.subr.mxu0 0.0
    %151 = vmatpush1.msra.mxu0 0.0
    %152 = vmatprep.subr.mxu0 0.0
    %153 = vmatpush1.msra.mxu0 0.0
    %154 = vmatprep.subr.mxu0 0.0
    %155 = vmatpush1.msra.mxu0 0.0
    %156 = vmatprep.mubr.f32.mxu0 %v87
    %157 = vmatmul.mubr.f32.gmra.mrb[0].mxu0 %v54
    %v158 = vpop.f32.mrb[0].mxu0
    %v159 = vadd.f32 %v83, %v158
    %v160 = vpop.f32.mrb[0].mxu0
    %161 = vmatprep.mubr.f32.mxu0 %v90
    %162 = vmatmul.mubr.f32.gmra.mrb[0].mxu0 %v56
    %v163 = vpop.f32.mrb[0].mxu0
    %v164 = vadd.f32 %v83, %v163
    %v165 = vpop.f32.mrb[0].mxu0
    %166 = vdwg.mxu0
    %v167 = vmax.f32 %v159, 0.0
    %v168 = vmax.f32 %v164, 0.0
    %169 = vst.msk [vmem:[#allocation8] sm:$0xff] %vm85, %v167
    %170 = vst.msk [vmem:[#allocation8 + $0x8] sm:$0xff] %vm85, %v168
    // Predicated region
    $region26: #{tacotron2_forward.9} parent=1 // pred_check
      _
    $region27: #{tacotron2_forward.9} parent=1 // pred_check_branch
      %172 = sbr.rel (0) target = $region29
    $region28: #{tacotron2_forward.9} parent=1 // pred_region
      %s174 = ssub.s32 256, 256
      %175 = vsyncadd [#allocation4], %s174
      %s176 = sshll.u32 [#allocation8], 4
      %s177 = int_to_ptr.vmem [resolvable:$true] %s176
      %182 = dma.vmem_to_hbm [thread:$0]  %s177, 256, %s3, [#allocation4], 128, 128, 8
    $region29: #{tacotron2_forward.9} parent=1 // pred_fallthru
      _
    // Predicated region
    $region30: #{tacotron2_forward.9} parent=1 // pred_check
      _
    $region31: #{tacotron2_forward.9} parent=1 // pred_check_branch
      %184 = sbr.rel (0) target = $region33
    $region32: #{tacotron2_forward.9} parent=1 // pred_region
      %185 = dma.done [#allocation4], 256
    $region33: #{tacotron2_forward.9} parent=1 // pred_fallthru
      _
    %186 = vsyncpa [#allocation3], 1
    %187 = vsyncpa [#allocation6], 1
    %188 = vsyncpa [#allocation4], 1

// kernel: tacotron2_forward.13
$region0: #{tacotron2_forward.13}
  #allocation0 [shape = 'u32[]', space=smem, size = 0x4, offset = 0x4, fixed_abs, tag = 'smem constant byte address 0x4 - core index']
  #allocation1 [shape = 'u32[144,128]{1,0:T(1,128)}', space=vmem, size = 0x12000, scoped, tag = 'internal scratch']
  %s0 = inlined_call_operand.hbm [shape: f32[16,32], index: 0, kind: input, shape index: {}]
  %s1 = inlined_call_operand.hbm [shape: f32[32,32], index: 1, kind: input, shape index: {}]
  %s2 = inlined_call_operand.hbm [shape: f32[1,32], index: 2, kind: input, shape index: {}]
  %s3 = inlined_call_operand.hbm [shape: f32[16,32], index: 3, kind: output, shape index: {}]
  %s4 = sld [smem:[#allocation0]]
  $region34: #{tacotron2_forward.13} parent=0
    _
  %s6 = ssub.s32 1, %s4
  %s7 = scalar_select 0, %s6, %s4
  $region1: #{tacotron2_forward.13} parent=0
    #allocation2 [shape = 'u8[8192]{0}', space=vmem, size = 0x2000, scoped, tag = 'input window, operand 0, single buffered']
    #allocation3 [shape = 's32[1]{0}', space=sflag, size = 0x4, scoped, tag = 'scoped memory for tacotron2_forward.13']
    #allocation4 [shape = 's32[1]{0}', space=sflag, size = 0x4, scoped, tag = 'scoped memory for tacotron2_forward.13']
    #allocation5 [shape = 'u8[16384]{0}', space=vmem, size = 0x4000, scoped, tag = 'input window, operand 1, single buffered']
    #allocation6 [shape = 's32[1]{0}', space=sflag, size = 0x4, scoped, tag = 'scoped memory for tacotron2_forward.13']
    #allocation7 [shape = 'u8[512]{0}', space=vmem, size = 0x400, scoped, tag = 'input window, operand 2, single buffered']
    #allocation8 [shape = 'u8[8192]{0}', space=vmem, size = 0x2000, scoped, tag = 'output window, operand 0, single buffered']
    %8 = vsyncpa [#allocation3], 0
    %9 = vsyncpa [#allocation6], 0
    %10 = vsyncpa [#allocation4], 0
    // Predicated region
    $region2: #{tacotron2_forward.13} parent=1 // pred_check
      _
    $region3: #{tacotron2_forward.13} parent=1 // pred_check_branch
      %12 = sbr.rel (0) target = $region5
    $region4: #{tacotron2_forward.13} parent=1 // pred_region
      %s14 = ssub.s32 256, 256
      %15 = vsyncadd [#allocation3], %s14
      %s16 = sshll.u32 [#allocation2], 4
      %s17 = int_to_ptr.vmem [resolvable:$true] %s16
      %22 = dma.hbm_to_vmem [thread:$0]  %s0, 256, %s17, [#allocation3], 128, 128, 8
    $region5: #{tacotron2_forward.13} parent=1 // pred_fallthru
      _
    // Predicated region
    $region6: #{tacotron2_forward.13} parent=1 // pred_check
      _
    $region7: #{tacotron2_forward.13} parent=1 // pred_check_branch
      %24 = sbr.rel (0) target = $region9
    $region8: #{tacotron2_forward.13} parent=1 // pred_region
      %s26 = ssub.s32 512, 512
      %27 = vsyncadd [#allocation6], %s26
      %s28 = sshll.u32 [#allocation5], 4
      %s29 = int_to_ptr.vmem [resolvable:$true] %s28
      %34 = dma.hbm_to_vmem [thread:$0]  %s1, 512, %s29, [#allocation6], 128, 128, 8
    $region9: #{tacotron2_forward.13} parent=1 // pred_fallthru
      _
    // Predicated region
    $region10: #{tacotron2_forward.13} parent=1 // pred_check
      _
    $region11: #{tacotron2_forward.13} parent=1 // pred_check_branch
      %36 = sbr.rel (0) target = $region13
    $region12: #{tacotron2_forward.13} parent=1 // pred_region
      %s38 = ssub.s32 16, 16
      %39 = vsyncadd [#allocation6], %s38
      %s41 = sshll.u32 [#allocation7], 4
      %s42 = int_to_ptr.vmem [resolvable:$true] %s41
      %44 = dma.hbm_to_vmem [thread:$0]  %s2, 16, %s42, [#allocation6]
    $region13: #{tacotron2_forward.13} parent=1 // pred_fallthru
      _
    // Predicated region
    $region14: #{tacotron2_forward.13} parent=1 // pred_check
      _
    $region15: #{tacotron2_forward.13} parent=1 // pred_check_branch
      %46 = sbr.rel (0) target = $region17
    $region16: #{tacotron2_forward.13} parent=1 // pred_region
      %47 = dma.done [#allocation3], 256
    $region17: #{tacotron2_forward.13} parent=1 // pred_fallthru
      _
    // Predicated region
    $region18: #{tacotron2_forward.13} parent=1 // pred_check
      _
    $region19: #{tacotron2_forward.13} parent=1 // pred_check_branch
      %49 = sbr.rel (0) target = $region21
    $region20: #{tacotron2_forward.13} parent=1 // pred_region
      %50 = dma.done [#allocation6], 512
    $region21: #{tacotron2_forward.13} parent=1 // pred_fallthru
      _
    // Predicated region
    $region22: #{tacotron2_forward.13} parent=1 // pred_check
      _
    $region23: #{tacotron2_forward.13} parent=1 // pred_check_branch
      %52 = sbr.rel (0) target = $region25
    $region24: #{tacotron2_forward.13} parent=1 // pred_region
      %53 = dma.done [#allocation6], 16
    $region25: #{tacotron2_forward.13} parent=1 // pred_fallthru
      _
    %v54 = vld [vmem:[#allocation2] sm:$0xff]
    %v55 = vld [vmem:[#allocation2 + $0x8] sm:$0xff]
    %v56 = vld [vmem:[#allocation5] sm:$0xff]
    %v57 = vld [vmem:[#allocation5 + $0x8] sm:$0xff]
    %v58 = vld [vmem:[#allocation5 + $0x10] sm:$0xff]
    %v59 = vld [vmem:[#allocation5 + $0x18] sm:$0xff]
    %v60 = vld [vmem:[#allocation7] sm:$0x1]
    %v62 = vlaneseq
    %v63 = vshrl.u32 %v62, 7
    %v64 = vsub.s32 0, %v63
    %v65 = vrot.slane %v60, %v64
    %vm67 = vcmask 261120
    %v69 = vsel %vm67, %v54, 0
    %v72 = vsel %vm67, %v55, 0
    %74 = vmatprep.subr.mxu0 0.0
    %75 = vmatpush1.msra.mxu0 %v56
    %76 = vmatprep.subr.mxu0 0.0
    %77 = vmatpush1.msra.mxu0 %v57
    %78 = vmatprep.subr.mxu0 0.0
    %79 = vmatpush1.msra.mxu0 %v58
    %80 = vmatprep.subr.mxu0 0.0
    %81 = vmatpush1.msra.mxu0 %v59
    %82 = vmatprep.subr.mxu0 0.0
    %83 = vmatpush1.msra.mxu0 0.0
    %84 = vmatprep.subr.mxu0 0.0
    %85 = vmatpush1.msra.mxu0 0.0
    %86 = vmatprep.subr.mxu0 0.0
    %87 = vmatpush1.msra.mxu0 0.0
    %88 = vmatprep.subr.mxu0 0.0
    %89 = vmatpush1.msra.mxu0 0.0
    %90 = vmatprep.subr.mxu0 0.0
    %91 = vmatpush1.msra.mxu0 0.0
    %92 = vmatprep.subr.mxu0 0.0
    %93 = vmatpush1.msra.mxu0 0.0
    %94 = vmatprep.subr.mxu0 0.0
    %95 = vmatpush1.msra.mxu0 0.0
    %96 = vmatprep.subr.mxu0 0.0
    %97 = vmatpush1.msra.mxu0 0.0
    %98 = vmatprep.subr.mxu0 0.0
    %99 = vmatpush1.msra.mxu0 0.0
    %100 = vmatprep.subr.mxu0 0.0
    %101 = vmatpush1.msra.mxu0 0.0
    %102 = vmatprep.subr.mxu0 0.0
    %103 = vmatpush1.msra.mxu0 0.0
    %104 = vmatprep.subr.mxu0 0.0
    %105 = vmatpush1.msra.mxu0 0.0
    %106 = vmatprep.subr.mxu0 0.0
    %107 = vmatpush1.msra.mxu0 0.0
    %108 = vmatprep.subr.mxu0 0.0
    %109 = vmatpush1.msra.mxu0 0.0
    %110 = vmatprep.subr.mxu0 0.0
    %111 = vmatpush1.msra.mxu0 0.0
    %112 = vmatprep.subr.mxu0 0.0
    %113 = vmatpush1.msra.mxu0 0.0
    %114 = vmatprep.subr.mxu0 0.0
    %115 = vmatpush1.msra.mxu0 0.0
    %116 = vmatprep.subr.mxu0 0.0
    %117 = vmatpush1.msra.mxu0 0.0
    %118 = vmatprep.subr.mxu0 0.0
    %119 = vmatpush1.msra.mxu0 0.0
    %120 = vmatprep.subr.mxu0 0.0
    %121 = vmatpush1.msra.mxu0 0.0
    %122 = vmatprep.subr.mxu0 0.0
    %123 = vmatpush1.msra.mxu0 0.0
    %124 = vmatprep.subr.mxu0 0.0
    %125 = vmatpush1.msra.mxu0 0.0
    %126 = vmatprep.subr.mxu0 0.0
    %127 = vmatpush1.msra.mxu0 0.0
    %128 = vmatprep.subr.mxu0 0.0
    %129 = vmatpush1.msra.mxu0 0.0
    %130 = vmatprep.subr.mxu0 0.0
    %131 = vmatpush1.msra.mxu0 0.0
    %132 = vmatprep.subr.mxu0 0.0
    %133 = vmatpush1.msra.mxu0 0.0
    %134 = vmatprep.subr.mxu0 0.0
    %135 = vmatpush1.msra.mxu0 0.0
    %136 = vmatprep.subr.mxu0 0.0
    %137 = vmatpush1.msra.mxu0 0.0
    %138 = vmatprep.mubr.f32.mxu0 0.0
    %139 = vmatmul.mubr.f32.gmra.mrb[0].mxu0 %v69
    %v140 = vpop.f32.mrb[0].mxu0
    %v141 = vadd.f32 %v65, %v140
    %v142 = vpop.f32.mrb[0].mxu0
    %143 = vmatprep.mubr.f32.mxu0 0.0
    %144 = vmatmul.mubr.f32.gmra.mrb[0].mxu0 %v72
    %v145 = vpop.f32.mrb[0].mxu0
    %v146 = vadd.f32 %v65, %v145
    %v147 = vpop.f32.mrb[0].mxu0
    %148 = vdwg.mxu0
    %149 = vst.msk [vmem:[#allocation8] sm:$0xff] %vm67, %v141
    %150 = vst.msk [vmem:[#allocation8 + $0x8] sm:$0xff] %vm67, %v146
    // Predicated region
    $region26: #{tacotron2_forward.13} parent=1 // pred_check
      _
    $region27: #{tacotron2_forward.13} parent=1 // pred_check_branch
      %152 = sbr.rel (0) target = $region29
    $region28: #{tacotron2_forward.13} parent=1 // pred_region
      %s154 = ssub.s32 256, 256
      %155 = vsyncadd [#allocation4], %s154
      %s156 = sshll.u32 [#allocation8], 4
      %s157 = int_to_ptr.vmem [resolvable:$true] %s156
      %162 = dma.vmem_to_hbm [thread:$0]  %s157, 256, %s3, [#allocation4], 128, 128, 8
    $region29: #{tacotron2_forward.13} parent=1 // pred_fallthru
      _
    // Predicated region
    $region30: #{tacotron2_forward.13} parent=1 // pred_check
      _
    $region31: #{tacotron2_forward.13} parent=1 // pred_check_branch
      %164 = sbr.rel (0) target = $region33
    $region32: #{tacotron2_forward.13} parent=1 // pred_region
      %165 = dma.done [#allocation4], 256
    $region33: #{tacotron2_forward.13} parent=1 // pred_fallthru
      _
    %166 = vsyncpa [#allocation3], 1
    %167 = vsyncpa [#allocation6], 1
    %168 = vsyncpa [#allocation4], 1

// kernel: tacotron2_forward.15
$region0: #{tacotron2_forward.15}
  #allocation0 [shape = 'u32[]', space=smem, size = 0x4, offset = 0x4, fixed_abs, tag = 'smem constant byte address 0x4 - core index']
  #allocation1 [shape = 'u32[144,128]{1,0:T(1,128)}', space=vmem, size = 0x12000, scoped, tag = 'internal scratch']
  %s0 = inlined_call_operand.hbm [shape: f32[16,64], index: 0, kind: input, shape index: {}]
  %s1 = inlined_call_operand.hbm [shape: f32[64,17], index: 1, kind: input, shape index: {}]
  %s2 = inlined_call_operand.hbm [shape: f32[1,17], index: 2, kind: input, shape index: {}]
  %s3 = inlined_call_operand.hbm [shape: f32[16,17], index: 3, kind: output, shape index: {}]
  %s4 = sld [smem:[#allocation0]]
  $region34: #{tacotron2_forward.15} parent=0
    _
  %s6 = ssub.s32 1, %s4
  %s7 = scalar_select 0, %s6, %s4
  $region1: #{tacotron2_forward.15} parent=0
    #allocation2 [shape = 'u8[8192]{0}', space=vmem, size = 0x2000, scoped, tag = 'input window, operand 0, single buffered']
    #allocation3 [shape = 's32[1]{0}', space=sflag, size = 0x4, scoped, tag = 'scoped memory for tacotron2_forward.15']
    #allocation4 [shape = 's32[1]{0}', space=sflag, size = 0x4, scoped, tag = 'scoped memory for tacotron2_forward.15']
    #allocation5 [shape = 'u8[32768]{0}', space=vmem, size = 0x8000, scoped, tag = 'input window, operand 1, single buffered']
    #allocation6 [shape = 's32[1]{0}', space=sflag, size = 0x4, scoped, tag = 'scoped memory for tacotron2_forward.15']
    #allocation7 [shape = 'u8[512]{0}', space=vmem, size = 0x400, scoped, tag = 'input window, operand 2, single buffered']
    #allocation8 [shape = 'u8[8192]{0}', space=vmem, size = 0x2000, scoped, tag = 'output window, operand 0, single buffered']
    %8 = vsyncpa [#allocation3], 0
    %9 = vsyncpa [#allocation6], 0
    %10 = vsyncpa [#allocation4], 0
    // Predicated region
    $region2: #{tacotron2_forward.15} parent=1 // pred_check
      _
    $region3: #{tacotron2_forward.15} parent=1 // pred_check_branch
      %12 = sbr.rel (0) target = $region5
    $region4: #{tacotron2_forward.15} parent=1 // pred_region
      %s14 = ssub.s32 256, 256
      %15 = vsyncadd [#allocation3], %s14
      %s16 = sshll.u32 [#allocation2], 4
      %s17 = int_to_ptr.vmem [resolvable:$true] %s16
      %22 = dma.hbm_to_vmem [thread:$0]  %s0, 256, %s17, [#allocation3], 128, 128, 8
    $region5: #{tacotron2_forward.15} parent=1 // pred_fallthru
      _
    // Predicated region
    $region6: #{tacotron2_forward.15} parent=1 // pred_check
      _
    $region7: #{tacotron2_forward.15} parent=1 // pred_check_branch
      %24 = sbr.rel (0) target = $region9
    $region8: #{tacotron2_forward.15} parent=1 // pred_region
      %s26 = ssub.s32 1024, 1024
      %27 = vsyncadd [#allocation6], %s26
      %s28 = sshll.u32 [#allocation5], 4
      %s29 = int_to_ptr.vmem [resolvable:$true] %s28
      %34 = dma.hbm_to_vmem [thread:$0]  %s1, 1024, %s29, [#allocation6], 128, 128, 8
    $region9: #{tacotron2_forward.15} parent=1 // pred_fallthru
      _
    // Predicated region
    $region10: #{tacotron2_forward.15} parent=1 // pred_check
      _
    $region11: #{tacotron2_forward.15} parent=1 // pred_check_branch
      %36 = sbr.rel (0) target = $region13
    $region12: #{tacotron2_forward.15} parent=1 // pred_region
      %s38 = ssub.s32 16, 16
      %39 = vsyncadd [#allocation6], %s38
      %s41 = sshll.u32 [#allocation7], 4
      %s42 = int_to_ptr.vmem [resolvable:$true] %s41
      %44 = dma.hbm_to_vmem [thread:$0]  %s2, 16, %s42, [#allocation6]
    $region13: #{tacotron2_forward.15} parent=1 // pred_fallthru
      _
    // Predicated region
    $region14: #{tacotron2_forward.15} parent=1 // pred_check
      _
    $region15: #{tacotron2_forward.15} parent=1 // pred_check_branch
      %46 = sbr.rel (0) target = $region17
    $region16: #{tacotron2_forward.15} parent=1 // pred_region
      %47 = dma.done [#allocation3], 256
    $region17: #{tacotron2_forward.15} parent=1 // pred_fallthru
      _
    // Predicated region
    $region18: #{tacotron2_forward.15} parent=1 // pred_check
      _
    $region19: #{tacotron2_forward.15} parent=1 // pred_check_branch
      %49 = sbr.rel (0) target = $region21
    $region20: #{tacotron2_forward.15} parent=1 // pred_region
      %50 = dma.done [#allocation6], 1024
    $region21: #{tacotron2_forward.15} parent=1 // pred_fallthru
      _
    // Predicated region
    $region22: #{tacotron2_forward.15} parent=1 // pred_check
      _
    $region23: #{tacotron2_forward.15} parent=1 // pred_check_branch
      %52 = sbr.rel (0) target = $region25
    $region24: #{tacotron2_forward.15} parent=1 // pred_region
      %53 = dma.done [#allocation6], 16
    $region25: #{tacotron2_forward.15} parent=1 // pred_fallthru
      _
    %v54 = vld [vmem:[#allocation2] sm:$0xff]
    %v55 = vld [vmem:[#allocation2 + $0x8] sm:$0xff]
    %v56 = vld [vmem:[#allocation5] sm:$0xff]
    %v57 = vld [vmem:[#allocation5 + $0x8] sm:$0xff]
    %v58 = vld [vmem:[#allocation5 + $0x10] sm:$0xff]
    %v59 = vld [vmem:[#allocation5 + $0x18] sm:$0xff]
    %v60 = vld [vmem:[#allocation5 + $0x20] sm:$0xff]
    %v61 = vld [vmem:[#allocation5 + $0x28] sm:$0xff]
    %v62 = vld [vmem:[#allocation5 + $0x30] sm:$0xff]
    %v63 = vld [vmem:[#allocation5 + $0x38] sm:$0xff]
    %v64 = vld [vmem:[#allocation7] sm:$0x1]
    %v66 = vlaneseq
    %v67 = vshrl.u32 %v66, 7
    %v68 = vsub.s32 0, %v67
    %v69 = vrot.slane %v64, %v68
    %vm71 = vcmask 523264
    %v73 = vsel %vm71, %v54, 0
    %v76 = vsel %vm71, %v55, 0
    %78 = vmatprep.subr.mxu0 0.0
    %79 = vmatpush1.msra.mxu0 %v56
    %80 = vmatprep.subr.mxu0 0.0
    %81 = vmatpush1.msra.mxu0 %v57
    %82 = vmatprep.subr.mxu0 0.0
    %83 = vmatpush1.msra.mxu0 %v58
    %84 = vmatprep.subr.mxu0 0.0
    %85 = vmatpush1.msra.mxu0 %v59
    %86 = vmatprep.subr.mxu0 0.0
    %87 = vmatpush1.msra.mxu0 %v60
    %88 = vmatprep.subr.mxu0 0.0
    %89 = vmatpush1.msra.mxu0 %v61
    %90 = vmatprep.subr.mxu0 0.0
    %91 = vmatpush1.msra.mxu0 %v62
    %92 = vmatprep.subr.mxu0 0.0
    %93 = vmatpush1.msra.mxu0 %v63
    %94 = vmatprep.subr.mxu0 0.0
    %95 = vmatpush1.msra.mxu0 0.0
    %96 = vmatprep.subr.mxu0 0.0
    %97 = vmatpush1.msra.mxu0 0.0
    %98 = vmatprep.subr.mxu0 0.0
    %99 = vmatpush1.msra.mxu0 0.0
    %100 = vmatprep.subr.mxu0 0.0
    %101 = vmatpush1.msra.mxu0 0.0
    %102 = vmatprep.subr.mxu0 0.0
    %103 = vmatpush1.msra.mxu0 0.0
    %104 = vmatprep.subr.mxu0 0.0
    %105 = vmatpush1.msra.mxu0 0.0
    %106 = vmatprep.subr.mxu0 0.0
    %107 = vmatpush1.msra.mxu0 0.0
    %108 = vmatprep.subr.mxu0 0.0
    %109 = vmatpush1.msra.mxu0 0.0
    %110 = vmatprep.subr.mxu0 0.0
    %111 = vmatpush1.msra.mxu0 0.0
    %112 = vmatprep.subr.mxu0 0.0
    %113 = vmatpush1.msra.mxu0 0.0
    %114 = vmatprep.subr.mxu0 0.0
    %115 = vmatpush1.msra.mxu0 0.0
    %116 = vmatprep.subr.mxu0 0.0
    %117 = vmatpush1.msra.mxu0 0.0
    %118 = vmatprep.subr.mxu0 0.0
    %119 = vmatpush1.msra.mxu0 0.0
    %120 = vmatprep.subr.mxu0 0.0
    %121 = vmatpush1.msra.mxu0 0.0
    %122 = vmatprep.subr.mxu0 0.0
    %123 = vmatpush1.msra.mxu0 0.0
    %124 = vmatprep.subr.mxu0 0.0
    %125 = vmatpush1.msra.mxu0 0.0
    %126 = vmatprep.subr.mxu0 0.0
    %127 = vmatpush1.msra.mxu0 0.0
    %128 = vmatprep.subr.mxu0 0.0
    %129 = vmatpush1.msra.mxu0 0.0
    %130 = vmatprep.subr.mxu0 0.0
    %131 = vmatpush1.msra.mxu0 0.0
    %132 = vmatprep.subr.mxu0 0.0
    %133 = vmatpush1.msra.mxu0 0.0
    %134 = vmatprep.subr.mxu0 0.0
    %135 = vmatpush1.msra.mxu0 0.0
    %136 = vmatprep.subr.mxu0 0.0
    %137 = vmatpush1.msra.mxu0 0.0
    %138 = vmatprep.subr.mxu0 0.0
    %139 = vmatpush1.msra.mxu0 0.0
    %140 = vmatprep.subr.mxu0 0.0
    %141 = vmatpush1.msra.mxu0 0.0
    %142 = vmatprep.mubr.f32.mxu0 0.0
    %143 = vmatmul.mubr.f32.gmra.mrb[0].mxu0 %v73
    %v144 = vpop.f32.mrb[0].mxu0
    %v145 = vadd.f32 %v69, %v144
    %v146 = vpop.f32.mrb[0].mxu0
    %147 = vmatprep.mubr.f32.mxu0 0.0
    %148 = vmatmul.mubr.f32.gmra.mrb[0].mxu0 %v76
    %v149 = vpop.f32.mrb[0].mxu0
    %v150 = vadd.f32 %v69, %v149
    %v151 = vpop.f32.mrb[0].mxu0
    %152 = vdwg.mxu0
    %vm153 = vcmask 138240
    %154 = vst.msk [vmem:[#allocation8] sm:$0xff] %vm153, %v145
    %155 = vst.msk [vmem:[#allocation8 + $0x8] sm:$0xff] %vm153, %v150
    // Predicated region
    $region26: #{tacotron2_forward.15} parent=1 // pred_check
      _
    $region27: #{tacotron2_forward.15} parent=1 // pred_check_branch
      %157 = sbr.rel (0) target = $region29
    $region28: #{tacotron2_forward.15} parent=1 // pred_region
      %s159 = ssub.s32 256, 256
      %160 = vsyncadd [#allocation4], %s159
      %s161 = sshll.u32 [#allocation8], 4
      %s162 = int_to_ptr.vmem [resolvable:$true] %s161
      %167 = dma.vmem_to_hbm [thread:$0]  %s162, 256, %s3, [#allocation4], 128, 128, 8
    $region29: #{tacotron2_forward.15} parent=1 // pred_fallthru
      _
    // Predicated region
    $region30: #{tacotron2_forward.15} parent=1 // pred_check
      _
    $region31: #{tacotron2_forward.15} parent=1 // pred_check_branch
      %169 = sbr.rel (0) target = $region33
    $region32: #{tacotron2_forward.15} parent=1 // pred_region
      %170 = dma.done [#allocation4], 256
    $region33: #{tacotron2_forward.15} parent=1 // pred_fallthru
      _
    %171 = vsyncpa [#allocation3], 1
    %172 = vsyncpa [#allocation6], 1
    %173 = vsyncpa [#allocation4], 1

// kernel: tacotron2_forward.14
$region0: #{tacotron2_forward.14}
  #allocation0 [shape = 'u32[]', space=smem, size = 0x4, offset = 0x4, fixed_abs, tag = 'smem constant byte address 0x4 - core index']
  #allocation1 [shape = 'u32[144,128]{1,0:T(1,128)}', space=vmem, size = 0x12000, scoped, tag = 'internal scratch']
  #allocation2 [shape = 'f32[2,32]{1,0:T(2,128)}', space=vmem, size = 0x400, scoped, tag = 'scratch operand']
  #allocation3 [shape = 'f32[2,32]{1,0:T(2,128)}', space=vmem, size = 0x400, scoped, tag = 'scratch operand']
  #allocation4 [shape = 'f32[2,8,32]{2,1,0:T(8,128)}', space=vmem, size = 0x2000, scoped, tag = 'scratch operand']
  #allocation5 [shape = 'f32[2,8,32]{2,1,0:T(8,128)}', space=vmem, size = 0x2000, scoped, tag = 'scratch operand']
  #allocation6 [shape = 's32[2]{0}', space=sflag, size = 0x8, scoped, tag = 'scratch operand']
  #allocation19 [shape = 's32[]', space=sflag, size = 0x4, offset = 0, fixed_abs, tag = 'sflag constant byte address 0x0 - dummy sync flag']
  #allocation20 [shape = 's32[]', space=sflag, size = 0x4, offset = 0, fixed_abs, tag = 'sflag constant byte address 0x0 - dummy sync flag']
  #allocation21 [shape = 'u32[]', space=smem, size = 0x4, offset = 0x44, fixed_abs, tag = 'smem constant byte address 0x44 - assertion arg 0']
  #allocation22 [shape = 'u32[]', space=smem, size = 0x4, offset = 0x48, fixed_abs, tag = 'smem constant byte address 0x48 - assertion arg 1']
  #allocation23 [shape = 's32[]', space=sflag, size = 0x4, offset = 0, fixed_abs, tag = 'sflag constant byte address 0x0 - dummy sync flag']
  #allocation24 [shape = 's32[]', space=sflag, size = 0x4, offset = 0, fixed_abs, tag = 'sflag constant byte address 0x0 - dummy sync flag']
  %s0 = inlined_call_operand.hbm [shape: f32[6,2,32], index: 0, kind: input, shape index: {}]
  %s1 = inlined_call_operand.hbm [shape: f32[2,8,32], index: 1, kind: input, shape index: {}]
  %s2 = inlined_call_operand.hbm [shape: f32[2,8,32], index: 2, kind: input, shape index: {}]
  %s3 = inlined_call_operand.hbm [shape: f32[32,32], index: 3, kind: input, shape index: {}]
  %s4 = inlined_call_operand.hbm [shape: f32[1,32], index: 4, kind: input, shape index: {}]
  %s5 = inlined_call_operand.hbm [shape: f32[64,128], index: 5, kind: input, shape index: {}]
  %s6 = inlined_call_operand.hbm [shape: f32[32,128], index: 6, kind: input, shape index: {}]
  %s7 = inlined_call_operand.hbm [shape: f32[1,128], index: 7, kind: input, shape index: {}]
  %s8 = inlined_call_operand.hbm [shape: f32[6,2,64], index: 8, kind: output, shape index: {}]
  %s9 = sld [smem:[#allocation0]]
  $region93: #{tacotron2_forward.14} parent=0
    _
  %s11 = ssub.s32 1, %s9
  %s12 = scalar_select 0, %s11, %s9
  $region1: #{tacotron2_forward.14} parent=0
    #allocation7 [shape = 'u8[2048]{0}', space=vmem, size = 0x800, scoped, tag = 'input window, operand 0']
    #allocation8 [shape = 's32[2]{0}', space=sflag, size = 0x8, scoped, tag = 'scoped memory for tacotron2_forward.14']
    #allocation9 [shape = 's32[2]{0}', space=sflag, size = 0x8, scoped, tag = 'scoped memory for tacotron2_forward.14']
    #allocation10 [shape = 'u8[16384]{0}', space=vmem, size = 0x4000, scoped, tag = 'input window, operand 3, single buffered']
    #allocation11 [shape = 's32[1]{0}', space=sflag, size = 0x4, scoped, tag = 'scoped memory for tacotron2_forward.14']
    #allocation12 [shape = 'u8[512]{0}', space=vmem, size = 0x400, scoped, tag = 'input window, operand 4, single buffered']
    #allocation13 [shape = 'u8[32768]{0}', space=vmem, size = 0x8000, scoped, tag = 'input window, operand 5, single buffered']
    #allocation14 [shape = 's32[1]{0}', space=sflag, size = 0x4, scoped, tag = 'scoped memory for tacotron2_forward.14']
    #allocation15 [shape = 'u8[16384]{0}', space=vmem, size = 0x4000, scoped, tag = 'input window, operand 6, single buffered']
    #allocation16 [shape = 'u8[512]{0}', space=vmem, size = 0x400, scoped, tag = 'input window, operand 7, single buffered']
    #allocation17 [shape = 's32[1]{0}', space=sflag, size = 0x4, scoped, tag = 'scoped memory for tacotron2_forward.14']
    #allocation18 [shape = 'u8[2048]{0}', space=vmem, size = 0x800, scoped, tag = 'output window, operand 0']
    %13 = vsyncpa [#allocation8], 0
    %s14 = scalar_lea.sflag [#allocation8], 1
    %15 = vsyncpa %s14, 0
    %16 = vsyncpa [#allocation11], 0
    %17 = vsyncpa [#allocation14], 0
    %18 = vsyncpa [#allocation17], 0
    %19 = vsyncpa [#allocation9], 0
    %s20 = scalar_lea.sflag [#allocation9], 1
    %21 = vsyncpa %s20, 0
    loop: start=0, step=1, limit=8
    $region2: #{tacotron2_forward.14} parent=1 // loop_pre_header
      _
    $region3: #{tacotron2_forward.14} parent=1 // loop_header
      %s23 = sphi 0, %s27
      %p24 = scmp.ge.s32.totalorder %s23, 8
      %s33 = sphi 0, %s35
      %s36 = sphi 0, %s33
      %s37 = sphi 0, %s36
      %s53 = sphi 0, %s37
      %s57 = sphi 0, %s57
      %s59 = sphi 0, %s57
      %s60 = sphi 0, %s59
      %s74 = sphi 0, %s60
      %s78 = sphi 0, %s78
      %s80 = sphi 0, %s78
      %s81 = sphi 0, %s80
      %s95 = sphi 0, %s81
      %s99 = sphi 0, %s99
      %s101 = sphi 0, %s99
      %s102 = sphi 0, %s101
      %s116 = sphi 0, %s102
      %s120 = sphi 0, %s120
      %s122 = sphi 0, %s120
      %s123 = sphi 0, %s122
      %s137 = sphi 0, %s123
      %s141 = sphi 0, %s141
      %s143 = sphi 0, %s141
      %s144 = sphi 0, %s143
      %s158 = sphi 0, %s144
      %s164 = sphi 0, %s166
      %s167 = sphi 0, %s164
      %s168 = sphi 0, %s167
      %s184 = sphi 0, %s168
    $region4: #{tacotron2_forward.14} parent=1 // loop_header_branch
      %26 = sbr.rel (%p24) target = $region8
    $region5: #{tacotron2_forward.14} parent=1 // loop_body
      %s28 = ssub.s32 %s23, 1
      %s29 = ssub.s32 %s23, 2
      %s30 = sadd.s32 %s23, 1
      %s31 = ssub.s32 %s23, %s30
      %p32 = scmp.eq.s32.totalorder %s31, 0
      %s34 = sadd.s32 %s33, 1
      %s35 = scalar_select %p32, %s33, %s34
      %p38 = pneg %p32
      %p39 = scmp.eq.s32.totalorder %s23, 5
      %p40 = por %p38, %p39
      %p41 = scmp.ne.s32.totalorder %s33, %s36
      %p42 = scmp.eq.s32.totalorder %s23, 0
      %p43 = por %p41, %p42
      %p44 = scmp.ne.s32.totalorder %s33, %s36
      %p45 = scmp.eq.s32.totalorder %s28, 5
      %p46 = por %p44, %p45
      %p47 = scmp.ne.s32.totalorder %s36, %s37
      %p48 = scmp.eq.s32.totalorder %s28, 0
      %p49 = por %p47, %p48
      %p50 = scmp.ne.s32.totalorder %s36, %s37
      %p51 = scmp.eq.s32.totalorder %s29, 5
      %p52 = por %p50, %p51
      %p54 = scmp.ne.s32.totalorder %s37, %s53
      %p55 = scmp.eq.s32.totalorder %s29, 0
      %p56 = por %p54, %p55
      %s58 = sadd.s32 %s57, 1
      %p61 = scmp.eq.s32.totalorder %s23, 5
      %p62 = scmp.ne.s32.totalorder %s57, %s59
      %p63 = scmp.eq.s32.totalorder %s23, 0
      %p64 = por %p62, %p63
      %p65 = scmp.ne.s32.totalorder %s57, %s59
      %p66 = scmp.eq.s32.totalorder %s28, 5
      %p67 = por %p65, %p66
      %p68 = scmp.ne.s32.totalorder %s59, %s60
      %p69 = scmp.eq.s32.totalorder %s28, 0
      %p70 = por %p68, %p69
      %p71 = scmp.ne.s32.totalorder %s59, %s60
      %p72 = scmp.eq.s32.totalorder %s29, 5
      %p73 = por %p71, %p72
      %p75 = scmp.ne.s32.totalorder %s60, %s74
      %p76 = scmp.eq.s32.totalorder %s29, 0
      %p77 = por %p75, %p76
      %s79 = sadd.s32 %s78, 1
      %p82 = scmp.eq.s32.totalorder %s23, 5
      %p83 = scmp.ne.s32.totalorder %s78, %s80
      %p84 = scmp.eq.s32.totalorder %s23, 0
      %p85 = por %p83, %p84
      %p86 = scmp.ne.s32.totalorder %s78, %s80
      %p87 = scmp.eq.s32.totalorder %s28, 5
      %p88 = por %p86, %p87
      %p89 = scmp.ne.s32.totalorder %s80, %s81
      %p90 = scmp.eq.s32.totalorder %s28, 0
      %p91 = por %p89, %p90
      %p92 = scmp.ne.s32.totalorder %s80, %s81
      %p93 = scmp.eq.s32.totalorder %s29, 5
      %p94 = por %p92, %p93
      %p96 = scmp.ne.s32.totalorder %s81, %s95
      %p97 = scmp.eq.s32.totalorder %s29, 0
      %p98 = por %p96, %p97
      %s100 = sadd.s32 %s99, 1
      %p103 = scmp.eq.s32.totalorder %s23, 5
      %p104 = scmp.ne.s32.totalorder %s99, %s101
      %p105 = scmp.eq.s32.totalorder %s23, 0
      %p106 = por %p104, %p105
      %p107 = scmp.ne.s32.totalorder %s99, %s101
      %p108 = scmp.eq.s32.totalorder %s28, 5
      %p109 = por %p107, %p108
      %p110 = scmp.ne.s32.totalorder %s101, %s102
      %p111 = scmp.eq.s32.totalorder %s28, 0
      %p112 = por %p110, %p111
      %p113 = scmp.ne.s32.totalorder %s101, %s102
      %p114 = scmp.eq.s32.totalorder %s29, 5
      %p115 = por %p113, %p114
      %p117 = scmp.ne.s32.totalorder %s102, %s116
      %p118 = scmp.eq.s32.totalorder %s29, 0
      %p119 = por %p117, %p118
      %s121 = sadd.s32 %s120, 1
      %p124 = scmp.eq.s32.totalorder %s23, 5
      %p125 = scmp.ne.s32.totalorder %s120, %s122
      %p126 = scmp.eq.s32.totalorder %s23, 0
      %p127 = por %p125, %p126
      %p128 = scmp.ne.s32.totalorder %s120, %s122
      %p129 = scmp.eq.s32.totalorder %s28, 5
      %p130 = por %p128, %p129
      %p131 = scmp.ne.s32.totalorder %s122, %s123
      %p132 = scmp.eq.s32.totalorder %s28, 0
      %p133 = por %p131, %p132
      %p134 = scmp.ne.s32.totalorder %s122, %s123
      %p135 = scmp.eq.s32.totalorder %s29, 5
      %p136 = por %p134, %p135
      %p138 = scmp.ne.s32.totalorder %s123, %s137
      %p139 = scmp.eq.s32.totalorder %s29, 0
      %p140 = por %p138, %p139
      %s142 = sadd.s32 %s141, 1
      %p145 = scmp.eq.s32.totalorder %s23, 5
      %p146 = scmp.ne.s32.totalorder %s141, %s143
      %p147 = scmp.eq.s32.totalorder %s23, 0
      %p148 = por %p146, %p147
      %p149 = scmp.ne.s32.totalorder %s141, %s143
      %p150 = scmp.eq.s32.totalorder %s28, 5
      %p151 = por %p149, %p150
      %p152 = scmp.ne.s32.totalorder %s143, %s144
      %p153 = scmp.eq.s32.totalorder %s28, 0
      %p154 = por %p152, %p153
      %p155 = scmp.ne.s32.totalorder %s143, %s144
      %p156 = scmp.eq.s32.totalorder %s29, 5
      %p157 = por %p155, %p156
      %p159 = scmp.ne.s32.totalorder %s144, %s158
      %p160 = scmp.eq.s32.totalorder %s29, 0
      %p161 = por %p159, %p160
      %s162 = ssub.s32 %s23, %s30
      %p163 = scmp.eq.s32.totalorder %s162, 0
      %s165 = sadd.s32 %s164, 1
      %s166 = scalar_select %p163, %s164, %s165
      %p169 = pneg %p163
      %p170 = scmp.eq.s32.totalorder %s23, 5
      %p171 = por %p169, %p170
      %p172 = scmp.ne.s32.totalorder %s164, %s167
      %p173 = scmp.eq.s32.totalorder %s23, 0
      %p174 = por %p172, %p173
      %p175 = scmp.ne.s32.totalorder %s164, %s167
      %p176 = scmp.eq.s32.totalorder %s28, 5
      %p177 = por %p175, %p176
      %p178 = scmp.ne.s32.totalorder %s167, %s168
      %p179 = scmp.eq.s32.totalorder %s28, 0
      %p180 = por %p178, %p179
      %p181 = scmp.ne.s32.totalorder %s167, %s168
      %p182 = scmp.eq.s32.totalorder %s29, 5
      %p183 = por %p181, %p182
      %p185 = scmp.ne.s32.totalorder %s168, %s184
      %p186 = scmp.eq.s32.totalorder %s29, 0
      %p187 = por %p185, %p186
      %p188 = scmp.le.s32.totalorder 1, %s23
      %p189 = scmp.lt.s32.totalorder %s23, 7
      %p190 = pnand %p188, %p189
      %p191 = pneg %p190
      // Predicated region
      $region9: #{tacotron2_forward.14} parent=5 // pred_check
        _
      $region10: #{tacotron2_forward.14} parent=5 // pred_check_branch
        %193 = sbr.rel (%p190) target = $region12
      $region11: #{tacotron2_forward.14} parent=5 // pred_region
        %s194 = ssub.s32 %s23, 1
        // Predicated region
        $region13: #{tacotron2_forward.14} parent=11 // pred_check
          %p195 = pneg %p70
        $region14: #{tacotron2_forward.14} parent=11 // pred_check_branch
          %197 = sbr.rel (%p195) target = $region16
        $region15: #{tacotron2_forward.14} parent=11 // pred_region
          %s199 = ssub.s32 512, 512
          %200 = vsyncadd [#allocation11], %s199
          %s201 = sshll.u32 [#allocation10], 4
          %s202 = int_to_ptr.vmem [resolvable:$true] %s201
          %207 = dma.hbm_to_vmem [thread:$0]  %s3, 512, %s202, [#allocation11], 128, 128, 8
        $region16: #{tacotron2_forward.14} parent=11 // pred_fallthru
          _
        // Predicated region
        $region17: #{tacotron2_forward.14} parent=11 // pred_check
          %p208 = pneg %p91
        $region18: #{tacotron2_forward.14} parent=11 // pred_check_branch
          %210 = sbr.rel (%p208) target = $region20
        $region19: #{tacotron2_forward.14} parent=11 // pred_region
          %s212 = ssub.s32 16, 16
          %213 = vsyncadd [#allocation11], %s212
          %s215 = sshll.u32 [#allocation12], 4
          %s216 = int_to_ptr.vmem [resolvable:$true] %s215
          %218 = dma.hbm_to_vmem [thread:$0]  %s4, 16, %s216, [#allocation11]
        $region20: #{tacotron2_forward.14} parent=11 // pred_fallthru
          _
        // Predicated region
        $region21: #{tacotron2_forward.14} parent=11 // pred_check
          %p219 = pneg %p112
        $region22: #{tacotron2_forward.14} parent=11 // pred_check_branch
          %221 = sbr.rel (%p219) target = $region24
        $region23: #{tacotron2_forward.14} parent=11 // pred_region
          %s223 = ssub.s32 1024, 1024
          %224 = vsyncadd [#allocation14], %s223
          %s225 = sshll.u32 [#allocation13], 4
          %s226 = int_to_ptr.vmem [resolvable:$true] %s225
          %231 = dma.hbm_to_vmem [thread:$0]  %s5, 1024, %s226, [#allocation14], 128, 128, 8
        $region24: #{tacotron2_forward.14} parent=11 // pred_fallthru
          _
        // Predicated region
        $region25: #{tacotron2_forward.14} parent=11 // pred_check
          %p232 = pneg %p133
        $region26: #{tacotron2_forward.14} parent=11 // pred_check_branch
          %234 = sbr.rel (%p232) target = $region28
        $region27: #{tacotron2_forward.14} parent=11 // pred_region
          %s236 = ssub.s32 512, 512
          %237 = vsyncadd [#allocation14], %s236
          %s238 = sshll.u32 [#allocation15], 4
          %s239 = int_to_ptr.vmem [resolvable:$true] %s238
          %244 = dma.hbm_to_vmem [thread:$0]  %s6, 512, %s239, [#allocation14], 128, 128, 8
        $region28: #{tacotron2_forward.14} parent=11 // pred_fallthru
          _
        // Predicated region
        $region29: #{tacotron2_forward.14} parent=11 // pred_check
          %p245 = pneg %p154
        $region30: #{tacotron2_forward.14} parent=11 // pred_check_branch
          %247 = sbr.rel (%p245) target = $region32
        $region31: #{tacotron2_forward.14} parent=11 // pred_region
          %s249 = ssub.s32 16, 16
          %250 = vsyncadd [#allocation17], %s249
          %s252 = sshll.u32 [#allocation16], 4
          %s253 = int_to_ptr.vmem [resolvable:$true] %s252
          %255 = dma.hbm_to_vmem [thread:$0]  %s7, 16, %s253, [#allocation17]
        $region32: #{tacotron2_forward.14} parent=11 // pred_fallthru
          _
      $region12: #{tacotron2_forward.14} parent=5 // pred_fallthru
        _
      %p256 = scmp.lt.s32.totalorder %s23, 6
      // Predicated region
      $region33: #{tacotron2_forward.14} parent=5 // pred_check
        %p257 = pneg %p256
      $region34: #{tacotron2_forward.14} parent=5 // pred_check_branch
        %259 = sbr.rel (%p257) target = $region36
      $region35: #{tacotron2_forward.14} parent=5 // pred_region
        // Predicated region
        $region37: #{tacotron2_forward.14} parent=35 // pred_check
          %p260 = pneg %p43
        $region38: #{tacotron2_forward.14} parent=35 // pred_check_branch
          %262 = sbr.rel (%p260) target = $region40
        $region39: #{tacotron2_forward.14} parent=35 // pred_region
          %s263 = sand.u32 %s33, 1
          %s264 = scalar_lea.sflag [#allocation8], %s263
          %s265 = sand.u32 %s33, 1
          %s266 = smul.addr %s265, 2
          %s267 = scalar_lea.vmem [#allocation7], %s266
          %s269 = ssub.s32 32, 32
          %270 = vsyncadd %s264, %s269
          %s271 = smul.addr %s23, 32
          %s272 = scalar_lea.hbm %s0, %s271
          %s274 = sshll.u32 %s267, 4
          %s275 = int_to_ptr.vmem [resolvable:$true] %s274
          %277 = dma.hbm_to_vmem [thread:$0]  %s272, 32, %s275, %s264
        $region40: #{tacotron2_forward.14} parent=35 // pred_fallthru
          _
      $region36: #{tacotron2_forward.14} parent=5 // pred_fallthru
        _
      %p278 = scmp.le.s32.totalorder 1, %s23
      %p279 = scmp.lt.s32.totalorder %s23, 7
      %p280 = pnand %p278, %p279
      %p281 = pneg %p280
      // Predicated region
      $region41: #{tacotron2_forward.14} parent=5 // pred_check
        _
      $region42: #{tacotron2_forward.14} parent=5 // pred_check_branch
        %283 = sbr.rel (%p280) target = $region44
      $region43: #{tacotron2_forward.14} parent=5 // pred_region
        %s284 = ssub.s32 %s23, 1
        %s285 = sand.u32 %s36, 1
        %s286 = scalar_lea.sflag [#allocation8], %s285
        %s287 = sand.u32 %s36, 1
        %s288 = smul.addr %s287, 2
        %s289 = scalar_lea.vmem [#allocation7], %s288
        // Predicated region
        $region45: #{tacotron2_forward.14} parent=43 // pred_check
          %p290 = pneg %p49
        $region46: #{tacotron2_forward.14} parent=43 // pred_check_branch
          %292 = sbr.rel (%p290) target = $region48
        $region47: #{tacotron2_forward.14} parent=43 // pred_region
          %293 = dma.done %s286, 32
        $region48: #{tacotron2_forward.14} parent=43 // pred_fallthru
          _
        // Predicated region
        $region49: #{tacotron2_forward.14} parent=43 // pred_check
          %p294 = pneg %p70
        $region50: #{tacotron2_forward.14} parent=43 // pred_check_branch
          %296 = sbr.rel (%p294) target = $region52
        $region51: #{tacotron2_forward.14} parent=43 // pred_region
          %297 = dma.done [#allocation11], 512
        $region52: #{tacotron2_forward.14} parent=43 // pred_fallthru
          _
        // Predicated region
        $region53: #{tacotron2_forward.14} parent=43 // pred_check
          %p298 = pneg %p91
        $region54: #{tacotron2_forward.14} parent=43 // pred_check_branch
          %300 = sbr.rel (%p298) target = $region56
        $region55: #{tacotron2_forward.14} parent=43 // pred_region
          %301 = dma.done [#allocation11], 16
        $region56: #{tacotron2_forward.14} parent=43 // pred_fallthru
          _
        // Predicated region
        $region57: #{tacotron2_forward.14} parent=43 // pred_check
          %p302 = pneg %p112
        $region58: #{tacotron2_forward.14} parent=43 // pred_check_branch
          %304 = sbr.rel (%p302) target = $region60
        $region59: #{tacotron2_forward.14} parent=43 // pred_region
          %305 = dma.done [#allocation14], 1024
        $region60: #{tacotron2_forward.14} parent=43 // pred_fallthru
          _
        // Predicated region
        $region61: #{tacotron2_forward.14} parent=43 // pred_check
          %p306 = pneg %p133
        $region62: #{tacotron2_forward.14} parent=43 // pred_check_branch
          %308 = sbr.rel (%p306) target = $region64
        $region63: #{tacotron2_forward.14} parent=43 // pred_region
          %309 = dma.done [#allocation14], 512
        $region64: #{tacotron2_forward.14} parent=43 // pred_fallthru
          _
        // Predicated region
        $region65: #{tacotron2_forward.14} parent=43 // pred_check
          %p310 = pneg %p154
        $region66: #{tacotron2_forward.14} parent=43 // pred_check_branch
          %312 = sbr.rel (%p310) target = $region68
        $region67: #{tacotron2_forward.14} parent=43 // pred_region
          %313 = dma.done [#allocation17], 16
        $region68: #{tacotron2_forward.14} parent=43 // pred_fallthru
          _
        %s314 = sand.u32 %s36, 1
        %s315 = scalar_lea.sflag [#allocation8], %s314
        %s316 = sand.u32 %s36, 1
        %s317 = smul.addr %s316, 2
        %s318 = scalar_lea.vmem [#allocation7], %s317
        %p319 = pneg %p49
        %p320 = pneg %p46
        %p321 = pneg %p70
        %p322 = pneg %p67
        %p323 = pneg %p91
        %p324 = pneg %p88
        %p325 = pneg %p112
        %p326 = pneg %p109
        %p327 = pneg %p133
        %p328 = pneg %p130
        %p329 = pneg %p154
        %p330 = pneg %p151
        %p331 = pneg %p180
        %p332 = pneg %p177
        %s333 = sand.u32 %s167, 1
        %s334 = scalar_lea.sflag [#allocation9], %s333
        %s335 = sand.u32 %s167, 1
        %s336 = smul.addr %s335, 2
        %s337 = scalar_lea.vmem [#allocation18], %s336
        %p338 = scmp.eq.s32.totalorder %s28, 0
        // Predicated region
        $region69: #{tacotron2_forward.14} parent=43 // pred_check
          %p339 = pneg %p338
        $region70: #{tacotron2_forward.14} parent=43 // pred_check_branch
          %341 = sbr.rel (%p339) target = $region72
        $region71: #{tacotron2_forward.14} parent=43 // pred_region
          %vm342 = vcmask 254976
          %343 = vst.msk [vmem:[#allocation2] sm:$0x3] %vm342, 0.0
          %344 = vst.msk [vmem:[#allocation3] sm:$0x3] %vm342, 0.0
          // Predicated region
          $region73: #{tacotron2_forward.14} parent=71 // pred_check
            _
          $region74: #{tacotron2_forward.14} parent=71 // pred_check_branch
            %346 = sbr.rel target = $region76
          $region75: #{tacotron2_forward.14} parent=71 // pred_region
            %347 = sst [smem:[#allocation21]] [#allocation20]
            %348 = sst [smem:[#allocation22]] [#allocation19]
          $region76: #{tacotron2_forward.14} parent=71 // pred_fallthru
            _
          %350 = shalt.err (0)
          %s352 = sshll.u32 [#allocation4], 4
          %s353 = int_to_ptr.vmem [resolvable:$true] %s352
          %355 = dma.hbm_to_vmem [thread:$0]  %s1, 256, %s353, [#allocation6]
          %s356 = scalar_lea.sflag [#allocation6], 1
          // Predicated region
          $region77: #{tacotron2_forward.14} parent=71 // pred_check
            _
          $region78: #{tacotron2_forward.14} parent=71 // pred_check_branch
            %358 = sbr.rel target = $region80
          $region79: #{tacotron2_forward.14} parent=71 // pred_region
            %359 = sst [smem:[#allocation21]] [#allocation24]
            %360 = sst [smem:[#allocation22]] [#allocation23]
          $region80: #{tacotron2_forward.14} parent=71 // pred_fallthru
            _
          %362 = shalt.err (0)
          %s364 = sshll.u32 [#allocation5], 4
          %s365 = int_to_ptr.vmem [resolvable:$true] %s364
          %367 = dma.hbm_to_vmem [thread:$0]  %s2, 256, %s365, %s356
          %s368 = smul.u32 2, 8
          %s369 = smul.u32 %s368, 1
          %s370 = sshll.u32 %s369, 4
          %371 = dma.done [#allocation6], %s370
          %s372 = sshll.u32 %s369, 4
          %373 = dma.done %s356, %s372
        $region72: #{tacotron2_forward.14} parent=43 // pred_fallthru
          _
        %v374 = vld [vmem:[%s289] sm:$0x3]
        %v375 = vld [vmem:[#allocation2] sm:$0x3]
        %v376 = vld [vmem:[#allocation3] sm:$0x3]
        %v377 = vld [vmem:[#allocation4] sm:$0xff]
        %v378 = vld [vmem:[#allocation4 + $0x8] sm:$0xff]
        %v379 = vld [vmem:[#allocation5] sm:$0xff]
        %v380 = vld [vmem:[#allocation5 + $0x8] sm:$0xff]
        %v381 = vld [vmem:[#allocation10] sm:$0xff]
        %v382 = vld [vmem:[#allocation10 + $0x8] sm:$0xff]
        %v383 = vld [vmem:[#allocation10 + $0x10] sm:$0xff]
        %v384 = vld [vmem:[#allocation10 + $0x18] sm:$0xff]
        %vm385 = vcmask 261120
        %v387 = vsel %vm385, %v375, 0
        %389 = vmatprep.subr.mxu0 0.0
        %390 = vmatpush1.msra.mxu0 %v381
        %391 = vmatprep.subr.mxu0 0.0
        %392 = vmatpush1.msra.mxu0 %v382
        %393 = vmatprep.subr.mxu0 0.0
        %394 = vmatpush1.msra.mxu0 %v383
        %395 = vmatprep.subr.mxu0 0.0
        %396 = vmatpush1.msra.mxu0 %v384
        %397 = vmatprep.subr.mxu0 0.0
        %398 = vmatpush1.msra.mxu0 0.0
        %399 = vmatprep.subr.mxu0 0.0
        %400 = vmatpush1.msra.mxu0 0.0
        %401 = vmatprep.subr.mxu0 0.0
        %402 = vmatpush1.msra.mxu0 0.0
        %403 = vmatprep.subr.mxu0 0.0
        %404 = vmatpush1.msra.mxu0 0.0
        %405 = vmatprep.subr.mxu0 0.0
        %406 = vmatpush1.msra.mxu0 0.0
        %407 = vmatprep.subr.mxu0 0.0
        %408 = vmatpush1.msra.mxu0 0.0
        %409 = vmatprep.subr.mxu0 0.0
        %410 = vmatpush1.msra.mxu0 0.0
        %411 = vmatprep.subr.mxu0 0.0
        %412 = vmatpush1.msra.mxu0 0.0
        %413 = vmatprep.subr.mxu0 0.0
        %414 = vmatpush1.msra.mxu0 0.0
        %415 = vmatprep.subr.mxu0 0.0
        %416 = vmatpush1.msra.mxu0 0.0
        %417 = vmatprep.subr.mxu0 0.0
        %418 = vmatpush1.msra.mxu0 0.0
        %419 = vmatprep.subr.mxu0 0.0
        %420 = vmatpush1.msra.mxu0 0.0
        %421 = vmatprep.subr.mxu0 0.0
        %422 = vmatpush1.msra.mxu0 0.0
        %423 = vmatprep.subr.mxu0 0.0
        %424 = vmatpush1.msra.mxu0 0.0
        %425 = vmatprep.subr.mxu0 0.0
        %426 = vmatpush1.msra.mxu0 0.0
        %427 = vmatprep.subr.mxu0 0.0
        %428 = vmatpush1.msra.mxu0 0.0
        %429 = vmatprep.subr.mxu0 0.0
        %430 = vmatpush1.msra.mxu0 0.0
        %431 = vmatprep.subr.mxu0 0.0
        %432 = vmatpush1.msra.mxu0 0.0
        %433 = vmatprep.subr.mxu0 0.0
        %434 = vmatpush1.msra.mxu0 0.0
        %435 = vmatprep.subr.mxu0 0.0
        %436 = vmatpush1.msra.mxu0 0.0
        %437 = vmatprep.subr.mxu0 0.0
        %438 = vmatpush1.msra.mxu0 0.0
        %439 = vmatprep.subr.mxu0 0.0
        %440 = vmatpush1.msra.mxu0 0.0
        %441 = vmatprep.subr.mxu0 0.0
        %442 = vmatpush1.msra.mxu0 0.0
        %443 = vmatprep.subr.mxu0 0.0
        %444 = vmatpush1.msra.mxu0 0.0
        %445 = vmatprep.subr.mxu0 0.0
        %446 = vmatpush1.msra.mxu0 0.0
        %447 = vmatprep.subr.mxu0 0.0
        %448 = vmatpush1.msra.mxu0 0.0
        %449 = vmatprep.subr.mxu0 0.0
        %450 = vmatpush1.msra.mxu0 0.0
        %451 = vmatprep.subr.mxu0 0.0
        %452 = vmatpush1.msra.mxu0 0.0
        %453 = vmatprep.mubr.f32.mxu0 0.0
        %454 = vmatmul.mubr.f32.gmra.mrb[0].mxu0 %v387
        %v455 = vpop.f32.mrb[0].mxu0
        %v456 = vadd.f32 0.0, %v455
        %v457 = vpop.f32.mrb[0].mxu0
        %458 = vdwg.mxu0
        %v461 = vunpack.c.l.s4 1966171168
        %v462 = vunpack.c.0.s8 %v461
        %v463 = vlaneseq
        %v464 = vshrl.u32 %v463, 7
        %v465 = vsub.s32 %v462, %v464
        %v466 = vrot.slane %v456, %v465
        %v467 = vcombine.high %v466, %v466
        %v469 = vunpack.c.l.s4 1966171168
        %v470 = vunpack.c.0.s8 %v469
        %v471 = vlaneseq
        %v472 = vshrl.u32 %v471, 7
        %v473 = vsub.s32 %v470, %v472
        %v474 = vrot.slane %v466, %v473
        %v476 = vunpack.c.l.s4 1966171168
        %v477 = vunpack.c.0.s8 %v476
        %v478 = vlaneseq
        %v479 = vshrl.u32 %v478, 7
        %v480 = vsub.s32 %v477, %v479
        %v481 = vrot.slane %v467, %v480
        %v482 = vlaneseq
        %v483 = vshrl.u32 %v482, 7
        %v484 = vsub.s32 0, %v483
        %v485 = vrot.slane %v474, %v484
        %v486 = vlaneseq
        %v487 = vshrl.u32 %v486, 7
        %v488 = vsub.s32 0, %v487
        %v489 = vrot.slane %v481, %v488
        %v492 = vadd.f32 %v485, %v379
        %v493 = vadd.f32 %v489, %v380
        %v494 = vtanh.pop %v492
        %v495 = vtanh.pop %v493
        %v496 = vld [vmem:[#allocation12] sm:$0x1]
        %v498 = vlaneseq
        %v499 = vshrl.u32 %v498, 7
        %v500 = vsub.s32 0, %v499
        %v501 = vrot.slane %v496, %v500
        %v503 = vmul.f32 %v494, %v501
        %v504 = vmul.f32 %v495, %v501
        %v505 = vsel %vm385, %v503, 0.0
        %506 = vadd.xlane.f32.xlu0 %v505
        %v507 = vpop.xlane.xlu0 %506
        %v508 = vsel %vm385, %v504, 0.0
        %509 = vadd.xlane.f32.xlu0 %v508
        %v510 = vpop.xlane.xlu0 %509
        %v513 = vlaneseq
        %v514 = vand.u32 %v513, 127
        %v515 = vlaneseq
        %v516 = vshrl.u32 %v515, 7
        %v517 = vsub.s32 %v514, %v516
        %v518 = vrot.slane %v507, %v517
        %v519 = vlaneseq
        %v520 = vshrl.u32 %v519, 7
        %v521 = vsub.s32 %v514, %v520
        %v522 = vrot.slane %v510, %v521
        %vm523 = vcmask 1041409
        %v524 = vsel %vm523, %v522, %v518
        %vm526 = vcmask 58368
        %v527 = vsel %vm526, %v524, -inf
        %528 = vmax.xlane.f32.xlu0 %v527
        %v529 = vpop.xlane.xlu0 %528
        %v531 = vlaneseq
        %v532 = vshrl.u32 %v531, 7
        %v533 = vsub.s32 0, %v532
        %v534 = vrot.slane %v529, %v533
        %v535 = vlaneseq
        %v536 = vshrl.u32 %v535, 7
        %v537 = vsub.s32 1, %v536
        %v538 = vrot.slane %v529, %v537
        %v541 = vsub.f32 %v507, %v534
        %v542 = vsub.f32 %v510, %v538
        %v543 = vmul.f32 %v541, 1.442695
        %v544 = vpow.pop %v543
        %v545 = vmul.f32 %v542, 1.442695
        %v546 = vpow.pop %v545
        %549 = vset.pattern.permute.xlu0 0
        %550 = vperm.xlu0 %549, %v544
        %v551 = vpop.permute.xlu0 %550
        %552 = vset.pattern.permute.xlu0 0
        %553 = vperm.xlu0 %552, %v546
        %v554 = vpop.permute.xlu0 %553
        %v555 = vlaneseq
        %v556 = vshrl.u32 %v555, 7
        %v557 = vsub.s32 %v514, %v556
        %v558 = vrot.slane %v551, %v557
        %v559 = vlaneseq
        %v560 = vshrl.u32 %v559, 7
        %v561 = vsub.s32 %v514, %v560
        %v562 = vrot.slane %v554, %v561
        %v563 = vsel %vm523, %v562, %v558
        %v565 = vsel %vm526, %v563, 0.0
        %566 = vadd.xlane.f32.xlu0 %v565
        %v567 = vpop.xlane.xlu0 %566
        %v568 = vrcp.pop %v567
        %v570 = vlaneseq
        %v571 = vshrl.u32 %v570, 7
        %v572 = vsub.s32 0, %v571
        %v573 = vrot.slane %v568, %v572
        %v574 = vlaneseq
        %v575 = vshrl.u32 %v574, 7
        %v576 = vsub.s32 1, %v575
        %v577 = vrot.slane %v568, %v576
        %v580 = vmul.f32 %v544, %v573
        %v581 = vmul.f32 %v546, %v577
        %583 = vset.pattern.permute.xlu0 0
        %584 = vperm.xlu0 %583, %v580
        %v585 = vpop.permute.xlu0 %584
        %588 = vset.pattern.permute.xlu0 0
        %589 = vperm.xlu0 %588, %v581
        %v590 = vpop.permute.xlu0 %589
        %v592 = vmul.f32 %v585, %v377
        %v593 = vmul.f32 %v590, %v378
        %v594 = vsel %vm385, %v592, 0.0
        %v595 = vrot.slane %v594, 4
        %v596 = vadd.f32 %v594, %v595
        %v597 = vrot.slane %v596, 2
        %v598 = vadd.f32 %v596, %v597
        %v599 = vrot.slane %v598, 1
        %v600 = vadd.f32 %v598, %v599
        %v601 = vsel %vm385, %v593, 0.0
        %v602 = vrot.slane %v601, 4
        %v603 = vadd.f32 %v601, %v602
        %v604 = vrot.slane %v603, 2
        %v605 = vadd.f32 %v603, %v604
        %v606 = vrot.slane %v605, 1
        %v607 = vadd.f32 %v605, %v606
        %v610 = vsel %vm523, %v607, %v600
        %611 = vrot.lane.b32.xlu0 %v610, 32
        %v612 = vpop.permute.xlu0 %611
        %v614 = vsel %vm385, %v374, %v612
        %v615 = vld [vmem:[#allocation13] sm:$0xff]
        %v616 = vld [vmem:[#allocation13 + $0x8] sm:$0xff]
        %v617 = vld [vmem:[#allocation13 + $0x10] sm:$0xff]
        %v618 = vld [vmem:[#allocation13 + $0x18] sm:$0xff]
        %v619 = vld [vmem:[#allocation13 + $0x20] sm:$0xff]
        %v620 = vld [vmem:[#allocation13 + $0x28] sm:$0xff]
        %v621 = vld [vmem:[#allocation13 + $0x30] sm:$0xff]
        %v622 = vld [vmem:[#allocation13 + $0x38] sm:$0xff]
        %v623 = vld [vmem:[#allocation15] sm:$0xff]
        %v624 = vld [vmem:[#allocation15 + $0x8] sm:$0xff]
        %v625 = vld [vmem:[#allocation15 + $0x10] sm:$0xff]
        %v626 = vld [vmem:[#allocation15 + $0x18] sm:$0xff]
        %627 = vmatprep.subr.mxu0 0.0
        %628 = vmatpush1.msra.mxu0 %v623
        %629 = vmatprep.subr.mxu0 0.0
        %630 = vmatpush1.msra.mxu0 %v624
        %631 = vmatprep.subr.mxu0 0.0
        %632 = vmatpush1.msra.mxu0 %v625
        %633 = vmatprep.subr.mxu0 0.0
        %634 = vmatpush1.msra.mxu0 %v626
        %635 = vmatprep.subr.mxu0 0.0
        %636 = vmatpush1.msra.mxu0 0.0
        %637 = vmatprep.subr.mxu0 0.0
        %638 = vmatpush1.msra.mxu0 0.0
        %639 = vmatprep.subr.mxu0 0.0
        %640 = vmatpush1.msra.mxu0 0.0
        %641 = vmatprep.subr.mxu0 0.0
        %642 = vmatpush1.msra.mxu0 0.0
        %643 = vmatprep.subr.mxu0 0.0
        %644 = vmatpush1.msra.mxu0 0.0
        %645 = vmatprep.subr.mxu0 0.0
        %646 = vmatpush1.msra.mxu0 0.0
        %647 = vmatprep.subr.mxu0 0.0
        %648 = vmatpush1.msra.mxu0 0.0
        %649 = vmatprep.subr.mxu0 0.0
        %650 = vmatpush1.msra.mxu0 0.0
        %651 = vmatprep.subr.mxu0 0.0
        %652 = vmatpush1.msra.mxu0 0.0
        %653 = vmatprep.subr.mxu0 0.0
        %654 = vmatpush1.msra.mxu0 0.0
        %655 = vmatprep.subr.mxu0 0.0
        %656 = vmatpush1.msra.mxu0 0.0
        %657 = vmatprep.subr.mxu0 0.0
        %658 = vmatpush1.msra.mxu0 0.0
        %659 = vmatprep.subr.mxu0 0.0
        %660 = vmatpush1.msra.mxu0 0.0
        %661 = vmatprep.subr.mxu0 0.0
        %662 = vmatpush1.msra.mxu0 0.0
        %663 = vmatprep.subr.mxu0 0.0
        %664 = vmatpush1.msra.mxu0 0.0
        %665 = vmatprep.subr.mxu0 0.0
        %666 = vmatpush1.msra.mxu0 0.0
        %667 = vmatprep.subr.mxu0 0.0
        %668 = vmatpush1.msra.mxu0 0.0
        %669 = vmatprep.subr.mxu0 0.0
        %670 = vmatpush1.msra.mxu0 0.0
        %671 = vmatprep.subr.mxu0 0.0
        %672 = vmatpush1.msra.mxu0 0.0
        %673 = vmatprep.subr.mxu0 0.0
        %674 = vmatpush1.msra.mxu0 0.0
        %675 = vmatprep.subr.mxu0 0.0
        %676 = vmatpush1.msra.mxu0 0.0
        %677 = vmatprep.subr.mxu0 0.0
        %678 = vmatpush1.msra.mxu0 0.0
        %679 = vmatprep.subr.mxu0 0.0
        %680 = vmatpush1.msra.mxu0 0.0
        %681 = vmatprep.subr.mxu0 0.0
        %682 = vmatpush1.msra.mxu0 0.0
        %683 = vmatprep.subr.mxu0 0.0
        %684 = vmatpush1.msra.mxu0 0.0
        %685 = vmatprep.subr.mxu0 0.0
        %686 = vmatpush1.msra.mxu0 0.0
        %687 = vmatprep.subr.mxu0 0.0
        %688 = vmatpush1.msra.mxu0 0.0
        %689 = vmatprep.subr.mxu0 0.0
        %690 = vmatpush1.msra.mxu0 0.0
        %691 = vmatprep.mubr.f32.mxu0 0.0
        %692 = vmatmul.mubr.f32.gmra.mrb[0].mxu0 %v387
        %v693 = vpop.f32.mrb[0].mxu0
        %v694 = vadd.f32 0.0, %v693
        %v695 = vpop.f32.mrb[0].mxu0
        %696 = vdwg.mxu0
        %vm697 = vcmask 523264
        %v699 = vsel %vm697, %v614, 0
        %701 = vmatprep.subr.mxu0 0.0
        %702 = vmatpush1.msra.mxu0 %v615
        %703 = vmatprep.subr.mxu0 0.0
        %704 = vmatpush1.msra.mxu0 %v616
        %705 = vmatprep.subr.mxu0 0.0
        %706 = vmatpush1.msra.mxu0 %v617
        %707 = vmatprep.subr.mxu0 0.0
        %708 = vmatpush1.msra.mxu0 %v618
        %709 = vmatprep.subr.mxu0 0.0
        %710 = vmatpush1.msra.mxu0 %v619
        %711 = vmatprep.subr.mxu0 0.0
        %712 = vmatpush1.msra.mxu0 %v620
        %713 = vmatprep.subr.mxu0 0.0
        %714 = vmatpush1.msra.mxu0 %v621
        %715 = vmatprep.subr.mxu0 0.0
        %716 = vmatpush1.msra.mxu0 %v622
        %717 = vmatprep.subr.mxu0 0.0
        %718 = vmatpush1.msra.mxu0 0.0
        %719 = vmatprep.subr.mxu0 0.0
        %720 = vmatpush1.msra.mxu0 0.0
        %721 = vmatprep.subr.mxu0 0.0
        %722 = vmatpush1.msra.mxu0 0.0
        %723 = vmatprep.subr.mxu0 0.0
        %724 = vmatpush1.msra.mxu0 0.0
        %725 = vmatprep.subr.mxu0 0.0
        %726 = vmatpush1.msra.mxu0 0.0
        %727 = vmatprep.subr.mxu0 0.0
        %728 = vmatpush1.msra.mxu0 0.0
        %729 = vmatprep.subr.mxu0 0.0
        %730 = vmatpush1.msra.mxu0 0.0
        %731 = vmatprep.subr.mxu0 0.0
        %732 = vmatpush1.msra.mxu0 0.0
        %733 = vmatprep.subr.mxu0 0.0
        %734 = vmatpush1.msra.mxu0 0.0
        %735 = vmatprep.subr.mxu0 0.0
        %736 = vmatpush1.msra.mxu0 0.0
        %737 = vmatprep.subr.mxu0 0.0
        %738 = vmatpush1.msra.mxu0 0.0
        %739 = vmatprep.subr.mxu0 0.0
        %740 = vmatpush1.msra.mxu0 0.0
        %741 = vmatprep.subr.mxu0 0.0
        %742 = vmatpush1.msra.mxu0 0.0
        %743 = vmatprep.subr.mxu0 0.0
        %744 = vmatpush1.msra.mxu0 0.0
        %745 = vmatprep.subr.mxu0 0.0
        %746 = vmatpush1.msra.mxu0 0.0
        %747 = vmatprep.subr.mxu0 0.0
        %748 = vmatpush1.msra.mxu0 0.0
        %749 = vmatprep.subr.mxu0 0.0
        %750 = vmatpush1.msra.mxu0 0.0
        %751 = vmatprep.subr.mxu0 0.0
        %752 = vmatpush1.msra.mxu0 0.0
        %753 = vmatprep.subr.mxu0 0.0
        %754 = vmatpush1.msra.mxu0 0.0
        %755 = vmatprep.subr.mxu0 0.0
        %756 = vmatpush1.msra.mxu0 0.0
        %757 = vmatprep.subr.mxu0 0.0
        %758 = vmatpush1.msra.mxu0 0.0
        %759 = vmatprep.subr.mxu0 0.0
        %760 = vmatpush1.msra.mxu0 0.0
        %761 = vmatprep.subr.mxu0 0.0
        %762 = vmatpush1.msra.mxu0 0.0
        %763 = vmatprep.subr.mxu0 0.0
        %764 = vmatpush1.msra.mxu0 0.0
        %765 = vmatprep.mubr.f32.mxu0 0.0
        %766 = vmatmul.mubr.f32.gmra.mrb[0].mxu0 %v699
        %v767 = vpop.f32.mrb[0].mxu0
        %v768 = vadd.f32 %v694, %v767
        %v769 = vpop.f32.mrb[0].mxu0
        %770 = vdwg.mxu0
        %v771 = vld [vmem:[#allocation16] sm:$0x1]
        %v773 = vlaneseq
        %v774 = vshrl.u32 %v773, 7
        %v775 = vsub.s32 0, %v774
        %v776 = vrot.slane %v771, %v775
        %v778 = vadd.f32 %v768, %v776
        %v779 = vxor.u32 %v778, 2147483648
        %v780 = vmul.f32 %v779, 1.442695
        %v781 = vpow.pop %v780
        %v782 = vadd.f32 %v781, 1.0
        %v783 = vrcp.pop %v782
        %v784 = vmul.f32 1.0, %v783
        %v785 = vtanh.pop %v778
        %787 = vrot.lane.b32.xlu0 %v376, 32
        %v788 = vpop.permute.xlu0 %787
        %v790 = vmul.f32 %v784, %v788
        %792 = vrot.lane.b32.xlu0 %v785, 64
        %v793 = vpop.permute.xlu0 %792
        %v795 = vmul.f32 %v784, %v793
        %797 = vrot.lane.b32.xlu0 %v795, 32
        %v798 = vpop.permute.xlu0 %797
        %v800 = vadd.f32 %v790, %v798
        %v801 = vtanh.pop %v800
        %803 = vrot.lane.b32.xlu0 %v801, 64
        %v804 = vpop.permute.xlu0 %803
        %v806 = vmul.f32 %v784, %v804
        %808 = vrot.lane.b32.xlu0 %v806, 32
        %v809 = vpop.permute.xlu0 %808
        %vm811 = vcmask 254976
        %812 = vst.msk [vmem:[#allocation2] sm:$0x3] %vm811, %v809
        %814 = vrot.lane.b32.xlu0 %v800, 96
        %v815 = vpop.permute.xlu0 %814
        %817 = vst.msk [vmem:[#allocation3] sm:$0x3] %vm811, %v815
        %v818 = vsel %vm385, %v809, %v612
        %vm819 = vcmask 517120
        %820 = vst.msk [vmem:[%s337] sm:$0x3] %vm819, %v818
        %s821 = sand.u32 %s167, 1
        %s822 = scalar_lea.sflag [#allocation9], %s821
        %s823 = sand.u32 %s167, 1
        %s824 = smul.addr %s823, 2
        %s825 = scalar_lea.vmem [#allocation18], %s824
        // Predicated region
        $region81: #{tacotron2_forward.14} parent=43 // pred_check
          %p826 = pneg %p177
        $region82: #{tacotron2_forward.14} parent=43 // pred_check_branch
          %828 = sbr.rel (%p826) target = $region84
        $region83: #{tacotron2_forward.14} parent=43 // pred_region
          %s830 = ssub.s32 32, 32
          %831 = vsyncadd %s822, %s830
          %s832 = smul.addr %s28, 32
          %s833 = scalar_lea.hbm %s8, %s832
          %s835 = sshll.u32 %s825, 4
          %s836 = int_to_ptr.vmem [resolvable:$true] %s835
          %838 = dma.vmem_to_hbm [thread:$0]  %s836, 32, %s833, %s822
        $region84: #{tacotron2_forward.14} parent=43 // pred_fallthru
          _
      $region44: #{tacotron2_forward.14} parent=5 // pred_fallthru
        _
      %p839 = scmp.le.s32.totalorder 2, %s23
      // Predicated region
      $region85: #{tacotron2_forward.14} parent=5 // pred_check
        %p840 = pneg %p839
      $region86: #{tacotron2_forward.14} parent=5 // pred_check_branch
        %842 = sbr.rel (%p840) target = $region88
      $region87: #{tacotron2_forward.14} parent=5 // pred_region
        %s843 = ssub.s32 %s23, 2
        // Predicated region
        $region89: #{tacotron2_forward.14} parent=87 // pred_check
          %p844 = pneg %p183
        $region90: #{tacotron2_forward.14} parent=87 // pred_check_branch
          %846 = sbr.rel (%p844) target = $region92
        $region91: #{tacotron2_forward.14} parent=87 // pred_region
          %s847 = sand.u32 %s168, 1
          %s848 = scalar_lea.sflag [#allocation9], %s847
          %s849 = sand.u32 %s168, 1
          %s850 = smul.addr %s849, 2
          %s851 = scalar_lea.vmem [#allocation18], %s850
          %852 = dma.done %s848, 32
        $region92: #{tacotron2_forward.14} parent=87 // pred_fallthru
          _
      $region88: #{tacotron2_forward.14} parent=5 // pred_fallthru
        _
    $region6: #{tacotron2_forward.14} parent=1 // loop_footer
      %s27 = sadd.s32 1, %s23
    $region7: #{tacotron2_forward.14} parent=1 // loop_footer_branch
      %22 = sbr.rel target = $region3
    $region8: #{tacotron2_forward.14} parent=1 // loop_exit
      _
    %853 = vsyncpa [#allocation8], 1
    %s854 = scalar_lea.sflag [#allocation8], 1
    %855 = vsyncpa %s854, 1
    %856 = vsyncpa [#allocation11], 1
    %857 = vsyncpa [#allocation14], 1
    %858 = vsyncpa [#allocation17], 1
    %859 = vsyncpa [#allocation9], 1
    %s860 = scalar_lea.sflag [#allocation9], 1
    %861 = vsyncpa %s860, 1
  %862 = vsyncmov [#allocation6]
  %s863 = vpop.sfrf %862
  %p864 = scmp.eq.s32.totalorder %s863, 0
  %p865 = pneg %p864
  %867 = shalt.err (%p865)
  %s868 = scalar_lea.sflag [#allocation6], 1
  %869 = vsyncmov %s868
  %s870 = vpop.sfrf %869
  %p871 = scmp.eq.s32.totalorder %s870, 0
  %p872 = pneg %p871
  %874 = shalt.err (%p872)

// kernel: tacotron2_forward.16
$region0: #{tacotron2_forward.16}
  #allocation0 [shape = 'u32[]', space=smem, size = 0x4, offset = 0x4, fixed_abs, tag = 'smem constant byte address 0x4 - core index']
  #allocation1 [shape = 'u32[144,128]{1,0:T(1,128)}', space=vmem, size = 0x12000, scoped, tag = 'internal scratch']
  %s0 = inlined_call_operand.hbm [shape: f32[16,80], index: 0, kind: input, shape index: {}]
  %s1 = inlined_call_operand.hbm [shape: f32[80,32], index: 1, kind: input, shape index: {}]
  %s2 = inlined_call_operand.hbm [shape: f32[1,32], index: 2, kind: input, shape index: {}]
  %s3 = inlined_call_operand.hbm [shape: f32[16,32], index: 3, kind: output, shape index: {}]
  %s4 = sld [smem:[#allocation0]]
  $region34: #{tacotron2_forward.16} parent=0
    _
  %s6 = ssub.s32 1, %s4
  %s7 = scalar_select 0, %s6, %s4
  $region1: #{tacotron2_forward.16} parent=0
    #allocation2 [shape = 'u8[8192]{0}', space=vmem, size = 0x2000, scoped, tag = 'input window, operand 0, single buffered']
    #allocation3 [shape = 's32[1]{0}', space=sflag, size = 0x4, scoped, tag = 'scoped memory for tacotron2_forward.16']
    #allocation4 [shape = 's32[1]{0}', space=sflag, size = 0x4, scoped, tag = 'scoped memory for tacotron2_forward.16']
    #allocation5 [shape = 'u8[40960]{0}', space=vmem, size = 0xa000, scoped, tag = 'input window, operand 1, single buffered']
    #allocation6 [shape = 's32[1]{0}', space=sflag, size = 0x4, scoped, tag = 'scoped memory for tacotron2_forward.16']
    #allocation7 [shape = 'u8[512]{0}', space=vmem, size = 0x400, scoped, tag = 'input window, operand 2, single buffered']
    #allocation8 [shape = 'u8[8192]{0}', space=vmem, size = 0x2000, scoped, tag = 'output window, operand 0, single buffered']
    %8 = vsyncpa [#allocation3], 0
    %9 = vsyncpa [#allocation6], 0
    %10 = vsyncpa [#allocation4], 0
    // Predicated region
    $region2: #{tacotron2_forward.16} parent=1 // pred_check
      _
    $region3: #{tacotron2_forward.16} parent=1 // pred_check_branch
      %12 = sbr.rel (0) target = $region5
    $region4: #{tacotron2_forward.16} parent=1 // pred_region
      %s14 = ssub.s32 256, 256
      %15 = vsyncadd [#allocation3], %s14
      %s16 = sshll.u32 [#allocation2], 4
      %s17 = int_to_ptr.vmem [resolvable:$true] %s16
      %22 = dma.hbm_to_vmem [thread:$0]  %s0, 256, %s17, [#allocation3], 128, 128, 8
    $region5: #{tacotron2_forward.16} parent=1 // pred_fallthru
      _
    // Predicated region
    $region6: #{tacotron2_forward.16} parent=1 // pred_check
      _
    $region7: #{tacotron2_forward.16} parent=1 // pred_check_branch
      %24 = sbr.rel (0) target = $region9
    $region8: #{tacotron2_forward.16} parent=1 // pred_region
      %s26 = ssub.s32 1280, 1280
      %27 = vsyncadd [#allocation6], %s26
      %s28 = sshll.u32 [#allocation5], 4
      %s29 = int_to_ptr.vmem [resolvable:$true] %s28
      %34 = dma.hbm_to_vmem [thread:$0]  %s1, 1280, %s29, [#allocation6], 128, 128, 8
    $region9: #{tacotron2_forward.16} parent=1 // pred_fallthru
      _
    // Predicated region
    $region10: #{tacotron2_forward.16} parent=1 // pred_check
      _
    $region11: #{tacotron2_forward.16} parent=1 // pred_check_branch
      %36 = sbr.rel (0) target = $region13
    $region12: #{tacotron2_forward.16} parent=1 // pred_region
      %s38 = ssub.s32 16, 16
      %39 = vsyncadd [#allocation6], %s38
      %s41 = sshll.u32 [#allocation7], 4
      %s42 = int_to_ptr.vmem [resolvable:$true] %s41
      %44 = dma.hbm_to_vmem [thread:$0]  %s2, 16, %s42, [#allocation6]
    $region13: #{tacotron2_forward.16} parent=1 // pred_fallthru
      _
    // Predicated region
    $region14: #{tacotron2_forward.16} parent=1 // pred_check
      _
    $region15: #{tacotron2_forward.16} parent=1 // pred_check_branch
      %46 = sbr.rel (0) target = $region17
    $region16: #{tacotron2_forward.16} parent=1 // pred_region
      %47 = dma.done [#allocation3], 256
    $region17: #{tacotron2_forward.16} parent=1 // pred_fallthru
      _
    // Predicated region
    $region18: #{tacotron2_forward.16} parent=1 // pred_check
      _
    $region19: #{tacotron2_forward.16} parent=1 // pred_check_branch
      %49 = sbr.rel (0) target = $region21
    $region20: #{tacotron2_forward.16} parent=1 // pred_region
      %50 = dma.done [#allocation6], 1280
    $region21: #{tacotron2_forward.16} parent=1 // pred_fallthru
      _
    // Predicated region
    $region22: #{tacotron2_forward.16} parent=1 // pred_check
      _
    $region23: #{tacotron2_forward.16} parent=1 // pred_check_branch
      %52 = sbr.rel (0) target = $region25
    $region24: #{tacotron2_forward.16} parent=1 // pred_region
      %53 = dma.done [#allocation6], 16
    $region25: #{tacotron2_forward.16} parent=1 // pred_fallthru
      _
    %v54 = vld [vmem:[#allocation2] sm:$0xff]
    %v55 = vld [vmem:[#allocation2 + $0x8] sm:$0xff]
    %v56 = vld [vmem:[#allocation5] sm:$0xff]
    %v57 = vld [vmem:[#allocation5 + $0x8] sm:$0xff]
    %v58 = vld [vmem:[#allocation5 + $0x10] sm:$0xff]
    %v59 = vld [vmem:[#allocation5 + $0x18] sm:$0xff]
    %v60 = vld [vmem:[#allocation5 + $0x20] sm:$0xff]
    %v61 = vld [vmem:[#allocation5 + $0x28] sm:$0xff]
    %v62 = vld [vmem:[#allocation5 + $0x30] sm:$0xff]
    %v63 = vld [vmem:[#allocation5 + $0x38] sm:$0xff]
    %v64 = vld [vmem:[#allocation5 + $0x40] sm:$0xff]
    %v65 = vld [vmem:[#allocation5 + $0x48] sm:$0xff]
    %v66 = vld [vmem:[#allocation7] sm:$0x1]
    %v68 = vlaneseq
    %v69 = vshrl.u32 %v68, 7
    %v70 = vsub.s32 0, %v69
    %v71 = vrot.slane %v66, %v70
    %vm73 = vcmask 654336
    %v75 = vsel %vm73, %v54, 0
    %v78 = vsel %vm73, %v55, 0
    %80 = vmatprep.subr.mxu0 0.0
    %81 = vmatpush1.msra.mxu0 %v56
    %82 = vmatprep.subr.mxu0 0.0
    %83 = vmatpush1.msra.mxu0 %v57
    %84 = vmatprep.subr.mxu0 0.0
    %85 = vmatpush1.msra.mxu0 %v58
    %86 = vmatprep.subr.mxu0 0.0
    %87 = vmatpush1.msra.mxu0 %v59
    %88 = vmatprep.subr.mxu0 0.0
    %89 = vmatpush1.msra.mxu0 %v60
    %90 = vmatprep.subr.mxu0 0.0
    %91 = vmatpush1.msra.mxu0 %v61
    %92 = vmatprep.subr.mxu0 0.0
    %93 = vmatpush1.msra.mxu0 %v62
    %94 = vmatprep.subr.mxu0 0.0
    %95 = vmatpush1.msra.mxu0 %v63
    %96 = vmatprep.subr.mxu0 0.0
    %97 = vmatpush1.msra.mxu0 %v64
    %98 = vmatprep.subr.mxu0 0.0
    %99 = vmatpush1.msra.mxu0 %v65
    %100 = vmatprep.subr.mxu0 0.0
    %101 = vmatpush1.msra.mxu0 0.0
    %102 = vmatprep.subr.mxu0 0.0
    %103 = vmatpush1.msra.mxu0 0.0
    %104 = vmatprep.subr.mxu0 0.0
    %105 = vmatpush1.msra.mxu0 0.0
    %106 = vmatprep.subr.mxu0 0.0
    %107 = vmatpush1.msra.mxu0 0.0
    %108 = vmatprep.subr.mxu0 0.0
    %109 = vmatpush1.msra.mxu0 0.0
    %110 = vmatprep.subr.mxu0 0.0
    %111 = vmatpush1.msra.mxu0 0.0
    %112 = vmatprep.subr.mxu0 0.0
    %113 = vmatpush1.msra.mxu0 0.0
    %114 = vmatprep.subr.mxu0 0.0
    %115 = vmatpush1.msra.mxu0 0.0
    %116 = vmatprep.subr.mxu0 0.0
    %117 = vmatpush1.msra.mxu0 0.0
    %118 = vmatprep.subr.mxu0 0.0
    %119 = vmatpush1.msra.mxu0 0.0
    %120 = vmatprep.subr.mxu0 0.0
    %121 = vmatpush1.msra.mxu0 0.0
    %122 = vmatprep.subr.mxu0 0.0
    %123 = vmatpush1.msra.mxu0 0.0
    %124 = vmatprep.subr.mxu0 0.0
    %125 = vmatpush1.msra.mxu0 0.0
    %126 = vmatprep.subr.mxu0 0.0
    %127 = vmatpush1.msra.mxu0 0.0
    %128 = vmatprep.subr.mxu0 0.0
    %129 = vmatpush1.msra.mxu0 0.0
    %130 = vmatprep.subr.mxu0 0.0
    %131 = vmatpush1.msra.mxu0 0.0
    %132 = vmatprep.subr.mxu0 0.0
    %133 = vmatpush1.msra.mxu0 0.0
    %134 = vmatprep.subr.mxu0 0.0
    %135 = vmatpush1.msra.mxu0 0.0
    %136 = vmatprep.subr.mxu0 0.0
    %137 = vmatpush1.msra.mxu0 0.0
    %138 = vmatprep.subr.mxu0 0.0
    %139 = vmatpush1.msra.mxu0 0.0
    %140 = vmatprep.subr.mxu0 0.0
    %141 = vmatpush1.msra.mxu0 0.0
    %142 = vmatprep.subr.mxu0 0.0
    %143 = vmatpush1.msra.mxu0 0.0
    %144 = vmatprep.mubr.f32.mxu0 0.0
    %145 = vmatmul.mubr.f32.gmra.mrb[0].mxu0 %v75
    %v146 = vpop.f32.mrb[0].mxu0
    %v147 = vadd.f32 %v71, %v146
    %v148 = vpop.f32.mrb[0].mxu0
    %149 = vmatprep.mubr.f32.mxu0 0.0
    %150 = vmatmul.mubr.f32.gmra.mrb[0].mxu0 %v78
    %v151 = vpop.f32.mrb[0].mxu0
    %v152 = vadd.f32 %v71, %v151
    %v153 = vpop.f32.mrb[0].mxu0
    %154 = vdwg.mxu0
    %v155 = vtanh.pop %v147
    %v156 = vtanh.pop %v152
    %vm157 = vcmask 261120
    %158 = vst.msk [vmem:[#allocation8] sm:$0xff] %vm157, %v155
    %159 = vst.msk [vmem:[#allocation8 + $0x8] sm:$0xff] %vm157, %v156
    // Predicated region
    $region26: #{tacotron2_forward.16} parent=1 // pred_check
      _
    $region27: #{tacotron2_forward.16} parent=1 // pred_check_branch
      %161 = sbr.rel (0) target = $region29
    $region28: #{tacotron2_forward.16} parent=1 // pred_region
      %s163 = ssub.s32 256, 256
      %164 = vsyncadd [#allocation4], %s163
      %s165 = sshll.u32 [#allocation8], 4
      %s166 = int_to_ptr.vmem [resolvable:$true] %s165
      %171 = dma.vmem_to_hbm [thread:$0]  %s166, 256, %s3, [#allocation4], 128, 128, 8
    $region29: #{tacotron2_forward.16} parent=1 // pred_fallthru
      _
    // Predicated region
    $region30: #{tacotron2_forward.16} parent=1 // pred_check
      _
    $region31: #{tacotron2_forward.16} parent=1 // pred_check_branch
      %173 = sbr.rel (0) target = $region33
    $region32: #{tacotron2_forward.16} parent=1 // pred_region
      %174 = dma.done [#allocation4], 256
    $region33: #{tacotron2_forward.16} parent=1 // pred_fallthru
      _
    %175 = vsyncpa [#allocation3], 1
    %176 = vsyncpa [#allocation6], 1
    %177 = vsyncpa [#allocation4], 1

// kernel: tacotron2_forward.10
$region0: #{tacotron2_forward.10}
  #allocation0 [shape = 'u32[]', space=smem, size = 0x4, offset = 0x4, fixed_abs, tag = 'smem constant byte address 0x4 - core index']
  #allocation1 [shape = 'u32[144,128]{1,0:T(1,128)}', space=vmem, size = 0x12000, scoped, tag = 'internal scratch']
  #allocation2 [shape = 'f32[2,16]{1,0:T(2,128)}', space=vmem, size = 0x400, scoped, tag = 'scratch operand']
  #allocation3 [shape = 'f32[2,16]{1,0:T(2,128)}', space=vmem, size = 0x400, scoped, tag = 'scratch operand']
  %s0 = inlined_call_operand.hbm [shape: f32[2,8,2,32], index: 0, kind: input, shape index: {}]
  %s1 = inlined_call_operand.hbm [shape: f32[2,32,64], index: 1, kind: input, shape index: {}]
  %s2 = inlined_call_operand.hbm [shape: f32[2,16,64], index: 2, kind: input, shape index: {}]
  %s3 = inlined_call_operand.hbm [shape: f32[2,1,64], index: 3, kind: input, shape index: {}]
  %s4 = inlined_call_operand.hbm [shape: f32[2,8,2,16], index: 4, kind: output, shape index: {}]
  %s5 = sld [smem:[#allocation0]]
  $region69: #{tacotron2_forward.10} parent=0
    _
  %s7 = ssub.s32 1, %s5
  %s8 = scalar_select 0, %s7, %s5
  $region1: #{tacotron2_forward.10} parent=0
    #allocation4 [shape = 'u8[16384]{0}', space=vmem, size = 0x4000, scoped, tag = 'input window, operand 0']
    #allocation5 [shape = 's32[2]{0}', space=sflag, size = 0x8, scoped, tag = 'scoped memory for tacotron2_forward.10']
    #allocation6 [shape = 's32[2]{0}', space=sflag, size = 0x8, scoped, tag = 'scoped memory for tacotron2_forward.10']
    #allocation7 [shape = 'u8[32768]{0}', space=vmem, size = 0x8000, scoped, tag = 'input window, operand 1']
    #allocation8 [shape = 's32[2]{0}', space=sflag, size = 0x8, scoped, tag = 'scoped memory for tacotron2_forward.10']
    #allocation9 [shape = 'u8[16384]{0}', space=vmem, size = 0x4000, scoped, tag = 'input window, operand 2']
    #allocation10 [shape = 'u8[1024]{0}', space=vmem, size = 0x400, scoped, tag = 'input window, operand 3']
    #allocation11 [shape = 's32[2]{0}', space=sflag, size = 0x8, scoped, tag = 'scoped memory for tacotron2_forward.10']
    #allocation12 [shape = 'u8[16384]{0}', space=vmem, size = 0x4000, scoped, tag = 'output window, operand 0']
    %9 = vsyncpa [#allocation5], 0
    %s10 = scalar_lea.sflag [#allocation5], 1
    %11 = vsyncpa %s10, 0
    %12 = vsyncpa [#allocation8], 0
    %s13 = scalar_lea.sflag [#allocation8], 1
    %14 = vsyncpa %s13, 0
    %15 = vsyncpa [#allocation11], 0
    %s16 = scalar_lea.sflag [#allocation11], 1
    %17 = vsyncpa %s16, 0
    %18 = vsyncpa [#allocation6], 0
    %s19 = scalar_lea.sflag [#allocation6], 1
    %20 = vsyncpa %s19, 0
    loop: start=0, step=1, limit=4
    $region2: #{tacotron2_forward.10} parent=1 // loop_pre_header
      _
    $region3: #{tacotron2_forward.10} parent=1 // loop_header
      %s22 = sphi 0, %s26
      %p23 = scmp.ge.s32.totalorder %s22, 4
      %s29 = sphi 0, %s41
      %s30 = sphi 0, %s37
      %s31 = sphi 0, %s29
      %s32 = sphi 0, %s30
      %s33 = sphi 0, %s31
      %s34 = sphi 0, %s32
      %s46 = sphi 0, %s48
      %s49 = sphi 0, %s46
      %s50 = sphi 0, %s49
      %s66 = sphi 0, %s50
      %s72 = sphi 0, %s74
      %s75 = sphi 0, %s72
      %s76 = sphi 0, %s75
      %s92 = sphi 0, %s76
      %s98 = sphi 0, %s100
      %s101 = sphi 0, %s98
      %s102 = sphi 0, %s101
      %s118 = sphi 0, %s102
      %s124 = sphi 0, %s126
      %s127 = sphi 0, %s124
      %s128 = sphi 0, %s127
      %s144 = sphi 0, %s128
      %s152 = sphi 0, %s154
      %s155 = sphi 0, %s152
      %s156 = sphi 0, %s155
      %s172 = sphi 0, %s156
    $region4: #{tacotron2_forward.10} parent=1 // loop_header_branch
      %25 = sbr.rel (%p23) target = $region8
    $region5: #{tacotron2_forward.10} parent=1 // loop_body
      %s27 = ssub.s32 %s22, 1
      %s28 = ssub.s32 %s22, 2
      %s35 = sadd.s32 1, %s30
      %p36 = scmp.ge.s32.totalorder %s35, 1
      %s37 = scalar_select %p36, 0, %s35
      %s38 = sadd.s32 1, %s29
      %s39 = scalar_select %p36, %s38, %s29
      %p40 = scmp.ge.s32.totalorder %s39, 2
      %s41 = scalar_select %p40, 0, %s39
      %s42 = ssub.s32 %s29, %s41
      %s43 = ssub.s32 %s30, %s37
      %s44 = sor.u32 %s42, %s43
      %p45 = scmp.eq.s32.totalorder %s44, 0
      %s47 = sadd.s32 %s46, 1
      %s48 = scalar_select %p45, %s46, %s47
      %p51 = pneg %p45
      %p52 = scmp.eq.s32.totalorder %s22, 1
      %p53 = por %p51, %p52
      %p54 = scmp.ne.s32.totalorder %s46, %s49
      %p55 = scmp.eq.s32.totalorder %s22, 0
      %p56 = por %p54, %p55
      %p57 = scmp.ne.s32.totalorder %s46, %s49
      %p58 = scmp.eq.s32.totalorder %s27, 1
      %p59 = por %p57, %p58
      %p60 = scmp.ne.s32.totalorder %s49, %s50
      %p61 = scmp.eq.s32.totalorder %s27, 0
      %p62 = por %p60, %p61
      %p63 = scmp.ne.s32.totalorder %s49, %s50
      %p64 = scmp.eq.s32.totalorder %s28, 1
      %p65 = por %p63, %p64
      %p67 = scmp.ne.s32.totalorder %s50, %s66
      %p68 = scmp.eq.s32.totalorder %s28, 0
      %p69 = por %p67, %p68
      %s70 = ssub.s32 %s29, %s41
      %p71 = scmp.eq.s32.totalorder %s70, 0
      %s73 = sadd.s32 %s72, 1
      %s74 = scalar_select %p71, %s72, %s73
      %p77 = pneg %p71
      %p78 = scmp.eq.s32.totalorder %s22, 1
      %p79 = por %p77, %p78
      %p80 = scmp.ne.s32.totalorder %s72, %s75
      %p81 = scmp.eq.s32.totalorder %s22, 0
      %p82 = por %p80, %p81
      %p83 = scmp.ne.s32.totalorder %s72, %s75
      %p84 = scmp.eq.s32.totalorder %s27, 1
      %p85 = por %p83, %p84
      %p86 = scmp.ne.s32.totalorder %s75, %s76
      %p87 = scmp.eq.s32.totalorder %s27, 0
      %p88 = por %p86, %p87
      %p89 = scmp.ne.s32.totalorder %s75, %s76
      %p90 = scmp.eq.s32.totalorder %s28, 1
      %p91 = por %p89, %p90
      %p93 = scmp.ne.s32.totalorder %s76, %s92
      %p94 = scmp.eq.s32.totalorder %s28, 0
      %p95 = por %p93, %p94
      %s96 = ssub.s32 %s29, %s41
      %p97 = scmp.eq.s32.totalorder %s96, 0
      %s99 = sadd.s32 %s98, 1
      %s100 = scalar_select %p97, %s98, %s99
      %p103 = pneg %p97
      %p104 = scmp.eq.s32.totalorder %s22, 1
      %p105 = por %p103, %p104
      %p106 = scmp.ne.s32.totalorder %s98, %s101
      %p107 = scmp.eq.s32.totalorder %s22, 0
      %p108 = por %p106, %p107
      %p109 = scmp.ne.s32.totalorder %s98, %s101
      %p110 = scmp.eq.s32.totalorder %s27, 1
      %p111 = por %p109, %p110
      %p112 = scmp.ne.s32.totalorder %s101, %s102
      %p113 = scmp.eq.s32.totalorder %s27, 0
      %p114 = por %p112, %p113
      %p115 = scmp.ne.s32.totalorder %s101, %s102
      %p116 = scmp.eq.s32.totalorder %s28, 1
      %p117 = por %p115, %p116
      %p119 = scmp.ne.s32.totalorder %s102, %s118
      %p120 = scmp.eq.s32.totalorder %s28, 0
      %p121 = por %p119, %p120
      %s122 = ssub.s32 %s29, %s41
      %p123 = scmp.eq.s32.totalorder %s122, 0
      %s125 = sadd.s32 %s124, 1
      %s126 = scalar_select %p123, %s124, %s125
      %p129 = pneg %p123
      %p130 = scmp.eq.s32.totalorder %s22, 1
      %p131 = por %p129, %p130
      %p132 = scmp.ne.s32.totalorder %s124, %s127
      %p133 = scmp.eq.s32.totalorder %s22, 0
      %p134 = por %p132, %p133
      %p135 = scmp.ne.s32.totalorder %s124, %s127
      %p136 = scmp.eq.s32.totalorder %s27, 1
      %p137 = por %p135, %p136
      %p138 = scmp.ne.s32.totalorder %s127, %s128
      %p139 = scmp.eq.s32.totalorder %s27, 0
      %p140 = por %p138, %p139
      %p141 = scmp.ne.s32.totalorder %s127, %s128
      %p142 = scmp.eq.s32.totalorder %s28, 1
      %p143 = por %p141, %p142
      %p145 = scmp.ne.s32.totalorder %s128, %s144
      %p146 = scmp.eq.s32.totalorder %s28, 0
      %p147 = por %p145, %p146
      %s148 = ssub.s32 %s29, %s41
      %s149 = ssub.s32 %s30, %s37
      %s150 = sor.u32 %s148, %s149
      %p151 = scmp.eq.s32.totalorder %s150, 0
      %s153 = sadd.s32 %s152, 1
      %s154 = scalar_select %p151, %s152, %s153
      %p157 = pneg %p151
      %p158 = scmp.eq.s32.totalorder %s22, 1
      %p159 = por %p157, %p158
      %p160 = scmp.ne.s32.totalorder %s152, %s155
      %p161 = scmp.eq.s32.totalorder %s22, 0
      %p162 = por %p160, %p161
      %p163 = scmp.ne.s32.totalorder %s152, %s155
      %p164 = scmp.eq.s32.totalorder %s27, 1
      %p165 = por %p163, %p164
      %p166 = scmp.ne.s32.totalorder %s155, %s156
      %p167 = scmp.eq.s32.totalorder %s27, 0
      %p168 = por %p166, %p167
      %p169 = scmp.ne.s32.totalorder %s155, %s156
      %p170 = scmp.eq.s32.totalorder %s28, 1
      %p171 = por %p169, %p170
      %p173 = scmp.ne.s32.totalorder %s156, %s172
      %p174 = scmp.eq.s32.totalorder %s28, 0
      %p175 = por %p173, %p174
      %p176 = scmp.le.s32.totalorder 1, %s22
      %p177 = scmp.lt.s32.totalorder %s22, 3
      %p178 = pnand %p176, %p177
      %p179 = pneg %p178
      // Predicated region
      $region9: #{tacotron2_forward.10} parent=5 // pred_check
        _
      $region10: #{tacotron2_forward.10} parent=5 // pred_check_branch
        %181 = sbr.rel (%p178) target = $region12
      $region11: #{tacotron2_forward.10} parent=5 // pred_region
        %s182 = ssub.s32 %s22, 1
      $region12: #{tacotron2_forward.10} parent=5 // pred_fallthru
        _
      %p183 = scmp.lt.s32.totalorder %s22, 2
      // Predicated region
      $region13: #{tacotron2_forward.10} parent=5 // pred_check
        %p184 = pneg %p183
      $region14: #{tacotron2_forward.10} parent=5 // pred_check_branch
        %186 = sbr.rel (%p184) target = $region16
      $region15: #{tacotron2_forward.10} parent=5 // pred_region
        // Predicated region
        $region17: #{tacotron2_forward.10} parent=15 // pred_check
          %p187 = pneg %p56
        $region18: #{tacotron2_forward.10} parent=15 // pred_check_branch
          %189 = sbr.rel (%p187) target = $region20
        $region19: #{tacotron2_forward.10} parent=15 // pred_region
          %s190 = sand.u32 %s46, 1
          %s191 = scalar_lea.sflag [#allocation5], %s190
          %s192 = sand.u32 %s46, 1
          %s193 = smul.addr %s192, 16
          %s194 = scalar_lea.vmem [#allocation4], %s193
          %s195 = smul.u32 8, %s30
          %s197 = ssub.s32 256, 256
          %198 = vsyncadd %s191, %s197
          %s199 = smul.addr %s29, 8
          %s200 = sadd.s32 %s195, %s199
          %s201 = smul.addr %s200, 32
          %s202 = scalar_lea.hbm %s0, %s201
          %s203 = sshll.u32 %s194, 4
          %s204 = int_to_ptr.vmem [resolvable:$true] %s203
          %209 = dma.hbm_to_vmem [thread:$0]  %s202, 256, %s204, %s191, 32, 32, 2
        $region20: #{tacotron2_forward.10} parent=15 // pred_fallthru
          _
        // Predicated region
        $region21: #{tacotron2_forward.10} parent=15 // pred_check
          %p210 = pneg %p82
        $region22: #{tacotron2_forward.10} parent=15 // pred_check_branch
          %212 = sbr.rel (%p210) target = $region24
        $region23: #{tacotron2_forward.10} parent=15 // pred_region
          %s213 = sand.u32 %s22, 1
          %s214 = scalar_lea.sflag [#allocation8], %s213
          %s215 = sand.u32 %s72, 1
          %s216 = smul.addr %s215, 32
          %s217 = scalar_lea.vmem [#allocation7], %s216
          %s219 = ssub.s32 512, 512
          %220 = vsyncadd %s214, %s219
          %s221 = smul.addr %s29, 4
          %s222 = smul.addr %s221, 128
          %s223 = scalar_lea.hbm %s1, %s222
          %s224 = sshll.u32 %s217, 4
          %s225 = int_to_ptr.vmem [resolvable:$true] %s224
          %230 = dma.hbm_to_vmem [thread:$0]  %s223, 512, %s225, %s214, 128, 128, 8
        $region24: #{tacotron2_forward.10} parent=15 // pred_fallthru
          _
        // Predicated region
        $region25: #{tacotron2_forward.10} parent=15 // pred_check
          %p231 = pneg %p108
        $region26: #{tacotron2_forward.10} parent=15 // pred_check_branch
          %233 = sbr.rel (%p231) target = $region28
        $region27: #{tacotron2_forward.10} parent=15 // pred_region
          %s234 = sand.u32 %s22, 1
          %s235 = scalar_lea.sflag [#allocation8], %s234
          %s236 = sand.u32 %s98, 1
          %s237 = smul.addr %s236, 16
          %s238 = scalar_lea.vmem [#allocation9], %s237
          %s240 = ssub.s32 256, 256
          %241 = vsyncadd %s235, %s240
          %s242 = smul.addr %s29, 2
          %s243 = smul.addr %s242, 128
          %s244 = scalar_lea.hbm %s2, %s243
          %s245 = sshll.u32 %s238, 4
          %s246 = int_to_ptr.vmem [resolvable:$true] %s245
          %251 = dma.hbm_to_vmem [thread:$0]  %s244, 256, %s246, %s235, 128, 128, 8
        $region28: #{tacotron2_forward.10} parent=15 // pred_fallthru
          _
        // Predicated region
        $region29: #{tacotron2_forward.10} parent=15 // pred_check
          %p252 = pneg %p134
        $region30: #{tacotron2_forward.10} parent=15 // pred_check_branch
          %254 = sbr.rel (%p252) target = $region32
        $region31: #{tacotron2_forward.10} parent=15 // pred_region
          %s255 = sand.u32 %s124, 1
          %s256 = scalar_lea.sflag [#allocation11], %s255
          %s257 = sand.u32 %s124, 1
          %s258 = scalar_lea.vmem [#allocation10], %s257
          %s260 = ssub.s32 16, 16
          %261 = vsyncadd %s256, %s260
          %s262 = smul.addr %s29, 16
          %s263 = scalar_lea.hbm %s3, %s262
          %s265 = sshll.u32 %s258, 4
          %s266 = int_to_ptr.vmem [resolvable:$true] %s265
          %268 = dma.hbm_to_vmem [thread:$0]  %s263, 16, %s266, %s256
        $region32: #{tacotron2_forward.10} parent=15 // pred_fallthru
          _
      $region16: #{tacotron2_forward.10} parent=5 // pred_fallthru
        _
      %p269 = scmp.le.s32.totalorder 1, %s22
      %p270 = scmp.lt.s32.totalorder %s22, 3
      %p271 = pnand %p269, %p270
      %p272 = pneg %p271
      // Predicated region
      $region33: #{tacotron2_forward.10} parent=5 // pred_check
        _
      $region34: #{tacotron2_forward.10} parent=5 // pred_check_branch
        %274 = sbr.rel (%p271) target = $region36
      $region35: #{tacotron2_forward.10} parent=5 // pred_region
        %s275 = ssub.s32 %s22, 1
        %s276 = sand.u32 %s49, 1
        %s277 = scalar_lea.sflag [#allocation5], %s276
        %s278 = sand.u32 %s49, 1
        %s279 = smul.addr %s278, 16
        %s280 = scalar_lea.vmem [#allocation4], %s279
        // Predicated region
        $region37: #{tacotron2_forward.10} parent=35 // pred_check
          %p281 = pneg %p62
        $region38: #{tacotron2_forward.10} parent=35 // pred_check_branch
          %283 = sbr.rel (%p281) target = $region40
        $region39: #{tacotron2_forward.10} parent=35 // pred_region
          %284 = dma.done %s277, 256
        $region40: #{tacotron2_forward.10} parent=35 // pred_fallthru
          _
        %s285 = sand.u32 %s27, 1
        %s286 = scalar_lea.sflag [#allocation8], %s285
        %s287 = sand.u32 %s75, 1
        %s288 = smul.addr %s287, 32
        %s289 = scalar_lea.vmem [#allocation7], %s288
        // Predicated region
        $region41: #{tacotron2_forward.10} parent=35 // pred_check
          %p290 = pneg %p88
        $region42: #{tacotron2_forward.10} parent=35 // pred_check_branch
          %292 = sbr.rel (%p290) target = $region44
        $region43: #{tacotron2_forward.10} parent=35 // pred_region
          %293 = dma.done %s286, 512
        $region44: #{tacotron2_forward.10} parent=35 // pred_fallthru
          _
        %s294 = sand.u32 %s27, 1
        %s295 = scalar_lea.sflag [#allocation8], %s294
        %s296 = sand.u32 %s101, 1
        %s297 = smul.addr %s296, 16
        %s298 = scalar_lea.vmem [#allocation9], %s297
        // Predicated region
        $region45: #{tacotron2_forward.10} parent=35 // pred_check
          %p299 = pneg %p114
        $region46: #{tacotron2_forward.10} parent=35 // pred_check_branch
          %301 = sbr.rel (%p299) target = $region48
        $region47: #{tacotron2_forward.10} parent=35 // pred_region
          %302 = dma.done %s295, 256
        $region48: #{tacotron2_forward.10} parent=35 // pred_fallthru
          _
        %s303 = sand.u32 %s127, 1
        %s304 = scalar_lea.sflag [#allocation11], %s303
        %s305 = sand.u32 %s127, 1
        %s306 = scalar_lea.vmem [#allocation10], %s305
        // Predicated region
        $region49: #{tacotron2_forward.10} parent=35 // pred_check
          %p307 = pneg %p140
        $region50: #{tacotron2_forward.10} parent=35 // pred_check_branch
          %309 = sbr.rel (%p307) target = $region52
        $region51: #{tacotron2_forward.10} parent=35 // pred_region
          %310 = dma.done %s304, 16
        $region52: #{tacotron2_forward.10} parent=35 // pred_fallthru
          _
        %s311 = sand.u32 %s49, 1
        %s312 = scalar_lea.sflag [#allocation5], %s311
        %s313 = sand.u32 %s49, 1
        %s314 = smul.addr %s313, 16
        %s315 = scalar_lea.vmem [#allocation4], %s314
        %p316 = pneg %p62
        %p317 = pneg %p59
        %s318 = sand.u32 %s27, 1
        %s319 = scalar_lea.sflag [#allocation8], %s318
        %s320 = sand.u32 %s75, 1
        %s321 = smul.addr %s320, 32
        %s322 = scalar_lea.vmem [#allocation7], %s321
        %p323 = pneg %p88
        %p324 = pneg %p85
        %s325 = sand.u32 %s27, 1
        %s326 = scalar_lea.sflag [#allocation8], %s325
        %s327 = sand.u32 %s101, 1
        %s328 = smul.addr %s327, 16
        %s329 = scalar_lea.vmem [#allocation9], %s328
        %p330 = pneg %p114
        %p331 = pneg %p111
        %s332 = sand.u32 %s127, 1
        %s333 = scalar_lea.sflag [#allocation11], %s332
        %s334 = sand.u32 %s127, 1
        %s335 = scalar_lea.vmem [#allocation10], %s334
        %p336 = pneg %p140
        %p337 = pneg %p137
        %p338 = pneg %p168
        %p339 = pneg %p165
        %s340 = sand.u32 %s155, 1
        %s341 = scalar_lea.sflag [#allocation6], %s340
        %s342 = sand.u32 %s155, 1
        %s343 = smul.addr %s342, 16
        %s344 = scalar_lea.vmem [#allocation12], %s343
        %s345 = smul.u32 8, %s32
        %s346 = smul.u32 8, %s32
        %p347 = scmp.eq.s32.totalorder %s32, 0
        // Predicated region
        $region53: #{tacotron2_forward.10} parent=35 // pred_check
          %p348 = pneg %p347
        $region54: #{tacotron2_forward.10} parent=35 // pred_check_branch
          %350 = sbr.rel (%p348) target = $region56
        $region55: #{tacotron2_forward.10} parent=35 // pred_region
          %vm351 = vcmask 123904
          %352 = vst.msk [vmem:[#allocation2] sm:$0x3] %vm351, 0.0
          %353 = vst.msk [vmem:[#allocation3] sm:$0x3] %vm351, 0.0
        $region56: #{tacotron2_forward.10} parent=35 // pred_fallthru
          _
        %v354 = vld [vmem:[%s289] sm:$0xff]
        %v355 = vld [vmem:[%s289 + $0x8] sm:$0xff]
        %v356 = vld [vmem:[%s289 + $0x10] sm:$0xff]
        %v357 = vld [vmem:[%s289 + $0x18] sm:$0xff]
        %v358 = vld [vmem:[%s298] sm:$0xff]
        %v359 = vld [vmem:[%s298 + $0x8] sm:$0xff]
        %v360 = vld [vmem:[%s306] sm:$0x1]
        %v361 = vld [vmem:[#allocation2] sm:$0x3]
        %v362 = vld [vmem:[#allocation3] sm:$0x3]
        %v363 = vld [vmem:[%s280] sm:$0x3]
        %vm364 = vcmask 130048
        %v366 = vsel %vm364, %v361, 0
        %368 = vmatprep.subr.mxu0 0.0
        %369 = vmatpush1.msra.mxu0 %v358
        %370 = vmatprep.subr.mxu0 0.0
        %371 = vmatpush1.msra.mxu0 %v359
        %372 = vmatprep.subr.mxu0 0.0
        %373 = vmatpush1.msra.mxu0 0.0
        %374 = vmatprep.subr.mxu0 0.0
        %375 = vmatpush1.msra.mxu0 0.0
        %376 = vmatprep.subr.mxu0 0.0
        %377 = vmatpush1.msra.mxu0 0.0
        %378 = vmatprep.subr.mxu0 0.0
        %379 = vmatpush1.msra.mxu0 0.0
        %380 = vmatprep.subr.mxu0 0.0
        %381 = vmatpush1.msra.mxu0 0.0
        %382 = vmatprep.subr.mxu0 0.0
        %383 = vmatpush1.msra.mxu0 0.0
        %384 = vmatprep.subr.mxu0 0.0
        %385 = vmatpush1.msra.mxu0 0.0
        %386 = vmatprep.subr.mxu0 0.0
        %387 = vmatpush1.msra.mxu0 0.0
        %388 = vmatprep.subr.mxu0 0.0
        %389 = vmatpush1.msra.mxu0 0.0
        %390 = vmatprep.subr.mxu0 0.0
        %391 = vmatpush1.msra.mxu0 0.0
        %392 = vmatprep.subr.mxu0 0.0
        %393 = vmatpush1.msra.mxu0 0.0
        %394 = vmatprep.subr.mxu0 0.0
        %395 = vmatpush1.msra.mxu0 0.0
        %396 = vmatprep.subr.mxu0 0.0
        %397 = vmatpush1.msra.mxu0 0.0
        %398 = vmatprep.subr.mxu0 0.0
        %399 = vmatpush1.msra.mxu0 0.0
        %400 = vmatprep.subr.mxu0 0.0
        %401 = vmatpush1.msra.mxu0 0.0
        %402 = vmatprep.subr.mxu0 0.0
        %403 = vmatpush1.msra.mxu0 0.0
        %404 = vmatprep.subr.mxu0 0.0
        %405 = vmatpush1.msra.mxu0 0.0
        %406 = vmatprep.subr.mxu0 0.0
        %407 = vmatpush1.msra.mxu0 0.0
        %408 = vmatprep.subr.mxu0 0.0
        %409 = vmatpush1.msra.mxu0 0.0
        %410 = vmatprep.subr.mxu0 0.0
        %411 = vmatpush1.msra.mxu0 0.0
        %412 = vmatprep.subr.mxu0 0.0
        %413 = vmatpush1.msra.mxu0 0.0
        %414 = vmatprep.subr.mxu0 0.0
        %415 = vmatpush1.msra.mxu0 0.0
        %416 = vmatprep.subr.mxu0 0.0
        %417 = vmatpush1.msra.mxu0 0.0
        %418 = vmatprep.subr.mxu0 0.0
        %419 = vmatpush1.msra.mxu0 0.0
        %420 = vmatprep.subr.mxu0 0.0
        %421 = vmatpush1.msra.mxu0 0.0
        %422 = vmatprep.subr.mxu0 0.0
        %423 = vmatpush1.msra.mxu0 0.0
        %424 = vmatprep.subr.mxu0 0.0
        %425 = vmatpush1.msra.mxu0 0.0
        %426 = vmatprep.subr.mxu0 0.0
        %427 = vmatpush1.msra.mxu0 0.0
        %428 = vmatprep.subr.mxu0 0.0
        %429 = vmatpush1.msra.mxu0 0.0
        %430 = vmatprep.subr.mxu0 0.0
        %431 = vmatpush1.msra.mxu0 0.0
        %432 = vmatprep.mubr.f32.mxu0 0.0
        %433 = vmatmul.mubr.f32.gmra.mrb[0].mxu0 %v366
        %v434 = vpop.f32.mrb[0].mxu0
        %v435 = vadd.f32 0.0, %v434
        %v436 = vpop.f32.mrb[0].mxu0
        %437 = vdwg.mxu0
        %vm438 = vcmask 261120
        %v440 = vsel %vm438, %v363, 0
        %442 = vmatprep.subr.mxu0 0.0
        %443 = vmatpush1.msra.mxu0 %v354
        %444 = vmatprep.subr.mxu0 0.0
        %445 = vmatpush1.msra.mxu0 %v355
        %446 = vmatprep.subr.mxu0 0.0
        %447 = vmatpush1.msra.mxu0 %v356
        %448 = vmatprep.subr.mxu0 0.0
        %449 = vmatpush1.msra.mxu0 %v357
        %450 = vmatprep.subr.mxu0 0.0
        %451 = vmatpush1.msra.mxu0 0.0
        %452 = vmatprep.subr.mxu0 0.0
        %453 = vmatpush1.msra.mxu0 0.0
        %454 = vmatprep.subr.mxu0 0.0
        %455 = vmatpush1.msra.mxu0 0.0
        %456 = vmatprep.subr.mxu0 0.0
        %457 = vmatpush1.msra.mxu0 0.0
        %458 = vmatprep.subr.mxu0 0.0
        %459 = vmatpush1.msra.mxu0 0.0
        %460 = vmatprep.subr.mxu0 0.0
        %461 = vmatpush1.msra.mxu0 0.0
        %462 = vmatprep.subr.mxu0 0.0
        %463 = vmatpush1.msra.mxu0 0.0
        %464 = vmatprep.subr.mxu0 0.0
        %465 = vmatpush1.msra.mxu0 0.0
        %466 = vmatprep.subr.mxu0 0.0
        %467 = vmatpush1.msra.mxu0 0.0
        %468 = vmatprep.subr.mxu0 0.0
        %469 = vmatpush1.msra.mxu0 0.0
        %470 = vmatprep.subr.mxu0 0.0
        %471 = vmatpush1.msra.mxu0 0.0
        %472 = vmatprep.subr.mxu0 0.0
        %473 = vmatpush1.msra.mxu0 0.0
        %474 = vmatprep.subr.mxu0 0.0
        %475 = vmatpush1.msra.mxu0 0.0
        %476 = vmatprep.subr.mxu0 0.0
        %477 = vmatpush1.msra.mxu0 0.0
        %478 = vmatprep.subr.mxu0 0.0
        %479 = vmatpush1.msra.mxu0 0.0
        %480 = vmatprep.subr.mxu0 0.0
        %481 = vmatpush1.msra.mxu0 0.0
        %482 = vmatprep.subr.mxu0 0.0
        %483 = vmatpush1.msra.mxu0 0.0
        %484 = vmatprep.subr.mxu0 0.0
        %485 = vmatpush1.msra.mxu0 0.0
        %486 = vmatprep.subr.mxu0 0.0
        %487 = vmatpush1.msra.mxu0 0.0
        %488 = vmatprep.subr.mxu0 0.0
        %489 = vmatpush1.msra.mxu0 0.0
        %490 = vmatprep.subr.mxu0 0.0
        %491 = vmatpush1.msra.mxu0 0.0
        %492 = vmatprep.subr.mxu0 0.0
        %493 = vmatpush1.msra.mxu0 0.0
        %494 = vmatprep.subr.mxu0 0.0
        %495 = vmatpush1.msra.mxu0 0.0
        %496 = vmatprep.subr.mxu0 0.0
        %497 = vmatpush1.msra.mxu0 0.0
        %498 = vmatprep.subr.mxu0 0.0
        %499 = vmatpush1.msra.mxu0 0.0
        %500 = vmatprep.subr.mxu0 0.0
        %501 = vmatpush1.msra.mxu0 0.0
        %502 = vmatprep.subr.mxu0 0.0
        %503 = vmatpush1.msra.mxu0 0.0
        %504 = vmatprep.subr.mxu0 0.0
        %505 = vmatpush1.msra.mxu0 0.0
        %506 = vmatprep.mubr.f32.mxu0 0.0
        %507 = vmatmul.mubr.f32.gmra.mrb[0].mxu0 %v440
        %v508 = vpop.f32.mrb[0].mxu0
        %v509 = vadd.f32 %v435, %v508
        %v510 = vpop.f32.mrb[0].mxu0
        %511 = vdwg.mxu0
        %v513 = vlaneseq
        %v514 = vshrl.u32 %v513, 7
        %v515 = vsub.s32 0, %v514
        %v516 = vrot.slane %v360, %v515
        %v518 = vadd.f32 %v509, %v516
        %v519 = vxor.u32 %v518, 2147483648
        %v520 = vmul.f32 %v519, 1.442695
        %v521 = vpow.pop %v520
        %v522 = vadd.f32 %v521, 1.0
        %v523 = vrcp.pop %v522
        %v524 = vmul.f32 1.0, %v523
        %v525 = vtanh.pop %v518
        %527 = vrot.lane.b32.xlu0 %v362, 16
        %v528 = vpop.permute.xlu0 %527
        %v530 = vmul.f32 %v524, %v528
        %532 = vrot.lane.b32.xlu0 %v525, 96
        %v533 = vpop.permute.xlu0 %532
        %v535 = vmul.f32 %v524, %v533
        %537 = vrot.lane.b32.xlu0 %v535, 16
        %v538 = vpop.permute.xlu0 %537
        %v540 = vadd.f32 %v530, %v538
        %v541 = vtanh.pop %v540
        %543 = vrot.lane.b32.xlu0 %v541, 32
        %v544 = vpop.permute.xlu0 %543
        %v546 = vmul.f32 %v524, %v544
        %548 = vrot.lane.b32.xlu0 %v546, 80
        %v549 = vpop.permute.xlu0 %548
        %vm551 = vcmask 123904
        %552 = vst.msk [vmem:[#allocation2] sm:$0x3] %vm551, %v549
        %554 = vrot.lane.b32.xlu0 %v540, 112
        %v555 = vpop.permute.xlu0 %554
        %557 = vst.msk [vmem:[#allocation3] sm:$0x3] %vm551, %v555
        %558 = vst.msk [vmem:[%s344] sm:$0x3] %vm551, %v549
        %v559 = vld [vmem:[#allocation2] sm:$0x3]
        %v560 = vld [vmem:[#allocation3] sm:$0x3]
        %s561 = scalar_lea.vmem %s280, 2 [#allocation4]
        %v562 = vld [vmem:[%s561] sm:$0x3]
        %v564 = vsel %vm364, %v559, 0
        %566 = vmatprep.subr.mxu0 0.0
        %567 = vmatpush1.msra.mxu0 %v358
        %568 = vmatprep.subr.mxu0 0.0
        %569 = vmatpush1.msra.mxu0 %v359
        %570 = vmatprep.subr.mxu0 0.0
        %571 = vmatpush1.msra.mxu0 0.0
        %572 = vmatprep.subr.mxu0 0.0
        %573 = vmatpush1.msra.mxu0 0.0
        %574 = vmatprep.subr.mxu0 0.0
        %575 = vmatpush1.msra.mxu0 0.0
        %576 = vmatprep.subr.mxu0 0.0
        %577 = vmatpush1.msra.mxu0 0.0
        %578 = vmatprep.subr.mxu0 0.0
        %579 = vmatpush1.msra.mxu0 0.0
        %580 = vmatprep.subr.mxu0 0.0
        %581 = vmatpush1.msra.mxu0 0.0
        %582 = vmatprep.subr.mxu0 0.0
        %583 = vmatpush1.msra.mxu0 0.0
        %584 = vmatprep.subr.mxu0 0.0
        %585 = vmatpush1.msra.mxu0 0.0
        %586 = vmatprep.subr.mxu0 0.0
        %587 = vmatpush1.msra.mxu0 0.0
        %588 = vmatprep.subr.mxu0 0.0
        %589 = vmatpush1.msra.mxu0 0.0
        %590 = vmatprep.subr.mxu0 0.0
        %591 = vmatpush1.msra.mxu0 0.0
        %592 = vmatprep.subr.mxu0 0.0
        %593 = vmatpush1.msra.mxu0 0.0
        %594 = vmatprep.subr.mxu0 0.0
        %595 = vmatpush1.msra.mxu0 0.0
        %596 = vmatprep.subr.mxu0 0.0
        %597 = vmatpush1.msra.mxu0 0.0
        %598 = vmatprep.subr.mxu0 0.0
        %599 = vmatpush1.msra.mxu0 0.0
        %600 = vmatprep.subr.mxu0 0.0
        %601 = vmatpush1.msra.mxu0 0.0
        %602 = vmatprep.subr.mxu0 0.0
        %603 = vmatpush1.msra.mxu0 0.0
        %604 = vmatprep.subr.mxu0 0.0
        %605 = vmatpush1.msra.mxu0 0.0
        %606 = vmatprep.subr.mxu0 0.0
        %607 = vmatpush1.msra.mxu0 0.0
        %608 = vmatprep.subr.mxu0 0.0
        %609 = vmatpush1.msra.mxu0 0.0
        %610 = vmatprep.subr.mxu0 0.0
        %611 = vmatpush1.msra.mxu0 0.0
        %612 = vmatprep.subr.mxu0 0.0
        %613 = vmatpush1.msra.mxu0 0.0
        %614 = vmatprep.subr.mxu0 0.0
        %615 = vmatpush1.msra.mxu0 0.0
        %616 = vmatprep.subr.mxu0 0.0
        %617 = vmatpush1.msra.mxu0 0.0
        %618 = vmatprep.subr.mxu0 0.0
        %619 = vmatpush1.msra.mxu0 0.0
        %620 = vmatprep.subr.mxu0 0.0
        %621 = vmatpush1.msra.mxu0 0.0
        %622 = vmatprep.subr.mxu0 0.0
        %623 = vmatpush1.msra.mxu0 0.0
        %624 = vmatprep.subr.mxu0 0.0
        %625 = vmatpush1.msra.mxu0 0.0
        %626 = vmatprep.subr.mxu0 0.0
        %627 = vmatpush1.msra.mxu0 0.0
        %628 = vmatprep.subr.mxu0 0.0
        %629 = vmatpush1.msra.mxu0 0.0
        %630 = vmatprep.mubr.f32.mxu0 0.0
        %631 = vmatmul.mubr.f32.gmra.mrb[0].mxu0 %v564
        %v632 = vpop.f32.mrb[0].mxu0
        %v633 = vadd.f32 0.0, %v632
        %v634 = vpop.f32.mrb[0].mxu0
        %635 = vdwg.mxu0
        %v637 = vsel %vm438, %v562, 0
        %639 = vmatprep.subr.mxu0 0.0
        %640 = vmatpush1.msra.mxu0 %v354
        %641 = vmatprep.subr.mxu0 0.0
        %642 = vmatpush1.msra.mxu0 %v355
        %643 = vmatprep.subr.mxu0 0.0
        %644 = vmatpush1.msra.mxu0 %v356
        %645 = vmatprep.subr.mxu0 0.0
        %646 = vmatpush1.msra.mxu0 %v357
        %647 = vmatprep.subr.mxu0 0.0
        %648 = vmatpush1.msra.mxu0 0.0
        %649 = vmatprep.subr.mxu0 0.0
        %650 = vmatpush1.msra.mxu0 0.0
        %651 = vmatprep.subr.mxu0 0.0
        %652 = vmatpush1.msra.mxu0 0.0
        %653 = vmatprep.subr.mxu0 0.0
        %654 = vmatpush1.msra.mxu0 0.0
        %655 = vmatprep.subr.mxu0 0.0
        %656 = vmatpush1.msra.mxu0 0.0
        %657 = vmatprep.subr.mxu0 0.0
        %658 = vmatpush1.msra.mxu0 0.0
        %659 = vmatprep.subr.mxu0 0.0
        %660 = vmatpush1.msra.mxu0 0.0
        %661 = vmatprep.subr.mxu0 0.0
        %662 = vmatpush1.msra.mxu0 0.0
        %663 = vmatprep.subr.mxu0 0.0
        %664 = vmatpush1.msra.mxu0 0.0
        %665 = vmatprep.subr.mxu0 0.0
        %666 = vmatpush1.msra.mxu0 0.0
        %667 = vmatprep.subr.mxu0 0.0
        %668 = vmatpush1.msra.mxu0 0.0
        %669 = vmatprep.subr.mxu0 0.0
        %670 = vmatpush1.msra.mxu0 0.0
        %671 = vmatprep.subr.mxu0 0.0
        %672 = vmatpush1.msra.mxu0 0.0
        %673 = vmatprep.subr.mxu0 0.0
        %674 = vmatpush1.msra.mxu0 0.0
        %675 = vmatprep.subr.mxu0 0.0
        %676 = vmatpush1.msra.mxu0 0.0
        %677 = vmatprep.subr.mxu0 0.0
        %678 = vmatpush1.msra.mxu0 0.0
        %679 = vmatprep.subr.mxu0 0.0
        %680 = vmatpush1.msra.mxu0 0.0
        %681 = vmatprep.subr.mxu0 0.0
        %682 = vmatpush1.msra.mxu0 0.0
        %683 = vmatprep.subr.mxu0 0.0
        %684 = vmatpush1.msra.mxu0 0.0
        %685 = vmatprep.subr.mxu0 0.0
        %686 = vmatpush1.msra.mxu0 0.0
        %687 = vmatprep.subr.mxu0 0.0
        %688 = vmatpush1.msra.mxu0 0.0
        %689 = vmatprep.subr.mxu0 0.0
        %690 = vmatpush1.msra.mxu0 0.0
        %691 = vmatprep.subr.mxu0 0.0
        %692 = vmatpush1.msra.mxu0 0.0
        %693 = vmatprep.subr.mxu0 0.0
        %694 = vmatpush1.msra.mxu0 0.0
        %695 = vmatprep.subr.mxu0 0.0
        %696 = vmatpush1.msra.mxu0 0.0
        %697 = vmatprep.subr.mxu0 0.0
        %698 = vmatpush1.msra.mxu0 0.0
        %699 = vmatprep.subr.mxu0 0.0
        %700 = vmatpush1.msra.mxu0 0.0
        %701 = vmatprep.subr.mxu0 0.0
        %702 = vmatpush1.msra.mxu0 0.0
        %703 = vmatprep.mubr.f32.mxu0 0.0
        %704 = vmatmul.mubr.f32.gmra.mrb[0].mxu0 %v637
        %v705 = vpop.f32.mrb[0].mxu0
        %v706 = vadd.f32 %v633, %v705
        %v707 = vpop.f32.mrb[0].mxu0
        %708 = vdwg.mxu0
        %v709 = vadd.f32 %v706, %v516
        %v710 = vxor.u32 %v709, 2147483648
        %v711 = vmul.f32 %v710, 1.442695
        %v712 = vpow.pop %v711
        %v713 = vadd.f32 %v712, 1.0
        %v714 = vrcp.pop %v713
        %v715 = vmul.f32 1.0, %v714
        %v716 = vtanh.pop %v709
        %718 = vrot.lane.b32.xlu0 %v560, 16
        %v719 = vpop.permute.xlu0 %718
        %v721 = vmul.f32 %v715, %v719
        %723 = vrot.lane.b32.xlu0 %v716, 96
        %v724 = vpop.permute.xlu0 %723
        %v726 = vmul.f32 %v715, %v724
        %728 = vrot.lane.b32.xlu0 %v726, 16
        %v729 = vpop.permute.xlu0 %728
        %v731 = vadd.f32 %v721, %v729
        %v732 = vtanh.pop %v731
        %734 = vrot.lane.b32.xlu0 %v732, 32
        %v735 = vpop.permute.xlu0 %734
        %v737 = vmul.f32 %v715, %v735
        %739 = vrot.lane.b32.xlu0 %v737, 80
        %v740 = vpop.permute.xlu0 %739
        %742 = vst.msk [vmem:[#allocation2] sm:$0x3] %vm551, %v740
        %744 = vrot.lane.b32.xlu0 %v731, 112
        %v745 = vpop.permute.xlu0 %744
        %747 = vst.msk [vmem:[#allocation3] sm:$0x3] %vm551, %v745
        %s748 = scalar_lea.vmem %s344, 2 [#allocation12]
        %749 = vst.msk [vmem:[%s748] sm:$0x3] %vm551, %v740
        %v750 = vld [vmem:[#allocation2] sm:$0x3]
        %v751 = vld [vmem:[#allocation3] sm:$0x3]
        %s752 = scalar_lea.vmem %s280, 4 [#allocation4]
        %v753 = vld [vmem:[%s752] sm:$0x3]
        %v755 = vsel %vm364, %v750, 0
        %757 = vmatprep.subr.mxu0 0.0
        %758 = vmatpush1.msra.mxu0 %v358
        %759 = vmatprep.subr.mxu0 0.0
        %760 = vmatpush1.msra.mxu0 %v359
        %761 = vmatprep.subr.mxu0 0.0
        %762 = vmatpush1.msra.mxu0 0.0
        %763 = vmatprep.subr.mxu0 0.0
        %764 = vmatpush1.msra.mxu0 0.0
        %765 = vmatprep.subr.mxu0 0.0
        %766 = vmatpush1.msra.mxu0 0.0
        %767 = vmatprep.subr.mxu0 0.0
        %768 = vmatpush1.msra.mxu0 0.0
        %769 = vmatprep.subr.mxu0 0.0
        %770 = vmatpush1.msra.mxu0 0.0
        %771 = vmatprep.subr.mxu0 0.0
        %772 = vmatpush1.msra.mxu0 0.0
        %773 = vmatprep.subr.mxu0 0.0
        %774 = vmatpush1.msra.mxu0 0.0
        %775 = vmatprep.subr.mxu0 0.0
        %776 = vmatpush1.msra.mxu0 0.0
        %777 = vmatprep.subr.mxu0 0.0
        %778 = vmatpush1.msra.mxu0 0.0
        %779 = vmatprep.subr.mxu0 0.0
        %780 = vmatpush1.msra.mxu0 0.0
        %781 = vmatprep.subr.mxu0 0.0
        %782 = vmatpush1.msra.mxu0 0.0
        %783 = vmatprep.subr.mxu0 0.0
        %784 = vmatpush1.msra.mxu0 0.0
        %785 = vmatprep.subr.mxu0 0.0
        %786 = vmatpush1.msra.mxu0 0.0
        %787 = vmatprep.subr.mxu0 0.0
        %788 = vmatpush1.msra.mxu0 0.0
        %789 = vmatprep.subr.mxu0 0.0
        %790 = vmatpush1.msra.mxu0 0.0
        %791 = vmatprep.subr.mxu0 0.0
        %792 = vmatpush1.msra.mxu0 0.0
        %793 = vmatprep.subr.mxu0 0.0
        %794 = vmatpush1.msra.mxu0 0.0
        %795 = vmatprep.subr.mxu0 0.0
        %796 = vmatpush1.msra.mxu0 0.0
        %797 = vmatprep.subr.mxu0 0.0
        %798 = vmatpush1.msra.mxu0 0.0
        %799 = vmatprep.subr.mxu0 0.0
        %800 = vmatpush1.msra.mxu0 0.0
        %801 = vmatprep.subr.mxu0 0.0
        %802 = vmatpush1.msra.mxu0 0.0
        %803 = vmatprep.subr.mxu0 0.0
        %804 = vmatpush1.msra.mxu0 0.0
        %805 = vmatprep.subr.mxu0 0.0
        %806 = vmatpush1.msra.mxu0 0.0
        %807 = vmatprep.subr.mxu0 0.0
        %808 = vmatpush1.msra.mxu0 0.0
        %809 = vmatprep.subr.mxu0 0.0
        %810 = vmatpush1.msra.mxu0 0.0
        %811 = vmatprep.subr.mxu0 0.0
        %812 = vmatpush1.msra.mxu0 0.0
        %813 = vmatprep.subr.mxu0 0.0
        %814 = vmatpush1.msra.mxu0 0.0
        %815 = vmatprep.subr.mxu0 0.0
        %816 = vmatpush1.msra.mxu0 0.0
        %817 = vmatprep.subr.mxu0 0.0
        %818 = vmatpush1.msra.mxu0 0.0
        %819 = vmatprep.subr.mxu0 0.0
        %820 = vmatpush1.msra.mxu0 0.0
        %821 = vmatprep.mubr.f32.mxu0 0.0
        %822 = vmatmul.mubr.f32.gmra.mrb[0].mxu0 %v755
        %v823 = vpop.f32.mrb[0].mxu0
        %v824 = vadd.f32 0.0, %v823
        %v825 = vpop.f32.mrb[0].mxu0
        %826 = vdwg.mxu0
        %v828 = vsel %vm438, %v753, 0
        %830 = vmatprep.subr.mxu0 0.0
        %831 = vmatpush1.msra.mxu0 %v354
        %832 = vmatprep.subr.mxu0 0.0
        %833 = vmatpush1.msra.mxu0 %v355
        %834 = vmatprep.subr.mxu0 0.0
        %835 = vmatpush1.msra.mxu0 %v356
        %836 = vmatprep.subr.mxu0 0.0
        %837 = vmatpush1.msra.mxu0 %v357
        %838 = vmatprep.subr.mxu0 0.0
        %839 = vmatpush1.msra.mxu0 0.0
        %840 = vmatprep.subr.mxu0 0.0
        %841 = vmatpush1.msra.mxu0 0.0
        %842 = vmatprep.subr.mxu0 0.0
        %843 = vmatpush1.msra.mxu0 0.0
        %844 = vmatprep.subr.mxu0 0.0
        %845 = vmatpush1.msra.mxu0 0.0
        %846 = vmatprep.subr.mxu0 0.0
        %847 = vmatpush1.msra.mxu0 0.0
        %848 = vmatprep.subr.mxu0 0.0
        %849 = vmatpush1.msra.mxu0 0.0
        %850 = vmatprep.subr.mxu0 0.0
        %851 = vmatpush1.msra.mxu0 0.0
        %852 = vmatprep.subr.mxu0 0.0
        %853 = vmatpush1.msra.mxu0 0.0
        %854 = vmatprep.subr.mxu0 0.0
        %855 = vmatpush1.msra.mxu0 0.0
        %856 = vmatprep.subr.mxu0 0.0
        %857 = vmatpush1.msra.mxu0 0.0
        %858 = vmatprep.subr.mxu0 0.0
        %859 = vmatpush1.msra.mxu0 0.0
        %860 = vmatprep.subr.mxu0 0.0
        %861 = vmatpush1.msra.mxu0 0.0
        %862 = vmatprep.subr.mxu0 0.0
        %863 = vmatpush1.msra.mxu0 0.0
        %864 = vmatprep.subr.mxu0 0.0
        %865 = vmatpush1.msra.mxu0 0.0
        %866 = vmatprep.subr.mxu0 0.0
        %867 = vmatpush1.msra.mxu0 0.0
        %868 = vmatprep.subr.mxu0 0.0
        %869 = vmatpush1.msra.mxu0 0.0
        %870 = vmatprep.subr.mxu0 0.0
        %871 = vmatpush1.msra.mxu0 0.0
        %872 = vmatprep.subr.mxu0 0.0
        %873 = vmatpush1.msra.mxu0 0.0
        %874 = vmatprep.subr.mxu0 0.0
        %875 = vmatpush1.msra.mxu0 0.0
        %876 = vmatprep.subr.mxu0 0.0
        %877 = vmatpush1.msra.mxu0 0.0
        %878 = vmatprep.subr.mxu0 0.0
        %879 = vmatpush1.msra.mxu0 0.0
        %880 = vmatprep.subr.mxu0 0.0
        %881 = vmatpush1.msra.mxu0 0.0
        %882 = vmatprep.subr.mxu0 0.0
        %883 = vmatpush1.msra.mxu0 0.0
        %884 = vmatprep.subr.mxu0 0.0
        %885 = vmatpush1.msra.mxu0 0.0
        %886 = vmatprep.subr.mxu0 0.0
        %887 = vmatpush1.msra.mxu0 0.0
        %888 = vmatprep.subr.mxu0 0.0
        %889 = vmatpush1.msra.mxu0 0.0
        %890 = vmatprep.subr.mxu0 0.0
        %891 = vmatpush1.msra.mxu0 0.0
        %892 = vmatprep.subr.mxu0 0.0
        %893 = vmatpush1.msra.mxu0 0.0
        %894 = vmatprep.mubr.f32.mxu0 0.0
        %895 = vmatmul.mubr.f32.gmra.mrb[0].mxu0 %v828
        %v896 = vpop.f32.mrb[0].mxu0
        %v897 = vadd.f32 %v824, %v896
        %v898 = vpop.f32.mrb[0].mxu0
        %899 = vdwg.mxu0
        %v900 = vadd.f32 %v897, %v516
        %v901 = vxor.u32 %v900, 2147483648
        %v902 = vmul.f32 %v901, 1.442695
        %v903 = vpow.pop %v902
        %v904 = vadd.f32 %v903, 1.0
        %v905 = vrcp.pop %v904
        %v906 = vmul.f32 1.0, %v905
        %v907 = vtanh.pop %v900
        %909 = vrot.lane.b32.xlu0 %v751, 16
        %v910 = vpop.permute.xlu0 %909
        %v912 = vmul.f32 %v906, %v910
        %914 = vrot.lane.b32.xlu0 %v907, 96
        %v915 = vpop.permute.xlu0 %914
        %v917 = vmul.f32 %v906, %v915
        %919 = vrot.lane.b32.xlu0 %v917, 16
        %v920 = vpop.permute.xlu0 %919
        %v922 = vadd.f32 %v912, %v920
        %v923 = vtanh.pop %v922
        %925 = vrot.lane.b32.xlu0 %v923, 32
        %v926 = vpop.permute.xlu0 %925
        %v928 = vmul.f32 %v906, %v926
        %930 = vrot.lane.b32.xlu0 %v928, 80
        %v931 = vpop.permute.xlu0 %930
        %933 = vst.msk [vmem:[#allocation2] sm:$0x3] %vm551, %v931
        %935 = vrot.lane.b32.xlu0 %v922, 112
        %v936 = vpop.permute.xlu0 %935
        %938 = vst.msk [vmem:[#allocation3] sm:$0x3] %vm551, %v936
        %s939 = scalar_lea.vmem %s344, 4 [#allocation12]
        %940 = vst.msk [vmem:[%s939] sm:$0x3] %vm551, %v931
        %v941 = vld [vmem:[#allocation2] sm:$0x3]
        %v942 = vld [vmem:[#allocation3] sm:$0x3]
        %s943 = scalar_lea.vmem %s280, 6 [#allocation4]
        %v944 = vld [vmem:[%s943] sm:$0x3]
        %v946 = vsel %vm364, %v941, 0
        %948 = vmatprep.subr.mxu0 0.0
        %949 = vmatpush1.msra.mxu0 %v358
        %950 = vmatprep.subr.mxu0 0.0
        %951 = vmatpush1.msra.mxu0 %v359
        %952 = vmatprep.subr.mxu0 0.0
        %953 = vmatpush1.msra.mxu0 0.0
        %954 = vmatprep.subr.mxu0 0.0
        %955 = vmatpush1.msra.mxu0 0.0
        %956 = vmatprep.subr.mxu0 0.0
        %957 = vmatpush1.msra.mxu0 0.0
        %958 = vmatprep.subr.mxu0 0.0
        %959 = vmatpush1.msra.mxu0 0.0
        %960 = vmatprep.subr.mxu0 0.0
        %961 = vmatpush1.msra.mxu0 0.0
        %962 = vmatprep.subr.mxu0 0.0
        %963 = vmatpush1.msra.mxu0 0.0
        %964 = vmatprep.subr.mxu0 0.0
        %965 = vmatpush1.msra.mxu0 0.0
        %966 = vmatprep.subr.mxu0 0.0
        %967 = vmatpush1.msra.mxu0 0.0
        %968 = vmatprep.subr.mxu0 0.0
        %969 = vmatpush1.msra.mxu0 0.0
        %970 = vmatprep.subr.mxu0 0.0
        %971 = vmatpush1.msra.mxu0 0.0
        %972 = vmatprep.subr.mxu0 0.0
        %973 = vmatpush1.msra.mxu0 0.0
        %974 = vmatprep.subr.mxu0 0.0
        %975 = vmatpush1.msra.mxu0 0.0
        %976 = vmatprep.subr.mxu0 0.0
        %977 = vmatpush1.msra.mxu0 0.0
        %978 = vmatprep.subr.mxu0 0.0
        %979 = vmatpush1.msra.mxu0 0.0
        %980 = vmatprep.subr.mxu0 0.0
        %981 = vmatpush1.msra.mxu0 0.0
        %982 = vmatprep.subr.mxu0 0.0
        %983 = vmatpush1.msra.mxu0 0.0
        %984 = vmatprep.subr.mxu0 0.0
        %985 = vmatpush1.msra.mxu0 0.0
        %986 = vmatprep.subr.mxu0 0.0
        %987 = vmatpush1.msra.mxu0 0.0
        %988 = vmatprep.subr.mxu0 0.0
        %989 = vmatpush1.msra.mxu0 0.0
        %990 = vmatprep.subr.mxu0 0.0
        %991 = vmatpush1.msra.mxu0 0.0
        %992 = vmatprep.subr.mxu0 0.0
        %993 = vmatpush1.msra.mxu0 0.0
        %994 = vmatprep.subr.mxu0 0.0
        %995 = vmatpush1.msra.mxu0 0.0
        %996 = vmatprep.subr.mxu0 0.0
        %997 = vmatpush1.msra.mxu0 0.0
        %998 = vmatprep.subr.mxu0 0.0
        %999 = vmatpush1.msra.mxu0 0.0
        %1000 = vmatprep.subr.mxu0 0.0
        %1001 = vmatpush1.msra.mxu0 0.0
        %1002 = vmatprep.subr.mxu0 0.0
        %1003 = vmatpush1.msra.mxu0 0.0
        %1004 = vmatprep.subr.mxu0 0.0
        %1005 = vmatpush1.msra.mxu0 0.0
        %1006 = vmatprep.subr.mxu0 0.0
        %1007 = vmatpush1.msra.mxu0 0.0
        %1008 = vmatprep.subr.mxu0 0.0
        %1009 = vmatpush1.msra.mxu0 0.0
        %1010 = vmatprep.subr.mxu0 0.0
        %1011 = vmatpush1.msra.mxu0 0.0
        %1012 = vmatprep.mubr.f32.mxu0 0.0
        %1013 = vmatmul.mubr.f32.gmra.mrb[0].mxu0 %v946
        %v1014 = vpop.f32.mrb[0].mxu0
        %v1015 = vadd.f32 0.0, %v1014
        %v1016 = vpop.f32.mrb[0].mxu0
        %1017 = vdwg.mxu0
        %v1019 = vsel %vm438, %v944, 0
        %1021 = vmatprep.subr.mxu0 0.0
        %1022 = vmatpush1.msra.mxu0 %v354
        %1023 = vmatprep.subr.mxu0 0.0
        %1024 = vmatpush1.msra.mxu0 %v355
        %1025 = vmatprep.subr.mxu0 0.0
        %1026 = vmatpush1.msra.mxu0 %v356
        %1027 = vmatprep.subr.mxu0 0.0
        %1028 = vmatpush1.msra.mxu0 %v357
        %1029 = vmatprep.subr.mxu0 0.0
        %1030 = vmatpush1.msra.mxu0 0.0
        %1031 = vmatprep.subr.mxu0 0.0
        %1032 = vmatpush1.msra.mxu0 0.0
        %1033 = vmatprep.subr.mxu0 0.0
        %1034 = vmatpush1.msra.mxu0 0.0
        %1035 = vmatprep.subr.mxu0 0.0
        %1036 = vmatpush1.msra.mxu0 0.0
        %1037 = vmatprep.subr.mxu0 0.0
        %1038 = vmatpush1.msra.mxu0 0.0
        %1039 = vmatprep.subr.mxu0 0.0
        %1040 = vmatpush1.msra.mxu0 0.0
        %1041 = vmatprep.subr.mxu0 0.0
        %1042 = vmatpush1.msra.mxu0 0.0
        %1043 = vmatprep.subr.mxu0 0.0
        %1044 = vmatpush1.msra.mxu0 0.0
        %1045 = vmatprep.subr.mxu0 0.0
        %1046 = vmatpush1.msra.mxu0 0.0
        %1047 = vmatprep.subr.mxu0 0.0
        %1048 = vmatpush1.msra.mxu0 0.0
        %1049 = vmatprep.subr.mxu0 0.0
        %1050 = vmatpush1.msra.mxu0 0.0
        %1051 = vmatprep.subr.mxu0 0.0
        %1052 = vmatpush1.msra.mxu0 0.0
        %1053 = vmatprep.subr.mxu0 0.0
        %1054 = vmatpush1.msra.mxu0 0.0
        %1055 = vmatprep.subr.mxu0 0.0
        %1056 = vmatpush1.msra.mxu0 0.0
        %1057 = vmatprep.subr.mxu0 0.0
        %1058 = vmatpush1.msra.mxu0 0.0
        %1059 = vmatprep.subr.mxu0 0.0
        %1060 = vmatpush1.msra.mxu0 0.0
        %1061 = vmatprep.subr.mxu0 0.0
        %1062 = vmatpush1.msra.mxu0 0.0
        %1063 = vmatprep.subr.mxu0 0.0
        %1064 = vmatpush1.msra.mxu0 0.0
        %1065 = vmatprep.subr.mxu0 0.0
        %1066 = vmatpush1.msra.mxu0 0.0
        %1067 = vmatprep.subr.mxu0 0.0
        %1068 = vmatpush1.msra.mxu0 0.0
        %1069 = vmatprep.subr.mxu0 0.0
        %1070 = vmatpush1.msra.mxu0 0.0
        %1071 = vmatprep.subr.mxu0 0.0
        %1072 = vmatpush1.msra.mxu0 0.0
        %1073 = vmatprep.subr.mxu0 0.0
        %1074 = vmatpush1.msra.mxu0 0.0
        %1075 = vmatprep.subr.mxu0 0.0
        %1076 = vmatpush1.msra.mxu0 0.0
        %1077 = vmatprep.subr.mxu0 0.0
        %1078 = vmatpush1.msra.mxu0 0.0
        %1079 = vmatprep.subr.mxu0 0.0
        %1080 = vmatpush1.msra.mxu0 0.0
        %1081 = vmatprep.subr.mxu0 0.0
        %1082 = vmatpush1.msra.mxu0 0.0
        %1083 = vmatprep.subr.mxu0 0.0
        %1084 = vmatpush1.msra.mxu0 0.0
        %1085 = vmatprep.mubr.f32.mxu0 0.0
        %1086 = vmatmul.mubr.f32.gmra.mrb[0].mxu0 %v1019
        %v1087 = vpop.f32.mrb[0].mxu0
        %v1088 = vadd.f32 %v1015, %v1087
        %v1089 = vpop.f32.mrb[0].mxu0
        %1090 = vdwg.mxu0
        %v1091 = vadd.f32 %v1088, %v516
        %v1092 = vxor.u32 %v1091, 2147483648
        %v1093 = vmul.f32 %v1092, 1.442695
        %v1094 = vpow.pop %v1093
        %v1095 = vadd.f32 %v1094, 1.0
        %v1096 = vrcp.pop %v1095
        %v1097 = vmul.f32 1.0, %v1096
        %v1098 = vtanh.pop %v1091
        %1100 = vrot.lane.b32.xlu0 %v942, 16
        %v1101 = vpop.permute.xlu0 %1100
        %v1103 = vmul.f32 %v1097, %v1101
        %1105 = vrot.lane.b32.xlu0 %v1098, 96
        %v1106 = vpop.permute.xlu0 %1105
        %v1108 = vmul.f32 %v1097, %v1106
        %1110 = vrot.lane.b32.xlu0 %v1108, 16
        %v1111 = vpop.permute.xlu0 %1110
        %v1113 = vadd.f32 %v1103, %v1111
        %v1114 = vtanh.pop %v1113
        %1116 = vrot.lane.b32.xlu0 %v1114, 32
        %v1117 = vpop.permute.xlu0 %1116
        %v1119 = vmul.f32 %v1097, %v1117
        %1121 = vrot.lane.b32.xlu0 %v1119, 80
        %v1122 = vpop.permute.xlu0 %1121
        %1124 = vst.msk [vmem:[#allocation2] sm:$0x3] %vm551, %v1122
        %1126 = vrot.lane.b32.xlu0 %v1113, 112
        %v1127 = vpop.permute.xlu0 %1126
        %1129 = vst.msk [vmem:[#allocation3] sm:$0x3] %vm551, %v1127
        %s1130 = scalar_lea.vmem %s344, 6 [#allocation12]
        %1131 = vst.msk [vmem:[%s1130] sm:$0x3] %vm551, %v1122
        %v1132 = vld [vmem:[#allocation2] sm:$0x3]
        %v1133 = vld [vmem:[#allocation3] sm:$0x3]
        %s1134 = scalar_lea.vmem %s280, 8 [#allocation4]
        %v1135 = vld [vmem:[%s1134] sm:$0x3]
        %v1137 = vsel %vm364, %v1132, 0
        %1139 = vmatprep.subr.mxu0 0.0
        %1140 = vmatpush1.msra.mxu0 %v358
        %1141 = vmatprep.subr.mxu0 0.0
        %1142 = vmatpush1.msra.mxu0 %v359
        %1143 = vmatprep.subr.mxu0 0.0
        %1144 = vmatpush1.msra.mxu0 0.0
        %1145 = vmatprep.subr.mxu0 0.0
        %1146 = vmatpush1.msra.mxu0 0.0
        %1147 = vmatprep.subr.mxu0 0.0
        %1148 = vmatpush1.msra.mxu0 0.0
        %1149 = vmatprep.subr.mxu0 0.0
        %1150 = vmatpush1.msra.mxu0 0.0
        %1151 = vmatprep.subr.mxu0 0.0
        %1152 = vmatpush1.msra.mxu0 0.0
        %1153 = vmatprep.subr.mxu0 0.0
        %1154 = vmatpush1.msra.mxu0 0.0
        %1155 = vmatprep.subr.mxu0 0.0
        %1156 = vmatpush1.msra.mxu0 0.0
        %1157 = vmatprep.subr.mxu0 0.0
        %1158 = vmatpush1.msra.mxu0 0.0
        %1159 = vmatprep.subr.mxu0 0.0
        %1160 = vmatpush1.msra.mxu0 0.0
        %1161 = vmatprep.subr.mxu0 0.0
        %1162 = vmatpush1.msra.mxu0 0.0
        %1163 = vmatprep.subr.mxu0 0.0
        %1164 = vmatpush1.msra.mxu0 0.0
        %1165 = vmatprep.subr.mxu0 0.0
        %1166 = vmatpush1.msra.mxu0 0.0
        %1167 = vmatprep.subr.mxu0 0.0
        %1168 = vmatpush1.msra.mxu0 0.0
        %1169 = vmatprep.subr.mxu0 0.0
        %1170 = vmatpush1.msra.mxu0 0.0
        %1171 = vmatprep.subr.mxu0 0.0
        %1172 = vmatpush1.msra.mxu0 0.0
        %1173 = vmatprep.subr.mxu0 0.0
        %1174 = vmatpush1.msra.mxu0 0.0
        %1175 = vmatprep.subr.mxu0 0.0
        %1176 = vmatpush1.msra.mxu0 0.0
        %1177 = vmatprep.subr.mxu0 0.0
        %1178 = vmatpush1.msra.mxu0 0.0
        %1179 = vmatprep.subr.mxu0 0.0
        %1180 = vmatpush1.msra.mxu0 0.0
        %1181 = vmatprep.subr.mxu0 0.0
        %1182 = vmatpush1.msra.mxu0 0.0
        %1183 = vmatprep.subr.mxu0 0.0
        %1184 = vmatpush1.msra.mxu0 0.0
        %1185 = vmatprep.subr.mxu0 0.0
        %1186 = vmatpush1.msra.mxu0 0.0
        %1187 = vmatprep.subr.mxu0 0.0
        %1188 = vmatpush1.msra.mxu0 0.0
        %1189 = vmatprep.subr.mxu0 0.0
        %1190 = vmatpush1.msra.mxu0 0.0
        %1191 = vmatprep.subr.mxu0 0.0
        %1192 = vmatpush1.msra.mxu0 0.0
        %1193 = vmatprep.subr.mxu0 0.0
        %1194 = vmatpush1.msra.mxu0 0.0
        %1195 = vmatprep.subr.mxu0 0.0
        %1196 = vmatpush1.msra.mxu0 0.0
        %1197 = vmatprep.subr.mxu0 0.0
        %1198 = vmatpush1.msra.mxu0 0.0
        %1199 = vmatprep.subr.mxu0 0.0
        %1200 = vmatpush1.msra.mxu0 0.0
        %1201 = vmatprep.subr.mxu0 0.0
        %1202 = vmatpush1.msra.mxu0 0.0
        %1203 = vmatprep.mubr.f32.mxu0 0.0
        %1204 = vmatmul.mubr.f32.gmra.mrb[0].mxu0 %v1137
        %v1205 = vpop.f32.mrb[0].mxu0
        %v1206 = vadd.f32 0.0, %v1205
        %v1207 = vpop.f32.mrb[0].mxu0
        %1208 = vdwg.mxu0
        %v1210 = vsel %vm438, %v1135, 0
        %1212 = vmatprep.subr.mxu0 0.0
        %1213 = vmatpush1.msra.mxu0 %v354
        %1214 = vmatprep.subr.mxu0 0.0
        %1215 = vmatpush1.msra.mxu0 %v355
        %1216 = vmatprep.subr.mxu0 0.0
        %1217 = vmatpush1.msra.mxu0 %v356
        %1218 = vmatprep.subr.mxu0 0.0
        %1219 = vmatpush1.msra.mxu0 %v357
        %1220 = vmatprep.subr.mxu0 0.0
        %1221 = vmatpush1.msra.mxu0 0.0
        %1222 = vmatprep.subr.mxu0 0.0
        %1223 = vmatpush1.msra.mxu0 0.0
        %1224 = vmatprep.subr.mxu0 0.0
        %1225 = vmatpush1.msra.mxu0 0.0
        %1226 = vmatprep.subr.mxu0 0.0
        %1227 = vmatpush1.msra.mxu0 0.0
        %1228 = vmatprep.subr.mxu0 0.0
        %1229 = vmatpush1.msra.mxu0 0.0
        %1230 = vmatprep.subr.mxu0 0.0
        %1231 = vmatpush1.msra.mxu0 0.0
        %1232 = vmatprep.subr.mxu0 0.0
        %1233 = vmatpush1.msra.mxu0 0.0
        %1234 = vmatprep.subr.mxu0 0.0
        %1235 = vmatpush1.msra.mxu0 0.0
        %1236 = vmatprep.subr.mxu0 0.0
        %1237 = vmatpush1.msra.mxu0 0.0
        %1238 = vmatprep.subr.mxu0 0.0
        %1239 = vmatpush1.msra.mxu0 0.0
        %1240 = vmatprep.subr.mxu0 0.0
        %1241 = vmatpush1.msra.mxu0 0.0
        %1242 = vmatprep.subr.mxu0 0.0
        %1243 = vmatpush1.msra.mxu0 0.0
        %1244 = vmatprep.subr.mxu0 0.0
        %1245 = vmatpush1.msra.mxu0 0.0
        %1246 = vmatprep.subr.mxu0 0.0
        %1247 = vmatpush1.msra.mxu0 0.0
        %1248 = vmatprep.subr.mxu0 0.0
        %1249 = vmatpush1.msra.mxu0 0.0
        %1250 = vmatprep.subr.mxu0 0.0
        %1251 = vmatpush1.msra.mxu0 0.0
        %1252 = vmatprep.subr.mxu0 0.0
        %1253 = vmatpush1.msra.mxu0 0.0
        %1254 = vmatprep.subr.mxu0 0.0
        %1255 = vmatpush1.msra.mxu0 0.0
        %1256 = vmatprep.subr.mxu0 0.0
        %1257 = vmatpush1.msra.mxu0 0.0
        %1258 = vmatprep.subr.mxu0 0.0
        %1259 = vmatpush1.msra.mxu0 0.0
        %1260 = vmatprep.subr.mxu0 0.0
        %1261 = vmatpush1.msra.mxu0 0.0
        %1262 = vmatprep.subr.mxu0 0.0
        %1263 = vmatpush1.msra.mxu0 0.0
        %1264 = vmatprep.subr.mxu0 0.0
        %1265 = vmatpush1.msra.mxu0 0.0
        %1266 = vmatprep.subr.mxu0 0.0
        %1267 = vmatpush1.msra.mxu0 0.0
        %1268 = vmatprep.subr.mxu0 0.0
        %1269 = vmatpush1.msra.mxu0 0.0
        %1270 = vmatprep.subr.mxu0 0.0
        %1271 = vmatpush1.msra.mxu0 0.0
        %1272 = vmatprep.subr.mxu0 0.0
        %1273 = vmatpush1.msra.mxu0 0.0
        %1274 = vmatprep.subr.mxu0 0.0
        %1275 = vmatpush1.msra.mxu0 0.0
        %1276 = vmatprep.mubr.f32.mxu0 0.0
        %1277 = vmatmul.mubr.f32.gmra.mrb[0].mxu0 %v1210
        %v1278 = vpop.f32.mrb[0].mxu0
        %v1279 = vadd.f32 %v1206, %v1278
        %v1280 = vpop.f32.mrb[0].mxu0
        %1281 = vdwg.mxu0
        %v1282 = vadd.f32 %v1279, %v516
        %v1283 = vxor.u32 %v1282, 2147483648
        %v1284 = vmul.f32 %v1283, 1.442695
        %v1285 = vpow.pop %v1284
        %v1286 = vadd.f32 %v1285, 1.0
        %v1287 = vrcp.pop %v1286
        %v1288 = vmul.f32 1.0, %v1287
        %v1289 = vtanh.pop %v1282
        %1291 = vrot.lane.b32.xlu0 %v1133, 16
        %v1292 = vpop.permute.xlu0 %1291
        %v1294 = vmul.f32 %v1288, %v1292
        %1296 = vrot.lane.b32.xlu0 %v1289, 96
        %v1297 = vpop.permute.xlu0 %1296
        %v1299 = vmul.f32 %v1288, %v1297
        %1301 = vrot.lane.b32.xlu0 %v1299, 16
        %v1302 = vpop.permute.xlu0 %1301
        %v1304 = vadd.f32 %v1294, %v1302
        %v1305 = vtanh.pop %v1304
        %1307 = vrot.lane.b32.xlu0 %v1305, 32
        %v1308 = vpop.permute.xlu0 %1307
        %v1310 = vmul.f32 %v1288, %v1308
        %1312 = vrot.lane.b32.xlu0 %v1310, 80
        %v1313 = vpop.permute.xlu0 %1312
        %1315 = vst.msk [vmem:[#allocation2] sm:$0x3] %vm551, %v1313
        %1317 = vrot.lane.b32.xlu0 %v1304, 112
        %v1318 = vpop.permute.xlu0 %1317
        %1320 = vst.msk [vmem:[#allocation3] sm:$0x3] %vm551, %v1318
        %s1321 = scalar_lea.vmem %s344, 8 [#allocation12]
        %1322 = vst.msk [vmem:[%s1321] sm:$0x3] %vm551, %v1313
        %v1323 = vld [vmem:[#allocation2] sm:$0x3]
        %v1324 = vld [vmem:[#allocation3] sm:$0x3]
        %s1325 = scalar_lea.vmem %s280, 10 [#allocation4]
        %v1326 = vld [vmem:[%s1325] sm:$0x3]
        %v1328 = vsel %vm364, %v1323, 0
        %1330 = vmatprep.subr.mxu0 0.0
        %1331 = vmatpush1.msra.mxu0 %v358
        %1332 = vmatprep.subr.mxu0 0.0
        %1333 = vmatpush1.msra.mxu0 %v359
        %1334 = vmatprep.subr.mxu0 0.0
        %1335 = vmatpush1.msra.mxu0 0.0
        %1336 = vmatprep.subr.mxu0 0.0
        %1337 = vmatpush1.msra.mxu0 0.0
        %1338 = vmatprep.subr.mxu0 0.0
        %1339 = vmatpush1.msra.mxu0 0.0
        %1340 = vmatprep.subr.mxu0 0.0
        %1341 = vmatpush1.msra.mxu0 0.0
        %1342 = vmatprep.subr.mxu0 0.0
        %1343 = vmatpush1.msra.mxu0 0.0
        %1344 = vmatprep.subr.mxu0 0.0
        %1345 = vmatpush1.msra.mxu0 0.0
        %1346 = vmatprep.subr.mxu0 0.0
        %1347 = vmatpush1.msra.mxu0 0.0
        %1348 = vmatprep.subr.mxu0 0.0
        %1349 = vmatpush1.msra.mxu0 0.0
        %1350 = vmatprep.subr.mxu0 0.0
        %1351 = vmatpush1.msra.mxu0 0.0
        %1352 = vmatprep.subr.mxu0 0.0
        %1353 = vmatpush1.msra.mxu0 0.0
        %1354 = vmatprep.subr.mxu0 0.0
        %1355 = vmatpush1.msra.mxu0 0.0
        %1356 = vmatprep.subr.mxu0 0.0
        %1357 = vmatpush1.msra.mxu0 0.0
        %1358 = vmatprep.subr.mxu0 0.0
        %1359 = vmatpush1.msra.mxu0 0.0
        %1360 = vmatprep.subr.mxu0 0.0
        %1361 = vmatpush1.msra.mxu0 0.0
        %1362 = vmatprep.subr.mxu0 0.0
        %1363 = vmatpush1.msra.mxu0 0.0
        %1364 = vmatprep.subr.mxu0 0.0
        %1365 = vmatpush1.msra.mxu0 0.0
        %1366 = vmatprep.subr.mxu0 0.0
        %1367 = vmatpush1.msra.mxu0 0.0
        %1368 = vmatprep.subr.mxu0 0.0
        %1369 = vmatpush1.msra.mxu0 0.0
        %1370 = vmatprep.subr.mxu0 0.0
        %1371 = vmatpush1.msra.mxu0 0.0
        %1372 = vmatprep.subr.mxu0 0.0
        %1373 = vmatpush1.msra.mxu0 0.0
        %1374 = vmatprep.subr.mxu0 0.0
        %1375 = vmatpush1.msra.mxu0 0.0
        %1376 = vmatprep.subr.mxu0 0.0
        %1377 = vmatpush1.msra.mxu0 0.0
        %1378 = vmatprep.subr.mxu0 0.0
        %1379 = vmatpush1.msra.mxu0 0.0
        %1380 = vmatprep.subr.mxu0 0.0
        %1381 = vmatpush1.msra.mxu0 0.0
        %1382 = vmatprep.subr.mxu0 0.0
        %1383 = vmatpush1.msra.mxu0 0.0
        %1384 = vmatprep.subr.mxu0 0.0
        %1385 = vmatpush1.msra.mxu0 0.0
        %1386 = vmatprep.subr.mxu0 0.0
        %1387 = vmatpush1.msra.mxu0 0.0
        %1388 = vmatprep.subr.mxu0 0.0
        %1389 = vmatpush1.msra.mxu0 0.0
        %1390 = vmatprep.subr.mxu0 0.0
        %1391 = vmatpush1.msra.mxu0 0.0
        %1392 = vmatprep.subr.mxu0 0.0
        %1393 = vmatpush1.msra.mxu0 0.0
        %1394 = vmatprep.mubr.f32.mxu0 0.0
        %1395 = vmatmul.mubr.f32.gmra.mrb[0].mxu0 %v1328
        %v1396 = vpop.f32.mrb[0].mxu0
        %v1397 = vadd.f32 0.0, %v1396
        %v1398 = vpop.f32.mrb[0].mxu0
        %1399 = vdwg.mxu0
        %v1401 = vsel %vm438, %v1326, 0
        %1403 = vmatprep.subr.mxu0 0.0
        %1404 = vmatpush1.msra.mxu0 %v354
        %1405 = vmatprep.subr.mxu0 0.0
        %1406 = vmatpush1.msra.mxu0 %v355
        %1407 = vmatprep.subr.mxu0 0.0
        %1408 = vmatpush1.msra.mxu0 %v356
        %1409 = vmatprep.subr.mxu0 0.0
        %1410 = vmatpush1.msra.mxu0 %v357
        %1411 = vmatprep.subr.mxu0 0.0
        %1412 = vmatpush1.msra.mxu0 0.0
        %1413 = vmatprep.subr.mxu0 0.0
        %1414 = vmatpush1.msra.mxu0 0.0
        %1415 = vmatprep.subr.mxu0 0.0
        %1416 = vmatpush1.msra.mxu0 0.0
        %1417 = vmatprep.subr.mxu0 0.0
        %1418 = vmatpush1.msra.mxu0 0.0
        %1419 = vmatprep.subr.mxu0 0.0
        %1420 = vmatpush1.msra.mxu0 0.0
        %1421 = vmatprep.subr.mxu0 0.0
        %1422 = vmatpush1.msra.mxu0 0.0
        %1423 = vmatprep.subr.mxu0 0.0
        %1424 = vmatpush1.msra.mxu0 0.0
        %1425 = vmatprep.subr.mxu0 0.0
        %1426 = vmatpush1.msra.mxu0 0.0
        %1427 = vmatprep.subr.mxu0 0.0
        %1428 = vmatpush1.msra.mxu0 0.0
        %1429 = vmatprep.subr.mxu0 0.0
        %1430 = vmatpush1.msra.mxu0 0.0
        %1431 = vmatprep.subr.mxu0 0.0
        %1432 = vmatpush1.msra.mxu0 0.0
        %1433 = vmatprep.subr.mxu0 0.0
        %1434 = vmatpush1.msra.mxu0 0.0
        %1435 = vmatprep.subr.mxu0 0.0
        %1436 = vmatpush1.msra.mxu0 0.0
        %1437 = vmatprep.subr.mxu0 0.0
        %1438 = vmatpush1.msra.mxu0 0.0
        %1439 = vmatprep.subr.mxu0 0.0
        %1440 = vmatpush1.msra.mxu0 0.0
        %1441 = vmatprep.subr.mxu0 0.0
        %1442 = vmatpush1.msra.mxu0 0.0
        %1443 = vmatprep.subr.mxu0 0.0
        %1444 = vmatpush1.msra.mxu0 0.0
        %1445 = vmatprep.subr.mxu0 0.0
        %1446 = vmatpush1.msra.mxu0 0.0
        %1447 = vmatprep.subr.mxu0 0.0
        %1448 = vmatpush1.msra.mxu0 0.0
        %1449 = vmatprep.subr.mxu0 0.0
        %1450 = vmatpush1.msra.mxu0 0.0
        %1451 = vmatprep.subr.mxu0 0.0
        %1452 = vmatpush1.msra.mxu0 0.0
        %1453 = vmatprep.subr.mxu0 0.0
        %1454 = vmatpush1.msra.mxu0 0.0
        %1455 = vmatprep.subr.mxu0 0.0
        %1456 = vmatpush1.msra.mxu0 0.0
        %1457 = vmatprep.subr.mxu0 0.0
        %1458 = vmatpush1.msra.mxu0 0.0
        %1459 = vmatprep.subr.mxu0 0.0
        %1460 = vmatpush1.msra.mxu0 0.0
        %1461 = vmatprep.subr.mxu0 0.0
        %1462 = vmatpush1.msra.mxu0 0.0
        %1463 = vmatprep.subr.mxu0 0.0
        %1464 = vmatpush1.msra.mxu0 0.0
        %1465 = vmatprep.subr.mxu0 0.0
        %1466 = vmatpush1.msra.mxu0 0.0
        %1467 = vmatprep.mubr.f32.mxu0 0.0
        %1468 = vmatmul.mubr.f32.gmra.mrb[0].mxu0 %v1401
        %v1469 = vpop.f32.mrb[0].mxu0
        %v1470 = vadd.f32 %v1397, %v1469
        %v1471 = vpop.f32.mrb[0].mxu0
        %1472 = vdwg.mxu0
        %v1473 = vadd.f32 %v1470, %v516
        %v1474 = vxor.u32 %v1473, 2147483648
        %v1475 = vmul.f32 %v1474, 1.442695
        %v1476 = vpow.pop %v1475
        %v1477 = vadd.f32 %v1476, 1.0
        %v1478 = vrcp.pop %v1477
        %v1479 = vmul.f32 1.0, %v1478
        %v1480 = vtanh.pop %v1473
        %1482 = vrot.lane.b32.xlu0 %v1324, 16
        %v1483 = vpop.permute.xlu0 %1482
        %v1485 = vmul.f32 %v1479, %v1483
        %1487 = vrot.lane.b32.xlu0 %v1480, 96
        %v1488 = vpop.permute.xlu0 %1487
        %v1490 = vmul.f32 %v1479, %v1488
        %1492 = vrot.lane.b32.xlu0 %v1490, 16
        %v1493 = vpop.permute.xlu0 %1492
        %v1495 = vadd.f32 %v1485, %v1493
        %v1496 = vtanh.pop %v1495
        %1498 = vrot.lane.b32.xlu0 %v1496, 32
        %v1499 = vpop.permute.xlu0 %1498
        %v1501 = vmul.f32 %v1479, %v1499
        %1503 = vrot.lane.b32.xlu0 %v1501, 80
        %v1504 = vpop.permute.xlu0 %1503
        %1506 = vst.msk [vmem:[#allocation2] sm:$0x3] %vm551, %v1504
        %1508 = vrot.lane.b32.xlu0 %v1495, 112
        %v1509 = vpop.permute.xlu0 %1508
        %1511 = vst.msk [vmem:[#allocation3] sm:$0x3] %vm551, %v1509
        %s1512 = scalar_lea.vmem %s344, 10 [#allocation12]
        %1513 = vst.msk [vmem:[%s1512] sm:$0x3] %vm551, %v1504
        %v1514 = vld [vmem:[#allocation2] sm:$0x3]
        %v1515 = vld [vmem:[#allocation3] sm:$0x3]
        %s1516 = scalar_lea.vmem %s280, 12 [#allocation4]
        %v1517 = vld [vmem:[%s1516] sm:$0x3]
        %v1519 = vsel %vm364, %v1514, 0
        %1521 = vmatprep.subr.mxu0 0.0
        %1522 = vmatpush1.msra.mxu0 %v358
        %1523 = vmatprep.subr.mxu0 0.0
        %1524 = vmatpush1.msra.mxu0 %v359
        %1525 = vmatprep.subr.mxu0 0.0
        %1526 = vmatpush1.msra.mxu0 0.0
        %1527 = vmatprep.subr.mxu0 0.0
        %1528 = vmatpush1.msra.mxu0 0.0
        %1529 = vmatprep.subr.mxu0 0.0
        %1530 = vmatpush1.msra.mxu0 0.0
        %1531 = vmatprep.subr.mxu0 0.0
        %1532 = vmatpush1.msra.mxu0 0.0
        %1533 = vmatprep.subr.mxu0 0.0
        %1534 = vmatpush1.msra.mxu0 0.0
        %1535 = vmatprep.subr.mxu0 0.0
        %1536 = vmatpush1.msra.mxu0 0.0
        %1537 = vmatprep.subr.mxu0 0.0
        %1538 = vmatpush1.msra.mxu0 0.0
        %1539 = vmatprep.subr.mxu0 0.0
        %1540 = vmatpush1.msra.mxu0 0.0
        %1541 = vmatprep.subr.mxu0 0.0
        %1542 = vmatpush1.msra.mxu0 0.0
        %1543 = vmatprep.subr.mxu0 0.0
        %1544 = vmatpush1.msra.mxu0 0.0
        %1545 = vmatprep.subr.mxu0 0.0
        %1546 = vmatpush1.msra.mxu0 0.0
        %1547 = vmatprep.subr.mxu0 0.0
        %1548 = vmatpush1.msra.mxu0 0.0
        %1549 = vmatprep.subr.mxu0 0.0
        %1550 = vmatpush1.msra.mxu0 0.0
        %1551 = vmatprep.subr.mxu0 0.0
        %1552 = vmatpush1.msra.mxu0 0.0
        %1553 = vmatprep.subr.mxu0 0.0
        %1554 = vmatpush1.msra.mxu0 0.0
        %1555 = vmatprep.subr.mxu0 0.0
        %1556 = vmatpush1.msra.mxu0 0.0
        %1557 = vmatprep.subr.mxu0 0.0
        %1558 = vmatpush1.msra.mxu0 0.0
        %1559 = vmatprep.subr.mxu0 0.0
        %1560 = vmatpush1.msra.mxu0 0.0
        %1561 = vmatprep.subr.mxu0 0.0
        %1562 = vmatpush1.msra.mxu0 0.0
        %1563 = vmatprep.subr.mxu0 0.0
        %1564 = vmatpush1.msra.mxu0 0.0
        %1565 = vmatprep.subr.mxu0 0.0
        %1566 = vmatpush1.msra.mxu0 0.0
        %1567 = vmatprep.subr.mxu0 0.0
        %1568 = vmatpush1.msra.mxu0 0.0
        %1569 = vmatprep.subr.mxu0 0.0
        %1570 = vmatpush1.msra.mxu0 0.0
        %1571 = vmatprep.subr.mxu0 0.0
        %1572 = vmatpush1.msra.mxu0 0.0
        %1573 = vmatprep.subr.mxu0 0.0
        %1574 = vmatpush1.msra.mxu0 0.0
        %1575 = vmatprep.subr.mxu0 0.0
        %1576 = vmatpush1.msra.mxu0 0.0
        %1577 = vmatprep.subr.mxu0 0.0
        %1578 = vmatpush1.msra.mxu0 0.0
        %1579 = vmatprep.subr.mxu0 0.0
        %1580 = vmatpush1.msra.mxu0 0.0
        %1581 = vmatprep.subr.mxu0 0.0
        %1582 = vmatpush1.msra.mxu0 0.0
        %1583 = vmatprep.subr.mxu0 0.0
        %1584 = vmatpush1.msra.mxu0 0.0
        %1585 = vmatprep.mubr.f32.mxu0 0.0
        %1586 = vmatmul.mubr.f32.gmra.mrb[0].mxu0 %v1519
        %v1587 = vpop.f32.mrb[0].mxu0
        %v1588 = vadd.f32 0.0, %v1587
        %v1589 = vpop.f32.mrb[0].mxu0
        %1590 = vdwg.mxu0
        %v1592 = vsel %vm438, %v1517, 0
        %1594 = vmatprep.subr.mxu0 0.0
        %1595 = vmatpush1.msra.mxu0 %v354
        %1596 = vmatprep.subr.mxu0 0.0
        %1597 = vmatpush1.msra.mxu0 %v355
        %1598 = vmatprep.subr.mxu0 0.0
        %1599 = vmatpush1.msra.mxu0 %v356
        %1600 = vmatprep.subr.mxu0 0.0
        %1601 = vmatpush1.msra.mxu0 %v357
        %1602 = vmatprep.subr.mxu0 0.0
        %1603 = vmatpush1.msra.mxu0 0.0
        %1604 = vmatprep.subr.mxu0 0.0
        %1605 = vmatpush1.msra.mxu0 0.0
        %1606 = vmatprep.subr.mxu0 0.0
        %1607 = vmatpush1.msra.mxu0 0.0
        %1608 = vmatprep.subr.mxu0 0.0
        %1609 = vmatpush1.msra.mxu0 0.0
        %1610 = vmatprep.subr.mxu0 0.0
        %1611 = vmatpush1.msra.mxu0 0.0
        %1612 = vmatprep.subr.mxu0 0.0
        %1613 = vmatpush1.msra.mxu0 0.0
        %1614 = vmatprep.subr.mxu0 0.0
        %1615 = vmatpush1.msra.mxu0 0.0
        %1616 = vmatprep.subr.mxu0 0.0
        %1617 = vmatpush1.msra.mxu0 0.0
        %1618 = vmatprep.subr.mxu0 0.0
        %1619 = vmatpush1.msra.mxu0 0.0
        %1620 = vmatprep.subr.mxu0 0.0
        %1621 = vmatpush1.msra.mxu0 0.0
        %1622 = vmatprep.subr.mxu0 0.0
        %1623 = vmatpush1.msra.mxu0 0.0
        %1624 = vmatprep.subr.mxu0 0.0
        %1625 = vmatpush1.msra.mxu0 0.0
        %1626 = vmatprep.subr.mxu0 0.0
        %1627 = vmatpush1.msra.mxu0 0.0
        %1628 = vmatprep.subr.mxu0 0.0
        %1629 = vmatpush1.msra.mxu0 0.0
        %1630 = vmatprep.subr.mxu0 0.0
        %1631 = vmatpush1.msra.mxu0 0.0
        %1632 = vmatprep.subr.mxu0 0.0
        %1633 = vmatpush1.msra.mxu0 0.0
        %1634 = vmatprep.subr.mxu0 0.0
        %1635 = vmatpush1.msra.mxu0 0.0
        %1636 = vmatprep.subr.mxu0 0.0
        %1637 = vmatpush1.msra.mxu0 0.0
        %1638 = vmatprep.subr.mxu0 0.0
        %1639 = vmatpush1.msra.mxu0 0.0
        %1640 = vmatprep.subr.mxu0 0.0
        %1641 = vmatpush1.msra.mxu0 0.0
        %1642 = vmatprep.subr.mxu0 0.0
        %1643 = vmatpush1.msra.mxu0 0.0
        %1644 = vmatprep.subr.mxu0 0.0
        %1645 = vmatpush1.msra.mxu0 0.0
        %1646 = vmatprep.subr.mxu0 0.0
        %1647 = vmatpush1.msra.mxu0 0.0
        %1648 = vmatprep.subr.mxu0 0.0
        %1649 = vmatpush1.msra.mxu0 0.0
        %1650 = vmatprep.subr.mxu0 0.0
        %1651 = vmatpush1.msra.mxu0 0.0
        %1652 = vmatprep.subr.mxu0 0.0
        %1653 = vmatpush1.msra.mxu0 0.0
        %1654 = vmatprep.subr.mxu0 0.0
        %1655 = vmatpush1.msra.mxu0 0.0
        %1656 = vmatprep.subr.mxu0 0.0
        %1657 = vmatpush1.msra.mxu0 0.0
        %1658 = vmatprep.mubr.f32.mxu0 0.0
        %1659 = vmatmul.mubr.f32.gmra.mrb[0].mxu0 %v1592
        %v1660 = vpop.f32.mrb[0].mxu0
        %v1661 = vadd.f32 %v1588, %v1660
        %v1662 = vpop.f32.mrb[0].mxu0
        %1663 = vdwg.mxu0
        %v1664 = vadd.f32 %v1661, %v516
        %v1665 = vxor.u32 %v1664, 2147483648
        %v1666 = vmul.f32 %v1665, 1.442695
        %v1667 = vpow.pop %v1666
        %v1668 = vadd.f32 %v1667, 1.0
        %v1669 = vrcp.pop %v1668
        %v1670 = vmul.f32 1.0, %v1669
        %v1671 = vtanh.pop %v1664
        %1673 = vrot.lane.b32.xlu0 %v1515, 16
        %v1674 = vpop.permute.xlu0 %1673
        %v1676 = vmul.f32 %v1670, %v1674
        %1678 = vrot.lane.b32.xlu0 %v1671, 96
        %v1679 = vpop.permute.xlu0 %1678
        %v1681 = vmul.f32 %v1670, %v1679
        %1683 = vrot.lane.b32.xlu0 %v1681, 16
        %v1684 = vpop.permute.xlu0 %1683
        %v1686 = vadd.f32 %v1676, %v1684
        %v1687 = vtanh.pop %v1686
        %1689 = vrot.lane.b32.xlu0 %v1687, 32
        %v1690 = vpop.permute.xlu0 %1689
        %v1692 = vmul.f32 %v1670, %v1690
        %1694 = vrot.lane.b32.xlu0 %v1692, 80
        %v1695 = vpop.permute.xlu0 %1694
        %1697 = vst.msk [vmem:[#allocation2] sm:$0x3] %vm551, %v1695
        %1699 = vrot.lane.b32.xlu0 %v1686, 112
        %v1700 = vpop.permute.xlu0 %1699
        %1702 = vst.msk [vmem:[#allocation3] sm:$0x3] %vm551, %v1700
        %s1703 = scalar_lea.vmem %s344, 12 [#allocation12]
        %1704 = vst.msk [vmem:[%s1703] sm:$0x3] %vm551, %v1695
        %v1705 = vld [vmem:[#allocation2] sm:$0x3]
        %v1706 = vld [vmem:[#allocation3] sm:$0x3]
        %s1707 = scalar_lea.vmem %s280, 14 [#allocation4]
        %v1708 = vld [vmem:[%s1707] sm:$0x3]
        %v1710 = vsel %vm364, %v1705, 0
        %1712 = vmatprep.subr.mxu0 0.0
        %1713 = vmatpush1.msra.mxu0 %v358
        %1714 = vmatprep.subr.mxu0 0.0
        %1715 = vmatpush1.msra.mxu0 %v359
        %1716 = vmatprep.subr.mxu0 0.0
        %1717 = vmatpush1.msra.mxu0 0.0
        %1718 = vmatprep.subr.mxu0 0.0
        %1719 = vmatpush1.msra.mxu0 0.0
        %1720 = vmatprep.subr.mxu0 0.0
        %1721 = vmatpush1.msra.mxu0 0.0
        %1722 = vmatprep.subr.mxu0 0.0
        %1723 = vmatpush1.msra.mxu0 0.0
        %1724 = vmatprep.subr.mxu0 0.0
        %1725 = vmatpush1.msra.mxu0 0.0
        %1726 = vmatprep.subr.mxu0 0.0
        %1727 = vmatpush1.msra.mxu0 0.0
        %1728 = vmatprep.subr.mxu0 0.0
        %1729 = vmatpush1.msra.mxu0 0.0
        %1730 = vmatprep.subr.mxu0 0.0
        %1731 = vmatpush1.msra.mxu0 0.0
        %1732 = vmatprep.subr.mxu0 0.0
        %1733 = vmatpush1.msra.mxu0 0.0
        %1734 = vmatprep.subr.mxu0 0.0
        %1735 = vmatpush1.msra.mxu0 0.0
        %1736 = vmatprep.subr.mxu0 0.0
        %1737 = vmatpush1.msra.mxu0 0.0
        %1738 = vmatprep.subr.mxu0 0.0
        %1739 = vmatpush1.msra.mxu0 0.0
        %1740 = vmatprep.subr.mxu0 0.0
        %1741 = vmatpush1.msra.mxu0 0.0
        %1742 = vmatprep.subr.mxu0 0.0
        %1743 = vmatpush1.msra.mxu0 0.0
        %1744 = vmatprep.subr.mxu0 0.0
        %1745 = vmatpush1.msra.mxu0 0.0
        %1746 = vmatprep.subr.mxu0 0.0
        %1747 = vmatpush1.msra.mxu0 0.0
        %1748 = vmatprep.subr.mxu0 0.0
        %1749 = vmatpush1.msra.mxu0 0.0
        %1750 = vmatprep.subr.mxu0 0.0
        %1751 = vmatpush1.msra.mxu0 0.0
        %1752 = vmatprep.subr.mxu0 0.0
        %1753 = vmatpush1.msra.mxu0 0.0
        %1754 = vmatprep.subr.mxu0 0.0
        %1755 = vmatpush1.msra.mxu0 0.0
        %1756 = vmatprep.subr.mxu0 0.0
        %1757 = vmatpush1.msra.mxu0 0.0
        %1758 = vmatprep.subr.mxu0 0.0
        %1759 = vmatpush1.msra.mxu0 0.0
        %1760 = vmatprep.subr.mxu0 0.0
        %1761 = vmatpush1.msra.mxu0 0.0
        %1762 = vmatprep.subr.mxu0 0.0
        %1763 = vmatpush1.msra.mxu0 0.0
        %1764 = vmatprep.subr.mxu0 0.0
        %1765 = vmatpush1.msra.mxu0 0.0
        %1766 = vmatprep.subr.mxu0 0.0
        %1767 = vmatpush1.msra.mxu0 0.0
        %1768 = vmatprep.subr.mxu0 0.0
        %1769 = vmatpush1.msra.mxu0 0.0
        %1770 = vmatprep.subr.mxu0 0.0
        %1771 = vmatpush1.msra.mxu0 0.0
        %1772 = vmatprep.subr.mxu0 0.0
        %1773 = vmatpush1.msra.mxu0 0.0
        %1774 = vmatprep.subr.mxu0 0.0
        %1775 = vmatpush1.msra.mxu0 0.0
        %1776 = vmatprep.mubr.f32.mxu0 0.0
        %1777 = vmatmul.mubr.f32.gmra.mrb[0].mxu0 %v1710
        %v1778 = vpop.f32.mrb[0].mxu0
        %v1779 = vadd.f32 0.0, %v1778
        %v1780 = vpop.f32.mrb[0].mxu0
        %1781 = vdwg.mxu0
        %v1783 = vsel %vm438, %v1708, 0
        %1785 = vmatprep.subr.mxu0 0.0
        %1786 = vmatpush1.msra.mxu0 %v354
        %1787 = vmatprep.subr.mxu0 0.0
        %1788 = vmatpush1.msra.mxu0 %v355
        %1789 = vmatprep.subr.mxu0 0.0
        %1790 = vmatpush1.msra.mxu0 %v356
        %1791 = vmatprep.subr.mxu0 0.0
        %1792 = vmatpush1.msra.mxu0 %v357
        %1793 = vmatprep.subr.mxu0 0.0
        %1794 = vmatpush1.msra.mxu0 0.0
        %1795 = vmatprep.subr.mxu0 0.0
        %1796 = vmatpush1.msra.mxu0 0.0
        %1797 = vmatprep.subr.mxu0 0.0
        %1798 = vmatpush1.msra.mxu0 0.0
        %1799 = vmatprep.subr.mxu0 0.0
        %1800 = vmatpush1.msra.mxu0 0.0
        %1801 = vmatprep.subr.mxu0 0.0
        %1802 = vmatpush1.msra.mxu0 0.0
        %1803 = vmatprep.subr.mxu0 0.0
        %1804 = vmatpush1.msra.mxu0 0.0
        %1805 = vmatprep.subr.mxu0 0.0
        %1806 = vmatpush1.msra.mxu0 0.0
        %1807 = vmatprep.subr.mxu0 0.0
        %1808 = vmatpush1.msra.mxu0 0.0
        %1809 = vmatprep.subr.mxu0 0.0
        %1810 = vmatpush1.msra.mxu0 0.0
        %1811 = vmatprep.subr.mxu0 0.0
        %1812 = vmatpush1.msra.mxu0 0.0
        %1813 = vmatprep.subr.mxu0 0.0
        %1814 = vmatpush1.msra.mxu0 0.0
        %1815 = vmatprep.subr.mxu0 0.0
        %1816 = vmatpush1.msra.mxu0 0.0
        %1817 = vmatprep.subr.mxu0 0.0
        %1818 = vmatpush1.msra.mxu0 0.0
        %1819 = vmatprep.subr.mxu0 0.0
        %1820 = vmatpush1.msra.mxu0 0.0
        %1821 = vmatprep.subr.mxu0 0.0
        %1822 = vmatpush1.msra.mxu0 0.0
        %1823 = vmatprep.subr.mxu0 0.0
        %1824 = vmatpush1.msra.mxu0 0.0
        %1825 = vmatprep.subr.mxu0 0.0
        %1826 = vmatpush1.msra.mxu0 0.0
        %1827 = vmatprep.subr.mxu0 0.0
        %1828 = vmatpush1.msra.mxu0 0.0
        %1829 = vmatprep.subr.mxu0 0.0
        %1830 = vmatpush1.msra.mxu0 0.0
        %1831 = vmatprep.subr.mxu0 0.0
        %1832 = vmatpush1.msra.mxu0 0.0
        %1833 = vmatprep.subr.mxu0 0.0
        %1834 = vmatpush1.msra.mxu0 0.0
        %1835 = vmatprep.subr.mxu0 0.0
        %1836 = vmatpush1.msra.mxu0 0.0
        %1837 = vmatprep.subr.mxu0 0.0
        %1838 = vmatpush1.msra.mxu0 0.0
        %1839 = vmatprep.subr.mxu0 0.0
        %1840 = vmatpush1.msra.mxu0 0.0
        %1841 = vmatprep.subr.mxu0 0.0
        %1842 = vmatpush1.msra.mxu0 0.0
        %1843 = vmatprep.subr.mxu0 0.0
        %1844 = vmatpush1.msra.mxu0 0.0
        %1845 = vmatprep.subr.mxu0 0.0
        %1846 = vmatpush1.msra.mxu0 0.0
        %1847 = vmatprep.subr.mxu0 0.0
        %1848 = vmatpush1.msra.mxu0 0.0
        %1849 = vmatprep.mubr.f32.mxu0 0.0
        %1850 = vmatmul.mubr.f32.gmra.mrb[0].mxu0 %v1783
        %v1851 = vpop.f32.mrb[0].mxu0
        %v1852 = vadd.f32 %v1779, %v1851
        %v1853 = vpop.f32.mrb[0].mxu0
        %1854 = vdwg.mxu0
        %v1855 = vadd.f32 %v1852, %v516
        %v1856 = vxor.u32 %v1855, 2147483648
        %v1857 = vmul.f32 %v1856, 1.442695
        %v1858 = vpow.pop %v1857
        %v1859 = vadd.f32 %v1858, 1.0
        %v1860 = vrcp.pop %v1859
        %v1861 = vmul.f32 1.0, %v1860
        %v1862 = vtanh.pop %v1855
        %1864 = vrot.lane.b32.xlu0 %v1706, 16
        %v1865 = vpop.permute.xlu0 %1864
        %v1867 = vmul.f32 %v1861, %v1865
        %1869 = vrot.lane.b32.xlu0 %v1862, 96
        %v1870 = vpop.permute.xlu0 %1869
        %v1872 = vmul.f32 %v1861, %v1870
        %1874 = vrot.lane.b32.xlu0 %v1872, 16
        %v1875 = vpop.permute.xlu0 %1874
        %v1877 = vadd.f32 %v1867, %v1875
        %v1878 = vtanh.pop %v1877
        %1880 = vrot.lane.b32.xlu0 %v1878, 32
        %v1881 = vpop.permute.xlu0 %1880
        %v1883 = vmul.f32 %v1861, %v1881
        %1885 = vrot.lane.b32.xlu0 %v1883, 80
        %v1886 = vpop.permute.xlu0 %1885
        %1888 = vst.msk [vmem:[#allocation2] sm:$0x3] %vm551, %v1886
        %1890 = vrot.lane.b32.xlu0 %v1877, 112
        %v1891 = vpop.permute.xlu0 %1890
        %1893 = vst.msk [vmem:[#allocation3] sm:$0x3] %vm551, %v1891
        %s1894 = scalar_lea.vmem %s344, 14 [#allocation12]
        %1895 = vst.msk [vmem:[%s1894] sm:$0x3] %vm551, %v1886
        %s1896 = sand.u32 %s155, 1
        %s1897 = scalar_lea.sflag [#allocation6], %s1896
        %s1898 = sand.u32 %s155, 1
        %s1899 = smul.addr %s1898, 16
        %s1900 = scalar_lea.vmem [#allocation12], %s1899
        // Predicated region
        $region57: #{tacotron2_forward.10} parent=35 // pred_check
          %p1901 = pneg %p165
        $region58: #{tacotron2_forward.10} parent=35 // pred_check_branch
          %1903 = sbr.rel (%p1901) target = $region60
        $region59: #{tacotron2_forward.10} parent=35 // pred_region
          %s1904 = smul.u32 8, %s32
          %s1906 = ssub.s32 256, 256
          %1907 = vsyncadd %s1897, %s1906
          %s1908 = smul.addr %s31, 8
          %s1909 = sadd.s32 %s1904, %s1908
          %s1910 = smul.addr %s1909, 32
          %s1911 = scalar_lea.hbm %s4, %s1910
          %s1912 = sshll.u32 %s1900, 4
          %s1913 = int_to_ptr.vmem [resolvable:$true] %s1912
          %1918 = dma.vmem_to_hbm [thread:$0]  %s1913, 256, %s1911, %s1897, 32, 32, 2
        $region60: #{tacotron2_forward.10} parent=35 // pred_fallthru
          _
      $region36: #{tacotron2_forward.10} parent=5 // pred_fallthru
        _
      %p1919 = scmp.le.s32.totalorder 2, %s22
      // Predicated region
      $region61: #{tacotron2_forward.10} parent=5 // pred_check
        %p1920 = pneg %p1919
      $region62: #{tacotron2_forward.10} parent=5 // pred_check_branch
        %1922 = sbr.rel (%p1920) target = $region64
      $region63: #{tacotron2_forward.10} parent=5 // pred_region
        %s1923 = ssub.s32 %s22, 2
        // Predicated region
        $region65: #{tacotron2_forward.10} parent=63 // pred_check
          %p1924 = pneg %p171
        $region66: #{tacotron2_forward.10} parent=63 // pred_check_branch
          %1926 = sbr.rel (%p1924) target = $region68
        $region67: #{tacotron2_forward.10} parent=63 // pred_region
          %s1927 = sand.u32 %s156, 1
          %s1928 = scalar_lea.sflag [#allocation6], %s1927
          %s1929 = sand.u32 %s156, 1
          %s1930 = smul.addr %s1929, 16
          %s1931 = scalar_lea.vmem [#allocation12], %s1930
          %1932 = dma.done %s1928, 256
        $region68: #{tacotron2_forward.10} parent=63 // pred_fallthru
          _
      $region64: #{tacotron2_forward.10} parent=5 // pred_fallthru
        _
    $region6: #{tacotron2_forward.10} parent=1 // loop_footer
      %s26 = sadd.s32 1, %s22
    $region7: #{tacotron2_forward.10} parent=1 // loop_footer_branch
      %21 = sbr.rel target = $region3
    $region8: #{tacotron2_forward.10} parent=1 // loop_exit
      _
    %1933 = vsyncpa [#allocation5], 1
    %s1934 = scalar_lea.sflag [#allocation5], 1
    %1935 = vsyncpa %s1934, 1
    %1936 = vsyncpa [#allocation8], 1
    %s1937 = scalar_lea.sflag [#allocation8], 1
    %1938 = vsyncpa %s1937, 1
    %1939 = vsyncpa [#allocation11], 1
    %s1940 = scalar_lea.sflag [#allocation11], 1
    %1941 = vsyncpa %s1940, 1
    %1942 = vsyncpa [#allocation6], 1
    %s1943 = scalar_lea.sflag [#allocation6], 1
    %1944 = vsyncpa %s1943, 1

// kernel: tacotron2_forward.17
$region0: #{tacotron2_forward.17}
  #allocation0 [shape = 'u32[]', space=smem, size = 0x4, offset = 0x4, fixed_abs, tag = 'smem constant byte address 0x4 - core index']
  #allocation1 [shape = 'u32[144,128]{1,0:T(1,128)}', space=vmem, size = 0x12000, scoped, tag = 'internal scratch']
  %s0 = inlined_call_operand.hbm [shape: f32[16,160], index: 0, kind: input, shape index: {}]
  %s1 = inlined_call_operand.hbm [shape: f32[160,16], index: 1, kind: input, shape index: {}]
  %s2 = inlined_call_operand.hbm [shape: f32[1,16], index: 2, kind: input, shape index: {}]
  %s3 = inlined_call_operand.hbm [shape: f32[16,16], index: 3, kind: output, shape index: {}]
  %s4 = sld [smem:[#allocation0]]
  $region34: #{tacotron2_forward.17} parent=0
    _
  %s6 = ssub.s32 1, %s4
  %s7 = scalar_select 0, %s6, %s4
  $region1: #{tacotron2_forward.17} parent=0
    #allocation2 [shape = 'u8[16384]{0}', space=vmem, size = 0x4000, scoped, tag = 'input window, operand 0, single buffered']
    #allocation3 [shape = 's32[1]{0}', space=sflag, size = 0x4, scoped, tag = 'scoped memory for tacotron2_forward.17']
    #allocation4 [shape = 's32[1]{0}', space=sflag, size = 0x4, scoped, tag = 'scoped memory for tacotron2_forward.17']
    #allocation5 [shape = 'u8[81920]{0}', space=vmem, size = 0x14000, scoped, tag = 'input window, operand 1, single buffered']
    #allocation6 [shape = 's32[1]{0}', space=sflag, size = 0x4, scoped, tag = 'scoped memory for tacotron2_forward.17']
    #allocation7 [shape = 'u8[512]{0}', space=vmem, size = 0x400, scoped, tag = 'input window, operand 2, single buffered']
    #allocation8 [shape = 'u8[8192]{0}', space=vmem, size = 0x2000, scoped, tag = 'output window, operand 0, single buffered']
    %8 = vsyncpa [#allocation3], 0
    %9 = vsyncpa [#allocation6], 0
    %10 = vsyncpa [#allocation4], 0
    // Predicated region
    $region2: #{tacotron2_forward.17} parent=1 // pred_check
      _
    $region3: #{tacotron2_forward.17} parent=1 // pred_check_branch
      %12 = sbr.rel (0) target = $region5
    $region4: #{tacotron2_forward.17} parent=1 // pred_region
      %s14 = ssub.s32 512, 512
      %15 = vsyncadd [#allocation3], %s14
      %s16 = sshll.u32 [#allocation2], 4
      %s17 = int_to_ptr.vmem [resolvable:$true] %s16
      %22 = dma.hbm_to_vmem [thread:$0]  %s0, 512, %s17, [#allocation3], 256, 256, 16
    $region5: #{tacotron2_forward.17} parent=1 // pred_fallthru
      _
    // Predicated region
    $region6: #{tacotron2_forward.17} parent=1 // pred_check
      _
    $region7: #{tacotron2_forward.17} parent=1 // pred_check_branch
      %24 = sbr.rel (0) target = $region9
    $region8: #{tacotron2_forward.17} parent=1 // pred_region
      %s26 = ssub.s32 2560, 2560
      %27 = vsyncadd [#allocation6], %s26
      %s28 = sshll.u32 [#allocation5], 4
      %s29 = int_to_ptr.vmem [resolvable:$true] %s28
      %34 = dma.hbm_to_vmem [thread:$0]  %s1, 2560, %s29, [#allocation6], 128, 128, 8
    $region9: #{tacotron2_forward.17} parent=1 // pred_fallthru
      _
    // Predicated region
    $region10: #{tacotron2_forward.17} parent=1 // pred_check
      _
    $region11: #{tacotron2_forward.17} parent=1 // pred_check_branch
      %36 = sbr.rel (0) target = $region13
    $region12: #{tacotron2_forward.17} parent=1 // pred_region
      %s38 = ssub.s32 16, 16
      %39 = vsyncadd [#allocation6], %s38
      %s41 = sshll.u32 [#allocation7], 4
      %s42 = int_to_ptr.vmem [resolvable:$true] %s41
      %44 = dma.hbm_to_vmem [thread:$0]  %s2, 16, %s42, [#allocation6]
    $region13: #{tacotron2_forward.17} parent=1 // pred_fallthru
      _
    // Predicated region
    $region14: #{tacotron2_forward.17} parent=1 // pred_check
      _
    $region15: #{tacotron2_forward.17} parent=1 // pred_check_branch
      %46 = sbr.rel (0) target = $region17
    $region16: #{tacotron2_forward.17} parent=1 // pred_region
      %47 = dma.done [#allocation3], 512
    $region17: #{tacotron2_forward.17} parent=1 // pred_fallthru
      _
    // Predicated region
    $region18: #{tacotron2_forward.17} parent=1 // pred_check
      _
    $region19: #{tacotron2_forward.17} parent=1 // pred_check_branch
      %49 = sbr.rel (0) target = $region21
    $region20: #{tacotron2_forward.17} parent=1 // pred_region
      %50 = dma.done [#allocation6], 2560
    $region21: #{tacotron2_forward.17} parent=1 // pred_fallthru
      _
    // Predicated region
    $region22: #{tacotron2_forward.17} parent=1 // pred_check
      _
    $region23: #{tacotron2_forward.17} parent=1 // pred_check_branch
      %52 = sbr.rel (0) target = $region25
    $region24: #{tacotron2_forward.17} parent=1 // pred_region
      %53 = dma.done [#allocation6], 16
    $region25: #{tacotron2_forward.17} parent=1 // pred_fallthru
      _
    %v54 = vld [vmem:[#allocation2] sm:$0xff]
    %v55 = vld [vmem:[#allocation2 + $0x8] sm:$0xff]
    %v56 = vld [vmem:[#allocation2 + $0x10] sm:$0xff]
    %v57 = vld [vmem:[#allocation2 + $0x18] sm:$0xff]
    %v58 = vld [vmem:[#allocation5] sm:$0xff]
    %v59 = vld [vmem:[#allocation5 + $0x8] sm:$0xff]
    %v60 = vld [vmem:[#allocation5 + $0x10] sm:$0xff]
    %v61 = vld [vmem:[#allocation5 + $0x18] sm:$0xff]
    %v62 = vld [vmem:[#allocation5 + $0x20] sm:$0xff]
    %v63 = vld [vmem:[#allocation5 + $0x28] sm:$0xff]
    %v64 = vld [vmem:[#allocation5 + $0x30] sm:$0xff]
    %v65 = vld [vmem:[#allocation5 + $0x38] sm:$0xff]
    %v66 = vld [vmem:[#allocation5 + $0x40] sm:$0xff]
    %v67 = vld [vmem:[#allocation5 + $0x48] sm:$0xff]
    %v68 = vld [vmem:[#allocation5 + $0x50] sm:$0xff]
    %v69 = vld [vmem:[#allocation5 + $0x58] sm:$0xff]
    %v70 = vld [vmem:[#allocation5 + $0x60] sm:$0xff]
    %v71 = vld [vmem:[#allocation5 + $0x68] sm:$0xff]
    %v72 = vld [vmem:[#allocation5 + $0x70] sm:$0xff]
    %v73 = vld [vmem:[#allocation5 + $0x78] sm:$0xff]
    %v74 = vld [vmem:[#allocation5 + $0x80] sm:$0xff]
    %v75 = vld [vmem:[#allocation5 + $0x88] sm:$0xff]
    %v76 = vld [vmem:[#allocation5 + $0x90] sm:$0xff]
    %v77 = vld [vmem:[#allocation5 + $0x98] sm:$0xff]
    %v78 = vld [vmem:[#allocation7] sm:$0x1]
    %v80 = vlaneseq
    %v81 = vshrl.u32 %v80, 7
    %v82 = vsub.s32 0, %v81
    %v83 = vrot.slane %v78, %v82
    %vm85 = vcmask 261120
    %v87 = vsel %vm85, %v55, 0
    %v90 = vsel %vm85, %v57, 0
    %92 = vmatprep.subr.mxu0 0.0
    %93 = vmatpush1.msra.mxu0 %v58
    %94 = vmatprep.subr.mxu0 0.0
    %95 = vmatpush1.msra.mxu0 %v59
    %96 = vmatprep.subr.mxu0 0.0
    %97 = vmatpush1.msra.mxu0 %v60
    %98 = vmatprep.subr.mxu0 0.0
    %99 = vmatpush1.msra.mxu0 %v61
    %100 = vmatprep.subr.mxu0 0.0
    %101 = vmatpush1.msra.mxu0 %v62
    %102 = vmatprep.subr.mxu0 0.0
    %103 = vmatpush1.msra.mxu0 %v63
    %104 = vmatprep.subr.mxu0 0.0
    %105 = vmatpush1.msra.mxu0 %v64
    %106 = vmatprep.subr.mxu0 0.0
    %107 = vmatpush1.msra.mxu0 %v65
    %108 = vmatprep.subr.mxu0 0.0
    %109 = vmatpush1.msra.mxu0 %v66
    %110 = vmatprep.subr.mxu0 0.0
    %111 = vmatpush1.msra.mxu0 %v67
    %112 = vmatprep.subr.mxu0 0.0
    %113 = vmatpush1.msra.mxu0 %v68
    %114 = vmatprep.subr.mxu0 0.0
    %115 = vmatpush1.msra.mxu0 %v69
    %116 = vmatprep.subr.mxu0 0.0
    %117 = vmatpush1.msra.mxu0 %v70
    %118 = vmatprep.subr.mxu0 0.0
    %119 = vmatpush1.msra.mxu0 %v71
    %120 = vmatprep.subr.mxu0 0.0
    %121 = vmatpush1.msra.mxu0 %v72
    %122 = vmatprep.subr.mxu0 0.0
    %123 = vmatpush1.msra.mxu0 %v73
    %124 = vmatprep.subr.mxu0 0.0
    %125 = vmatpush1.msra.mxu0 %v74
    %126 = vmatprep.subr.mxu0 0.0
    %127 = vmatpush1.msra.mxu0 %v75
    %128 = vmatprep.subr.mxu0 0.0
    %129 = vmatpush1.msra.mxu0 %v76
    %130 = vmatprep.subr.mxu0 0.0
    %131 = vmatpush1.msra.mxu0 %v77
    %132 = vmatprep.subr.mxu0 0.0
    %133 = vmatpush1.msra.mxu0 0.0
    %134 = vmatprep.subr.mxu0 0.0
    %135 = vmatpush1.msra.mxu0 0.0
    %136 = vmatprep.subr.mxu0 0.0
    %137 = vmatpush1.msra.mxu0 0.0
    %138 = vmatprep.subr.mxu0 0.0
    %139 = vmatpush1.msra.mxu0 0.0
    %140 = vmatprep.subr.mxu0 0.0
    %141 = vmatpush1.msra.mxu0 0.0
    %142 = vmatprep.subr.mxu0 0.0
    %143 = vmatpush1.msra.mxu0 0.0
    %144 = vmatprep.subr.mxu0 0.0
    %145 = vmatpush1.msra.mxu0 0.0
    %146 = vmatprep.subr.mxu0 0.0
    %147 = vmatpush1.msra.mxu0 0.0
    %148 = vmatprep.subr.mxu0 0.0
    %149 = vmatpush1.msra.mxu0 0.0
    %150 = vmatprep.subr.mxu0 0.0
    %151 = vmatpush1.msra.mxu0 0.0
    %152 = vmatprep.subr.mxu0 0.0
    %153 = vmatpush1.msra.mxu0 0.0
    %154 = vmatprep.subr.mxu0 0.0
    %155 = vmatpush1.msra.mxu0 0.0
    %156 = vmatprep.mubr.f32.mxu0 %v87
    %157 = vmatmul.mubr.f32.gmra.mrb[0].mxu0 %v54
    %v158 = vpop.f32.mrb[0].mxu0
    %v159 = vadd.f32 %v83, %v158
    %v160 = vpop.f32.mrb[0].mxu0
    %161 = vmatprep.mubr.f32.mxu0 %v90
    %162 = vmatmul.mubr.f32.gmra.mrb[0].mxu0 %v56
    %v163 = vpop.f32.mrb[0].mxu0
    %v164 = vadd.f32 %v83, %v163
    %v165 = vpop.f32.mrb[0].mxu0
    %166 = vdwg.mxu0
    %vm167 = vcmask 130048
    %168 = vst.msk [vmem:[#allocation8] sm:$0xff] %vm167, %v159
    %169 = vst.msk [vmem:[#allocation8 + $0x8] sm:$0xff] %vm167, %v164
    // Predicated region
    $region26: #{tacotron2_forward.17} parent=1 // pred_check
      _
    $region27: #{tacotron2_forward.17} parent=1 // pred_check_branch
      %171 = sbr.rel (0) target = $region29
    $region28: #{tacotron2_forward.17} parent=1 // pred_region
      %s173 = ssub.s32 256, 256
      %174 = vsyncadd [#allocation4], %s173
      %s175 = sshll.u32 [#allocation8], 4
      %s176 = int_to_ptr.vmem [resolvable:$true] %s175
      %181 = dma.vmem_to_hbm [thread:$0]  %s176, 256, %s3, [#allocation4], 128, 128, 8
    $region29: #{tacotron2_forward.17} parent=1 // pred_fallthru
      _
    // Predicated region
    $region30: #{tacotron2_forward.17} parent=1 // pred_check
      _
    $region31: #{tacotron2_forward.17} parent=1 // pred_check_branch
      %183 = sbr.rel (0) target = $region33
    $region32: #{tacotron2_forward.17} parent=1 // pred_region
      %184 = dma.done [#allocation4], 256
    $region33: #{tacotron2_forward.17} parent=1 // pred_fallthru
      _
    %185 = vsyncpa [#allocation3], 1
    %186 = vsyncpa [#allocation6], 1
    %187 = vsyncpa [#allocation4], 1

</llo_original>
